<compile_context>
chip_gen: v7x
topology: tpu7x:2x2x1
jax: 0.10.0
libtpu: 0.0.40
codegen_flags: <defaults>
</compile_context>

<pallas_src>
import functools

import jax
import jax.numpy as jnp
import numpy as np
from jax.experimental import pallas as pl
from jax.experimental.pallas import tpu as pltpu


def _lstm_recurrence_kernel(xp_ref, wh_ref, h_out_ref, h_sc, c_sc, *, t_blk):
    """One grid step advances the recurrence by `t_blk` time steps.

    Refs:
      xp_ref   : (t_blk, 4, B, H)  precomputed x_t @ W_x + b, per gate [g,i,f,o]
      wh_ref   : (4, H, H)         hidden->gate weights, per gate [g,i,f,o]
      h_out_ref: (B, H)            final hidden state (same block every step -> resident)
      h_sc     : (B, H)            hidden-state scratch (persists across grid)
      c_sc     : (B, H)            cell-state scratch   (persists across grid)
    """
    tb = pl.program_id(0)

    @pl.when(tb == 0)
    def _init():
        h_sc[...] = jnp.zeros_like(h_sc)
        c_sc[...] = jnp.zeros_like(c_sc)

    h = h_sc[...]
    c = c_sc[...]

    # Hoist resident weight loads out of the (unrolled) time loop.
    w_g = wh_ref[0]
    w_i = wh_ref[1]
    w_f = wh_ref[2]
    w_o = wh_ref[3]

    # Static trip count -> fully unrolled at trace time; only the unavoidable
    # h @ W_h dependence remains on the serial critical path.
    for s in range(t_blk):
        g = jnp.tanh(xp_ref[s, 0]
                     + jnp.dot(h, w_g, preferred_element_type=jnp.float32))
        i = jax.nn.sigmoid(xp_ref[s, 1]
                           + jnp.dot(h, w_i, preferred_element_type=jnp.float32))
        f = jax.nn.sigmoid(xp_ref[s, 2]
                           + jnp.dot(h, w_f, preferred_element_type=jnp.float32))
        o = jax.nn.sigmoid(xp_ref[s, 3]
                           + jnp.dot(h, w_o, preferred_element_type=jnp.float32))
        c = g * i + c * f
        h = jnp.tanh(c) * o

    h_sc[...] = h
    c_sc[...] = c
    h_out_ref[...] = h


def lstm_forward(x, params, *, t_blk=None):
    """x: (batch, seq_length, input_dim) float32 -> logits (batch, num_classes)."""
    B, T, D = x.shape
    W_x, W_h, b, W_ph, b_p = (params["W_x"], params["W_h"], params["b"],
                              params["W_ph"], params["b_p"])
    H = W_h.shape[-1]

    if t_blk is None:
        # Whole sequence per grid step for small T; block longer sequences so
        # the resident xp block stays comfortably inside VMEM.
        t_blk = T if T <= 64 else 64
        while T % t_blk != 0:
            t_blk -= 1
    assert T % t_blk == 0
    n_blocks = T // t_blk

    # --- hoisted input projection: one MXU-friendly matmul, bias folded in ---
    x_tm = jnp.transpose(x, (1, 0, 2)).reshape(T * B, D)               # time-major
    xp = jnp.dot(x_tm, W_x, preferred_element_type=jnp.float32) + b    # (T*B, 4H)
    # Lane-aligned per-gate layout so the kernel never slices inside a vreg.
    xp = xp.reshape(T, B, 4, H).transpose(0, 2, 1, 3)                  # (T, 4, B, H)

    kernel = functools.partial(_lstm_recurrence_kernel, t_blk=t_blk)

    h_final = pl.pallas_call(
        kernel,
        out_shape=jax.ShapeDtypeStruct((B, H), jnp.float32),
        grid_spec=pltpu.PrefetchScalarGridSpec(
            num_scalar_prefetch=0,
            grid=(n_blocks,),
            in_specs=[
                # xp time block; pipelined across grid steps when n_blocks > 1.
                pl.BlockSpec((t_blk, 4, B, H), lambda tb: (tb, 0, 0, 0)),
                # Hidden weights stay resident across the whole grid.
                pl.BlockSpec((4, H, H), lambda tb: (0, 0, 0)),
            ],
            # Same block every step -> resident accumulator, written back once.
            out_specs=pl.BlockSpec((B, H), lambda tb: (0, 0)),
            scratch_shapes=[
                pltpu.VMEM((B, H), jnp.float32),  # h state
                pltpu.VMEM((B, H), jnp.float32),  # c state
            ],
        ),
        compiler_params=pltpu.CompilerParams(
            dimension_semantics=("arbitrary",),  # time recurrence is sequential
        ),
    )(xp, W_h)

    # --- hoisted output projection (C is tiny / lane-sparse; do it in XLA) ---
    return jnp.dot(h_final, W_ph, preferred_element_type=jnp.float32) + b_p


def init_params(key, input_dim, num_hidden, num_classes):
    """Deterministic init matching the module: U(-1/sqrt(H), 1/sqrt(H)) for all
    weight matrices; b_g = b_i = b_o = b_p = 0, b_f = 1.  Gate order [g,i,f,o]."""
    bound = float(np.sqrt(1.0 / num_hidden))
    keys = jax.random.split(key, 9)

    def u(k, shape):
        return jax.random.uniform(k, shape, jnp.float32, -bound, bound)

    W_gx, W_ix, W_fx, W_ox = (u(keys[i], (input_dim, num_hidden)) for i in range(4))
    W_gh, W_ih, W_fh, W_oh = (u(keys[4 + i], (num_hidden, num_hidden)) for i in range(4))
    W_ph = u(keys[8], (num_hidden, num_classes))

    b_g = jnp.zeros((1, num_hidden), jnp.float32)
    b_i = jnp.zeros((1, num_hidden), jnp.float32)
    b_f = jnp.ones((1, num_hidden), jnp.float32)   # forget-gate bias = 1, as in the module
    b_o = jnp.zeros((1, num_hidden), jnp.float32)
    b_p = jnp.zeros((1, num_classes), jnp.float32)

    return {
        "W_x": jnp.concatenate([W_gx, W_ix, W_fx, W_ox], axis=1),   # (D, 4H) packed
        "W_h": jnp.stack([W_gh, W_ih, W_fh, W_oh], axis=0),         # (4, H, H) per-gate
        "b": jnp.concatenate([b_g, b_i, b_f, b_o], axis=1),         # (1, 4H) packed
        "W_ph": W_ph,                                               # (H, C)
        "b_p": b_p,                                                 # (1, C)
    }


def lstm_reference(x, params):
    """Pure-JAX reference of the same forward pass (for validation)."""
    B, T, D = x.shape
    H = params["W_h"].shape[-1]
    W_x, W_h, b = params["W_x"], params["W_h"], params["b"]
    h = jnp.zeros((B, H), jnp.float32)
    c = jnp.zeros((B, H), jnp.float32)
    for t in range(T):
        x_t = x[:, t, :]
        xg = x_t @ W_x + b                                   # (B, 4H), order [g,i,f,o]
        g = jnp.tanh(xg[:, 0 * H:1 * H] + h @ W_h[0])
        i = jax.nn.sigmoid(xg[:, 1 * H:2 * H] + h @ W_h[1])
        f = jax.nn.sigmoid(xg[:, 2 * H:3 * H] + h @ W_h[2])
        o = jax.nn.sigmoid(xg[:, 3 * H:4 * H] + h @ W_h[3])
        c = g * i + c * f
        h = jnp.tanh(c) * o
    return h @ params["W_ph"] + params["b_p"]


if __name__ == "__main__":
    # Small shapes consistent with the module; batch == num_hidden so the
    # original PyTorch code's (num_hidden, batch) zero-state quirk type-checks.
    seq_length = 8
    input_dim = 4
    num_hidden = 32
    num_classes = 10
    batch_size = 32

    key = jax.random.PRNGKey(0)
    k_param, k_x = jax.random.split(key)
    params = init_params(k_param, input_dim, num_hidden, num_classes)
    x = jax.random.normal(k_x, (batch_size, seq_length, input_dim), jnp.float32)

    out = jax.block_until_ready(lstm_forward(x, params))
    ref = jax.block_until_ready(lstm_reference(x, params))
    np.testing.assert_allclose(np.asarray(out), np.asarray(ref), rtol=1e-2, atol=1e-2)

    # TODO(synk): gradient_check=True bookkeeping path (grad_hidden_list) is
    # training-only instrumentation and has no forward-pass Pallas equivalent.
    print("KERNEL_OK")
</pallas_src>

<mosaic_0001>
module attributes {stable_mosaic.version = 11 : i64} {
  func.func @_lstm_recurrence_kernel(%arg0: i32, %arg1: memref<8x4x32x32xf32, #tpu.memory_space<vmem>>, %arg2: memref<4x32x32xf32, #tpu.memory_space<vmem>>, %arg3: memref<32x32xf32, #tpu.memory_space<vmem>>, %arg4: memref<32x32xf32, #tpu.memory_space<vmem>>, %arg5: memref<32x32xf32, #tpu.memory_space<vmem>>) attributes {dimension_semantics = [#tpu.dimension_semantics<arbitrary>], iteration_bounds = array<i64: 1>, scalar_prefetch = 0 : i64, scratch_operands = 2 : i64, tpu.core_type = #tpu.core_type<tc>, window_params = [{transform_indices = @transform_0, window_bounds = array<i64: 8, 4, 32, 32>}, {pipeline_mode = #tpu.pipeline_mode<synchronous>, transform_indices = @transform_1, window_bounds = array<i64: 4, 32, 32>}, {pipeline_mode = #tpu.pipeline_mode<synchronous>, transform_indices = @transform_2, window_bounds = array<i64: 32, 32>}]} {
    %c0_i32 = arith.constant 0 : i32
    %0 = arith.cmpi eq, %arg0, %c0_i32 : i32
    %1 = arith.extui %0 : i1 to i32
    %c0_i32_0 = arith.constant 0 : i32
    %2 = arith.cmpi ne, %1, %c0_i32_0 : i32
    scf.if %2 {
      %cst_198 = arith.constant 0.000000e+00 : f32
      %312 = vector.broadcast %cst_198 : f32 to vector<32x32xf32>
      %c0_199 = arith.constant 0 : index
      %c0_200 = arith.constant 0 : index
      %313 = vector.load %arg4[%c0_199, %c0_200] : memref<32x32xf32, #tpu.memory_space<vmem>>, vector<32x32xf32>
      tpu.vector_store %arg4[%c0_199, %c0_200], %312 {strides = array<i32>} : memref<32x32xf32, #tpu.memory_space<vmem>>, vector<32x32xf32>,
      %cst_201 = arith.constant 0.000000e+00 : f32
      %314 = vector.broadcast %cst_201 : f32 to vector<32x32xf32>
      %c0_202 = arith.constant 0 : index
      %c0_203 = arith.constant 0 : index
      %315 = vector.load %arg5[%c0_202, %c0_203] : memref<32x32xf32, #tpu.memory_space<vmem>>, vector<32x32xf32>
      tpu.vector_store %arg5[%c0_202, %c0_203], %314 {strides = array<i32>} : memref<32x32xf32, #tpu.memory_space<vmem>>, vector<32x32xf32>,
    } else {
    }
    %c0 = arith.constant 0 : index
    %c0_1 = arith.constant 0 : index
    %3 = vector.load %arg4[%c0, %c0_1] : memref<32x32xf32, #tpu.memory_space<vmem>>, vector<32x32xf32>
    %c0_2 = arith.constant 0 : index
    %c0_3 = arith.constant 0 : index
    %4 = vector.load %arg5[%c0_2, %c0_3] : memref<32x32xf32, #tpu.memory_space<vmem>>, vector<32x32xf32>
    %c0_4 = arith.constant 0 : index
    %c0_5 = arith.constant 0 : index
    %c0_6 = arith.constant 0 : index
    %5 = vector.load %arg2[%c0_4, %c0_5, %c0_6] : memref<4x32x32xf32, #tpu.memory_space<vmem>>, vector<1x32x32xf32>
    %6 = vector.shape_cast %5 : vector<1x32x32xf32> to vector<32x32xf32>
    %c1 = arith.constant 1 : index
    %c0_7 = arith.constant 0 : index
    %c0_8 = arith.constant 0 : index
    %7 = vector.load %arg2[%c1, %c0_7, %c0_8] : memref<4x32x32xf32, #tpu.memory_space<vmem>>, vector<1x32x32xf32>
    %8 = vector.shape_cast %7 : vector<1x32x32xf32> to vector<32x32xf32>
    %c2 = arith.constant 2 : index
    %c0_9 = arith.constant 0 : index
    %c0_10 = arith.constant 0 : index
    %9 = vector.load %arg2[%c2, %c0_9, %c0_10] : memref<4x32x32xf32, #tpu.memory_space<vmem>>, vector<1x32x32xf32>
    %10 = vector.shape_cast %9 : vector<1x32x32xf32> to vector<32x32xf32>
    %c3 = arith.constant 3 : index
    %c0_11 = arith.constant 0 : index
    %c0_12 = arith.constant 0 : index
    %11 = vector.load %arg2[%c3, %c0_11, %c0_12] : memref<4x32x32xf32, #tpu.memory_space<vmem>>, vector<1x32x32xf32>
    %12 = vector.shape_cast %11 : vector<1x32x32xf32> to vector<32x32xf32>
    %c0_13 = arith.constant 0 : index
    %c0_14 = arith.constant 0 : index
    %c0_15 = arith.constant 0 : index
    %c0_16 = arith.constant 0 : index
    %13 = vector.load %arg1[%c0_13, %c0_14, %c0_15, %c0_16] : memref<8x4x32x32xf32, #tpu.memory_space<vmem>>, vector<1x1x32x32xf32>
    %14 = vector.shape_cast %13 : vector<1x1x32x32xf32> to vector<32x32xf32>
    %cst = arith.constant dense<0.000000e+00> : vector<32x32xf32>
    %15 = tpu.matmul %3, %6, %cst {dimension_numbers = #tpu.dot_dimension_numbers<[1], [0], [0], [1], [0, 0, 1, 1], [], []>} : vector<32x32xf32>, vector<32x32xf32>, vector<32x32xf32> -> vector<32x32xf32>
    %16 = arith.addf %14, %15 : vector<32x32xf32>
    %17 = math.tanh %16 : vector<32x32xf32>
    %c0_17 = arith.constant 0 : index
    %c1_18 = arith.constant 1 : index
    %c0_19 = arith.constant 0 : index
    %c0_20 = arith.constant 0 : index
    %18 = vector.load %arg1[%c0_17, %c1_18, %c0_19, %c0_20] : memref<8x4x32x32xf32, #tpu.memory_space<vmem>>, vector<1x1x32x32xf32>
    %19 = vector.shape_cast %18 : vector<1x1x32x32xf32> to vector<32x32xf32>
    %cst_21 = arith.constant dense<0.000000e+00> : vector<32x32xf32>
    %20 = tpu.matmul %3, %8, %cst_21 {dimension_numbers = #tpu.dot_dimension_numbers<[1], [0], [0], [1], [0, 0, 1, 1], [], []>} : vector<32x32xf32>, vector<32x32xf32>, vector<32x32xf32> -> vector<32x32xf32>
    %21 = arith.addf %19, %20 : vector<32x32xf32>
    %22 = arith.negf %21 : vector<32x32xf32>
    %23 = math.exp %22 : vector<32x32xf32>
    %cst_22 = arith.constant 1.000000e+00 : f32
    %24 = vector.broadcast %cst_22 : f32 to vector<32x32xf32>
    %25 = arith.addf %24, %23 : vector<32x32xf32>
    %26 = arith.divf %24, %25 : vector<32x32xf32>
    %c0_23 = arith.constant 0 : index
    %c2_24 = arith.constant 2 : index
    %c0_25 = arith.constant 0 : index
    %c0_26 = arith.constant 0 : index
    %27 = vector.load %arg1[%c0_23, %c2_24, %c0_25, %c0_26] : memref<8x4x32x32xf32, #tpu.memory_space<vmem>>, vector<1x1x32x32xf32>
    %28 = vector.shape_cast %27 : vector<1x1x32x32xf32> to vector<32x32xf32>
    %cst_27 = arith.constant dense<0.000000e+00> : vector<32x32xf32>
    %29 = tpu.matmul %3, %10, %cst_27 {dimension_numbers = #tpu.dot_dimension_numbers<[1], [0], [0], [1], [0, 0, 1, 1], [], []>} : vector<32x32xf32>, vector<32x32xf32>, vector<32x32xf32> -> vector<32x32xf32>
    %30 = arith.addf %28, %29 : vector<32x32xf32>
    %31 = arith.negf %30 : vector<32x32xf32>
    %32 = math.exp %31 : vector<32x32xf32>
    %cst_28 = arith.constant 1.000000e+00 : f32
    %33 = vector.broadcast %cst_28 : f32 to vector<32x32xf32>
    %34 = arith.addf %33, %32 : vector<32x32xf32>
    %35 = arith.divf %33, %34 : vector<32x32xf32>
    %c0_29 = arith.constant 0 : index
    %c3_30 = arith.constant 3 : index
    %c0_31 = arith.constant 0 : index
    %c0_32 = arith.constant 0 : index
    %36 = vector.load %arg1[%c0_29, %c3_30, %c0_31, %c0_32] : memref<8x4x32x32xf32, #tpu.memory_space<vmem>>, vector<1x1x32x32xf32>
    %37 = vector.shape_cast %36 : vector<1x1x32x32xf32> to vector<32x32xf32>
    %cst_33 = arith.constant dense<0.000000e+00> : vector<32x32xf32>
    %38 = tpu.matmul %3, %12, %cst_33 {dimension_numbers = #tpu.dot_dimension_numbers<[1], [0], [0], [1], [0, 0, 1, 1], [], []>} : vector<32x32xf32>, vector<32x32xf32>, vector<32x32xf32> -> vector<32x32xf32>
    %39 = arith.addf %37, %38 : vector<32x32xf32>
    %40 = arith.negf %39 : vector<32x32xf32>
    %41 = math.exp %40 : vector<32x32xf32>
    %cst_34 = arith.constant 1.000000e+00 : f32
    %42 = vector.broadcast %cst_34 : f32 to vector<32x32xf32>
    %43 = arith.addf %42, %41 : vector<32x32xf32>
    %44 = arith.divf %42, %43 : vector<32x32xf32>
    %45 = arith.mulf %17, %26 : vector<32x32xf32>
    %46 = arith.mulf %4, %35 : vector<32x32xf32>
    %47 = arith.addf %45, %46 : vector<32x32xf32>
    %48 = math.tanh %47 : vector<32x32xf32>
    %49 = arith.mulf %48, %44 : vector<32x32xf32>
    %c1_35 = arith.constant 1 : index
    %c0_36 = arith.constant 0 : index
    %c0_37 = arith.constant 0 : index
    %c0_38 = arith.constant 0 : index
    %50 = vector.load %arg1[%c1_35, %c0_36, %c0_37, %c0_38] : memref<8x4x32x32xf32, #tpu.memory_space<vmem>>, vector<1x1x32x32xf32>
    %51 = vector.shape_cast %50 : vector<1x1x32x32xf32> to vector<32x32xf32>
    %cst_39 = arith.constant dense<0.000000e+00> : vector<32x32xf32>
    %52 = tpu.matmul %49, %6, %cst_39 {dimension_numbers = #tpu.dot_dimension_numbers<[1], [0], [0], [1], [0, 0, 1, 1], [], []>} : vector<32x32xf32>, vector<32x32xf32>, vector<32x32xf32> -> vector<32x32xf32>
    %53 = arith.addf %51, %52 : vector<32x32xf32>
    %54 = math.tanh %53 : vector<32x32xf32>
    %c1_40 = arith.constant 1 : index
    %c1_41 = arith.constant 1 : index
    %c0_42 = arith.constant 0 : index
    %c0_43 = arith.constant 0 : index
    %55 = vector.load %arg1[%c1_40, %c1_41, %c0_42, %c0_43] : memref<8x4x32x32xf32, #tpu.memory_space<vmem>>, vector<1x1x32x32xf32>
    %56 = vector.shape_cast %55 : vector<1x1x32x32xf32> to vector<32x32xf32>
    %cst_44 = arith.constant dense<0.000000e+00> : vector<32x32xf32>
    %57 = tpu.matmul %49, %8, %cst_44 {dimension_numbers = #tpu.dot_dimension_numbers<[1], [0], [0], [1], [0, 0, 1, 1], [], []>} : vector<32x32xf32>, vector<32x32xf32>, vector<32x32xf32> -> vector<32x32xf32>
    %58 = arith.addf %56, %57 : vector<32x32xf32>
    %59 = arith.negf %58 : vector<32x32xf32>
    %60 = math.exp %59 : vector<32x32xf32>
    %cst_45 = arith.constant 1.000000e+00 : f32
    %61 = vector.broadcast %cst_45 : f32 to vector<32x32xf32>
    %62 = arith.addf %61, %60 : vector<32x32xf32>
    %63 = arith.divf %61, %62 : vector<32x32xf32>
    %c1_46 = arith.constant 1 : index
    %c2_47 = arith.constant 2 : index
    %c0_48 = arith.constant 0 : index
    %c0_49 = arith.constant 0 : index
    %64 = vector.load %arg1[%c1_46, %c2_47, %c0_48, %c0_49] : memref<8x4x32x32xf32, #tpu.memory_space<vmem>>, vector<1x1x32x32xf32>
    %65 = vector.shape_cast %64 : vector<1x1x32x32xf32> to vector<32x32xf32>
    %cst_50 = arith.constant dense<0.000000e+00> : vector<32x32xf32>
    %66 = tpu.matmul %49, %10, %cst_50 {dimension_numbers = #tpu.dot_dimension_numbers<[1], [0], [0], [1], [0, 0, 1, 1], [], []>} : vector<32x32xf32>, vector<32x32xf32>, vector<32x32xf32> -> vector<32x32xf32>
    %67 = arith.addf %65, %66 : vector<32x32xf32>
    %68 = arith.negf %67 : vector<32x32xf32>
    %69 = math.exp %68 : vector<32x32xf32>
    %cst_51 = arith.constant 1.000000e+00 : f32
    %70 = vector.broadcast %cst_51 : f32 to vector<32x32xf32>
    %71 = arith.addf %70, %69 : vector<32x32xf32>
    %72 = arith.divf %70, %71 : vector<32x32xf32>
    %c1_52 = arith.constant 1 : index
    %c3_53 = arith.constant 3 : index
    %c0_54 = arith.constant 0 : index
    %c0_55 = arith.constant 0 : index
    %73 = vector.load %arg1[%c1_52, %c3_53, %c0_54, %c0_55] : memref<8x4x32x32xf32, #tpu.memory_space<vmem>>, vector<1x1x32x32xf32>
    %74 = vector.shape_cast %73 : vector<1x1x32x32xf32> to vector<32x32xf32>
    %cst_56 = arith.constant dense<0.000000e+00> : vector<32x32xf32>
    %75 = tpu.matmul %49, %12, %cst_56 {dimension_numbers = #tpu.dot_dimension_numbers<[1], [0], [0], [1], [0, 0, 1, 1], [], []>} : vector<32x32xf32>, vector<32x32xf32>, vector<32x32xf32> -> vector<32x32xf32>
    %76 = arith.addf %74, %75 : vector<32x32xf32>
    %77 = arith.negf %76 : vector<32x32xf32>
    %78 = math.exp %77 : vector<32x32xf32>
    %cst_57 = arith.constant 1.000000e+00 : f32
    %79 = vector.broadcast %cst_57 : f32 to vector<32x32xf32>
    %80 = arith.addf %79, %78 : vector<32x32xf32>
    %81 = arith.divf %79, %80 : vector<32x32xf32>
    %82 = arith.mulf %54, %63 : vector<32x32xf32>
    %83 = arith.mulf %47, %72 : vector<32x32xf32>
    %84 = arith.addf %82, %83 : vector<32x32xf32>
    %85 = math.tanh %84 : vector<32x32xf32>
    %86 = arith.mulf %85, %81 : vector<32x32xf32>
    %c2_58 = arith.constant 2 : index
    %c0_59 = arith.constant 0 : index
    %c0_60 = arith.constant 0 : index
    %c0_61 = arith.constant 0 : index
    %87 = vector.load %arg1[%c2_58, %c0_59, %c0_60, %c0_61] : memref<8x4x32x32xf32, #tpu.memory_space<vmem>>, vector<1x1x32x32xf32>
    %88 = vector.shape_cast %87 : vector<1x1x32x32xf32> to vector<32x32xf32>
    %cst_62 = arith.constant dense<0.000000e+00> : vector<32x32xf32>
    %89 = tpu.matmul %86, %6, %cst_62 {dimension_numbers = #tpu.dot_dimension_numbers<[1], [0], [0], [1], [0, 0, 1, 1], [], []>} : vector<32x32xf32>, vector<32x32xf32>, vector<32x32xf32> -> vector<32x32xf32>
    %90 = arith.addf %88, %89 : vector<32x32xf32>
    %91 = math.tanh %90 : vector<32x32xf32>
    %c2_63 = arith.constant 2 : index
    %c1_64 = arith.constant 1 : index
    %c0_65 = arith.constant 0 : index
    %c0_66 = arith.constant 0 : index
    %92 = vector.load %arg1[%c2_63, %c1_64, %c0_65, %c0_66] : memref<8x4x32x32xf32, #tpu.memory_space<vmem>>, vector<1x1x32x32xf32>
    %93 = vector.shape_cast %92 : vector<1x1x32x32xf32> to vector<32x32xf32>
    %cst_67 = arith.constant dense<0.000000e+00> : vector<32x32xf32>
    %94 = tpu.matmul %86, %8, %cst_67 {dimension_numbers = #tpu.dot_dimension_numbers<[1], [0], [0], [1], [0, 0, 1, 1], [], []>} : vector<32x32xf32>, vector<32x32xf32>, vector<32x32xf32> -> vector<32x32xf32>
    %95 = arith.addf %93, %94 : vector<32x32xf32>
    %96 = arith.negf %95 : vector<32x32xf32>
    %97 = math.exp %96 : vector<32x32xf32>
    %cst_68 = arith.constant 1.000000e+00 : f32
    %98 = vector.broadcast %cst_68 : f32 to vector<32x32xf32>
    %99 = arith.addf %98, %97 : vector<32x32xf32>
    %100 = arith.divf %98, %99 : vector<32x32xf32>
    %c2_69 = arith.constant 2 : index
    %c2_70 = arith.constant 2 : index
    %c0_71 = arith.constant 0 : index
    %c0_72 = arith.constant 0 : index
    %101 = vector.load %arg1[%c2_69, %c2_70, %c0_71, %c0_72] : memref<8x4x32x32xf32, #tpu.memory_space<vmem>>, vector<1x1x32x32xf32>
    %102 = vector.shape_cast %101 : vector<1x1x32x32xf32> to vector<32x32xf32>
    %cst_73 = arith.constant dense<0.000000e+00> : vector<32x32xf32>
    %103 = tpu.matmul %86, %10, %cst_73 {dimension_numbers = #tpu.dot_dimension_numbers<[1], [0], [0], [1], [0, 0, 1, 1], [], []>} : vector<32x32xf32>, vector<32x32xf32>, vector<32x32xf32> -> vector<32x32xf32>
    %104 = arith.addf %102, %103 : vector<32x32xf32>
    %105 = arith.negf %104 : vector<32x32xf32>
    %106 = math.exp %105 : vector<32x32xf32>
    %cst_74 = arith.constant 1.000000e+00 : f32
    %107 = vector.broadcast %cst_74 : f32 to vector<32x32xf32>
    %108 = arith.addf %107, %106 : vector<32x32xf32>
    %109 = arith.divf %107, %108 : vector<32x32xf32>
    %c2_75 = arith.constant 2 : index
    %c3_76 = arith.constant 3 : index
    %c0_77 = arith.constant 0 : index
    %c0_78 = arith.constant 0 : index
    %110 = vector.load %arg1[%c2_75, %c3_76, %c0_77, %c0_78] : memref<8x4x32x32xf32, #tpu.memory_space<vmem>>, vector<1x1x32x32xf32>
    %111 = vector.shape_cast %110 : vector<1x1x32x32xf32> to vector<32x32xf32>
    %cst_79 = arith.constant dense<0.000000e+00> : vector<32x32xf32>
    %112 = tpu.matmul %86, %12, %cst_79 {dimension_numbers = #tpu.dot_dimension_numbers<[1], [0], [0], [1], [0, 0, 1, 1], [], []>} : vector<32x32xf32>, vector<32x32xf32>, vector<32x32xf32> -> vector<32x32xf32>
    %113 = arith.addf %111, %112 : vector<32x32xf32>
    %114 = arith.negf %113 : vector<32x32xf32>
    %115 = math.exp %114 : vector<32x32xf32>
    %cst_80 = arith.constant 1.000000e+00 : f32
    %116 = vector.broadcast %cst_80 : f32 to vector<32x32xf32>
    %117 = arith.addf %116, %115 : vector<32x32xf32>
    %118 = arith.divf %116, %117 : vector<32x32xf32>
    %119 = arith.mulf %91, %100 : vector<32x32xf32>
    %120 = arith.mulf %84, %109 : vector<32x32xf32>
    %121 = arith.addf %119, %120 : vector<32x32xf32>
    %122 = math.tanh %121 : vector<32x32xf32>
    %123 = arith.mulf %122, %118 : vector<32x32xf32>
    %c3_81 = arith.constant 3 : index
    %c0_82 = arith.constant 0 : index
    %c0_83 = arith.constant 0 : index
    %c0_84 = arith.constant 0 : index
    %124 = vector.load %arg1[%c3_81, %c0_82, %c0_83, %c0_84] : memref<8x4x32x32xf32, #tpu.memory_space<vmem>>, vector<1x1x32x32xf32>
    %125 = vector.shape_cast %124 : vector<1x1x32x32xf32> to vector<32x32xf32>
    %cst_85 = arith.constant dense<0.000000e+00> : vector<32x32xf32>
    %126 = tpu.matmul %123, %6, %cst_85 {dimension_numbers = #tpu.dot_dimension_numbers<[1], [0], [0], [1], [0, 0, 1, 1], [], []>} : vector<32x32xf32>, vector<32x32xf32>, vector<32x32xf32> -> vector<32x32xf32>
    %127 = arith.addf %125, %126 : vector<32x32xf32>
    %128 = math.tanh %127 : vector<32x32xf32>
    %c3_86 = arith.constant 3 : index
    %c1_87 = arith.constant 1 : index
    %c0_88 = arith.constant 0 : index
    %c0_89 = arith.constant 0 : index
    %129 = vector.load %arg1[%c3_86, %c1_87, %c0_88, %c0_89] : memref<8x4x32x32xf32, #tpu.memory_space<vmem>>, vector<1x1x32x32xf32>
    %130 = vector.shape_cast %129 : vector<1x1x32x32xf32> to vector<32x32xf32>
    %cst_90 = arith.constant dense<0.000000e+00> : vector<32x32xf32>
    %131 = tpu.matmul %123, %8, %cst_90 {dimension_numbers = #tpu.dot_dimension_numbers<[1], [0], [0], [1], [0, 0, 1, 1], [], []>} : vector<32x32xf32>, vector<32x32xf32>, vector<32x32xf32> -> vector<32x32xf32>
    %132 = arith.addf %130, %131 : vector<32x32xf32>
    %133 = arith.negf %132 : vector<32x32xf32>
    %134 = math.exp %133 : vector<32x32xf32>
    %cst_91 = arith.constant 1.000000e+00 : f32
    %135 = vector.broadcast %cst_91 : f32 to vector<32x32xf32>
    %136 = arith.addf %135, %134 : vector<32x32xf32>
    %137 = arith.divf %135, %136 : vector<32x32xf32>
    %c3_92 = arith.constant 3 : index
    %c2_93 = arith.constant 2 : index
    %c0_94 = arith.constant 0 : index
    %c0_95 = arith.constant 0 : index
    %138 = vector.load %arg1[%c3_92, %c2_93, %c0_94, %c0_95] : memref<8x4x32x32xf32, #tpu.memory_space<vmem>>, vector<1x1x32x32xf32>
    %139 = vector.shape_cast %138 : vector<1x1x32x32xf32> to vector<32x32xf32>
    %cst_96 = arith.constant dense<0.000000e+00> : vector<32x32xf32>
    %140 = tpu.matmul %123, %10, %cst_96 {dimension_numbers = #tpu.dot_dimension_numbers<[1], [0], [0], [1], [0, 0, 1, 1], [], []>} : vector<32x32xf32>, vector<32x32xf32>, vector<32x32xf32> -> vector<32x32xf32>
    %141 = arith.addf %139, %140 : vector<32x32xf32>
    %142 = arith.negf %141 : vector<32x32xf32>
    %143 = math.exp %142 : vector<32x32xf32>
    %cst_97 = arith.constant 1.000000e+00 : f32
    %144 = vector.broadcast %cst_97 : f32 to vector<32x32xf32>
    %145 = arith.addf %144, %143 : vector<32x32xf32>
    %146 = arith.divf %144, %145 : vector<32x32xf32>
    %c3_98 = arith.constant 3 : index
    %c3_99 = arith.constant 3 : index
    %c0_100 = arith.constant 0 : index
    %c0_101 = arith.constant 0 : index
    %147 = vector.load %arg1[%c3_98, %c3_99, %c0_100, %c0_101] : memref<8x4x32x32xf32, #tpu.memory_space<vmem>>, vector<1x1x32x32xf32>
    %148 = vector.shape_cast %147 : vector<1x1x32x32xf32> to vector<32x32xf32>
    %cst_102 = arith.constant dense<0.000000e+00> : vector<32x32xf32>
    %149 = tpu.matmul %123, %12, %cst_102 {dimension_numbers = #tpu.dot_dimension_numbers<[1], [0], [0], [1], [0, 0, 1, 1], [], []>} : vector<32x32xf32>, vector<32x32xf32>, vector<32x32xf32> -> vector<32x32xf32>
    %150 = arith.addf %148, %149 : vector<32x32xf32>
    %151 = arith.negf %150 : vector<32x32xf32>
    %152 = math.exp %151 : vector<32x32xf32>
    %cst_103 = arith.constant 1.000000e+00 : f32
    %153 = vector.broadcast %cst_103 : f32 to vector<32x32xf32>
    %154 = arith.addf %153, %152 : vector<32x32xf32>
    %155 = arith.divf %153, %154 : vector<32x32xf32>
    %156 = arith.mulf %128, %137 : vector<32x32xf32>
    %157 = arith.mulf %121, %146 : vector<32x32xf32>
    %158 = arith.addf %156, %157 : vector<32x32xf32>
    %159 = math.tanh %158 : vector<32x32xf32>
    %160 = arith.mulf %159, %155 : vector<32x32xf32>
    %c4 = arith.constant 4 : index
    %c0_104 = arith.constant 0 : index
    %c0_105 = arith.constant 0 : index
    %c0_106 = arith.constant 0 : index
    %161 = vector.load %arg1[%c4, %c0_104, %c0_105, %c0_106] : memref<8x4x32x32xf32, #tpu.memory_space<vmem>>, vector<1x1x32x32xf32>
    %162 = vector.shape_cast %161 : vector<1x1x32x32xf32> to vector<32x32xf32>
    %cst_107 = arith.constant dense<0.000000e+00> : vector<32x32xf32>
    %163 = tpu.matmul %160, %6, %cst_107 {dimension_numbers = #tpu.dot_dimension_numbers<[1], [0], [0], [1], [0, 0, 1, 1], [], []>} : vector<32x32xf32>, vector<32x32xf32>, vector<32x32xf32> -> vector<32x32xf32>
    %164 = arith.addf %162, %163 : vector<32x32xf32>
    %165 = math.tanh %164 : vector<32x32xf32>
    %c4_108 = arith.constant 4 : index
    %c1_109 = arith.constant 1 : index
    %c0_110 = arith.constant 0 : index
    %c0_111 = arith.constant 0 : index
    %166 = vector.load %arg1[%c4_108, %c1_109, %c0_110, %c0_111] : memref<8x4x32x32xf32, #tpu.memory_space<vmem>>, vector<1x1x32x32xf32>
    %167 = vector.shape_cast %166 : vector<1x1x32x32xf32> to vector<32x32xf32>
    %cst_112 = arith.constant dense<0.000000e+00> : vector<32x32xf32>
    %168 = tpu.matmul %160, %8, %cst_112 {dimension_numbers = #tpu.dot_dimension_numbers<[1], [0], [0], [1], [0, 0, 1, 1], [], []>} : vector<32x32xf32>, vector<32x32xf32>, vector<32x32xf32> -> vector<32x32xf32>
    %169 = arith.addf %167, %168 : vector<32x32xf32>
    %170 = arith.negf %169 : vector<32x32xf32>
    %171 = math.exp %170 : vector<32x32xf32>
    %cst_113 = arith.constant 1.000000e+00 : f32
    %172 = vector.broadcast %cst_113 : f32 to vector<32x32xf32>
    %173 = arith.addf %172, %171 : vector<32x32xf32>
    %174 = arith.divf %172, %173 : vector<32x32xf32>
    %c4_114 = arith.constant 4 : index
    %c2_115 = arith.constant 2 : index
    %c0_116 = arith.constant 0 : index
    %c0_117 = arith.constant 0 : index
    %175 = vector.load %arg1[%c4_114, %c2_115, %c0_116, %c0_117] : memref<8x4x32x32xf32, #tpu.memory_space<vmem>>, vector<1x1x32x32xf32>
    %176 = vector.shape_cast %175 : vector<1x1x32x32xf32> to vector<32x32xf32>
    %cst_118 = arith.constant dense<0.000000e+00> : vector<32x32xf32>
    %177 = tpu.matmul %160, %10, %cst_118 {dimension_numbers = #tpu.dot_dimension_numbers<[1], [0], [0], [1], [0, 0, 1, 1], [], []>} : vector<32x32xf32>, vector<32x32xf32>, vector<32x32xf32> -> vector<32x32xf32>
    %178 = arith.addf %176, %177 : vector<32x32xf32>
    %179 = arith.negf %178 : vector<32x32xf32>
    %180 = math.exp %179 : vector<32x32xf32>
    %cst_119 = arith.constant 1.000000e+00 : f32
    %181 = vector.broadcast %cst_119 : f32 to vector<32x32xf32>
    %182 = arith.addf %181, %180 : vector<32x32xf32>
    %183 = arith.divf %181, %182 : vector<32x32xf32>
    %c4_120 = arith.constant 4 : index
    %c3_121 = arith.constant 3 : index
    %c0_122 = arith.constant 0 : index
    %c0_123 = arith.constant 0 : index
    %184 = vector.load %arg1[%c4_120, %c3_121, %c0_122, %c0_123] : memref<8x4x32x32xf32, #tpu.memory_space<vmem>>, vector<1x1x32x32xf32>
    %185 = vector.shape_cast %184 : vector<1x1x32x32xf32> to vector<32x32xf32>
    %cst_124 = arith.constant dense<0.000000e+00> : vector<32x32xf32>
    %186 = tpu.matmul %160, %12, %cst_124 {dimension_numbers = #tpu.dot_dimension_numbers<[1], [0], [0], [1], [0, 0, 1, 1], [], []>} : vector<32x32xf32>, vector<32x32xf32>, vector<32x32xf32> -> vector<32x32xf32>
    %187 = arith.addf %185, %186 : vector<32x32xf32>
    %188 = arith.negf %187 : vector<32x32xf32>
    %189 = math.exp %188 : vector<32x32xf32>
    %cst_125 = arith.constant 1.000000e+00 : f32
    %190 = vector.broadcast %cst_125 : f32 to vector<32x32xf32>
    %191 = arith.addf %190, %189 : vector<32x32xf32>
    %192 = arith.divf %190, %191 : vector<32x32xf32>
    %193 = arith.mulf %165, %174 : vector<32x32xf32>
    %194 = arith.mulf %158, %183 : vector<32x32xf32>
    %195 = arith.addf %193, %194 : vector<32x32xf32>
    %196 = math.tanh %195 : vector<32x32xf32>
    %197 = arith.mulf %196, %192 : vector<32x32xf32>
    %c5 = arith.constant 5 : index
    %c0_126 = arith.constant 0 : index
    %c0_127 = arith.constant 0 : index
    %c0_128 = arith.constant 0 : index
    %198 = vector.load %arg1[%c5, %c0_126, %c0_127, %c0_128] : memref<8x4x32x32xf32, #tpu.memory_space<vmem>>, vector<1x1x32x32xf32>
    %199 = vector.shape_cast %198 : vector<1x1x32x32xf32> to vector<32x32xf32>
    %cst_129 = arith.constant dense<0.000000e+00> : vector<32x32xf32>
    %200 = tpu.matmul %197, %6, %cst_129 {dimension_numbers = #tpu.dot_dimension_numbers<[1], [0], [0], [1], [0, 0, 1, 1], [], []>} : vector<32x32xf32>, vector<32x32xf32>, vector<32x32xf32> -> vector<32x32xf32>
    %201 = arith.addf %199, %200 : vector<32x32xf32>
    %202 = math.tanh %201 : vector<32x32xf32>
    %c5_130 = arith.constant 5 : index
    %c1_131 = arith.constant 1 : index
    %c0_132 = arith.constant 0 : index
    %c0_133 = arith.constant 0 : index
    %203 = vector.load %arg1[%c5_130, %c1_131, %c0_132, %c0_133] : memref<8x4x32x32xf32, #tpu.memory_space<vmem>>, vector<1x1x32x32xf32>
    %204 = vector.shape_cast %203 : vector<1x1x32x32xf32> to vector<32x32xf32>
    %cst_134 = arith.constant dense<0.000000e+00> : vector<32x32xf32>
    %205 = tpu.matmul %197, %8, %cst_134 {dimension_numbers = #tpu.dot_dimension_numbers<[1], [0], [0], [1], [0, 0, 1, 1], [], []>} : vector<32x32xf32>, vector<32x32xf32>, vector<32x32xf32> -> vector<32x32xf32>
    %206 = arith.addf %204, %205 : vector<32x32xf32>
    %207 = arith.negf %206 : vector<32x32xf32>
    %208 = math.exp %207 : vector<32x32xf32>
    %cst_135 = arith.constant 1.000000e+00 : f32
    %209 = vector.broadcast %cst_135 : f32 to vector<32x32xf32>
    %210 = arith.addf %209, %208 : vector<32x32xf32>
    %211 = arith.divf %209, %210 : vector<32x32xf32>
    %c5_136 = arith.constant 5 : index
    %c2_137 = arith.constant 2 : index
    %c0_138 = arith.constant 0 : index
    %c0_139 = arith.constant 0 : index
    %212 = vector.load %arg1[%c5_136, %c2_137, %c0_138, %c0_139] : memref<8x4x32x32xf32, #tpu.memory_space<vmem>>, vector<1x1x32x32xf32>
    %213 = vector.shape_cast %212 : vector<1x1x32x32xf32> to vector<32x32xf32>
    %cst_140 = arith.constant dense<0.000000e+00> : vector<32x32xf32>
    %214 = tpu.matmul %197, %10, %cst_140 {dimension_numbers = #tpu.dot_dimension_numbers<[1], [0], [0], [1], [0, 0, 1, 1], [], []>} : vector<32x32xf32>, vector<32x32xf32>, vector<32x32xf32> -> vector<32x32xf32>
    %215 = arith.addf %213, %214 : vector<32x32xf32>
    %216 = arith.negf %215 : vector<32x32xf32>
    %217 = math.exp %216 : vector<32x32xf32>
    %cst_141 = arith.constant 1.000000e+00 : f32
    %218 = vector.broadcast %cst_141 : f32 to vector<32x32xf32>
    %219 = arith.addf %218, %217 : vector<32x32xf32>
    %220 = arith.divf %218, %219 : vector<32x32xf32>
    %c5_142 = arith.constant 5 : index
    %c3_143 = arith.constant 3 : index
    %c0_144 = arith.constant 0 : index
    %c0_145 = arith.constant 0 : index
    %221 = vector.load %arg1[%c5_142, %c3_143, %c0_144, %c0_145] : memref<8x4x32x32xf32, #tpu.memory_space<vmem>>, vector<1x1x32x32xf32>
    %222 = vector.shape_cast %221 : vector<1x1x32x32xf32> to vector<32x32xf32>
    %cst_146 = arith.constant dense<0.000000e+00> : vector<32x32xf32>
    %223 = tpu.matmul %197, %12, %cst_146 {dimension_numbers = #tpu.dot_dimension_numbers<[1], [0], [0], [1], [0, 0, 1, 1], [], []>} : vector<32x32xf32>, vector<32x32xf32>, vector<32x32xf32> -> vector<32x32xf32>
    %224 = arith.addf %222, %223 : vector<32x32xf32>
    %225 = arith.negf %224 : vector<32x32xf32>
    %226 = math.exp %225 : vector<32x32xf32>
    %cst_147 = arith.constant 1.000000e+00 : f32
    %227 = vector.broadcast %cst_147 : f32 to vector<32x32xf32>
    %228 = arith.addf %227, %226 : vector<32x32xf32>
    %229 = arith.divf %227, %228 : vector<32x32xf32>
    %230 = arith.mulf %202, %211 : vector<32x32xf32>
    %231 = arith.mulf %195, %220 : vector<32x32xf32>
    %232 = arith.addf %230, %231 : vector<32x32xf32>
    %233 = math.tanh %232 : vector<32x32xf32>
    %234 = arith.mulf %233, %229 : vector<32x32xf32>
    %c6 = arith.constant 6 : index
    %c0_148 = arith.constant 0 : index
    %c0_149 = arith.constant 0 : index
    %c0_150 = arith.constant 0 : index
    %235 = vector.load %arg1[%c6, %c0_148, %c0_149, %c0_150] : memref<8x4x32x32xf32, #tpu.memory_space<vmem>>, vector<1x1x32x32xf32>
    %236 = vector.shape_cast %235 : vector<1x1x32x32xf32> to vector<32x32xf32>
    %cst_151 = arith.constant dense<0.000000e+00> : vector<32x32xf32>
    %237 = tpu.matmul %234, %6, %cst_151 {dimension_numbers = #tpu.dot_dimension_numbers<[1], [0], [0], [1], [0, 0, 1, 1], [], []>} : vector<32x32xf32>, vector<32x32xf32>, vector<32x32xf32> -> vector<32x32xf32>
    %238 = arith.addf %236, %237 : vector<32x32xf32>
    %239 = math.tanh %238 : vector<32x32xf32>
    %c6_152 = arith.constant 6 : index
    %c1_153 = arith.constant 1 : index
    %c0_154 = arith.constant 0 : index
    %c0_155 = arith.constant 0 : index
    %240 = vector.load %arg1[%c6_152, %c1_153, %c0_154, %c0_155] : memref<8x4x32x32xf32, #tpu.memory_space<vmem>>, vector<1x1x32x32xf32>
    %241 = vector.shape_cast %240 : vector<1x1x32x32xf32> to vector<32x32xf32>
    %cst_156 = arith.constant dense<0.000000e+00> : vector<32x32xf32>
    %242 = tpu.matmul %234, %8, %cst_156 {dimension_numbers = #tpu.dot_dimension_numbers<[1], [0], [0], [1], [0, 0, 1, 1], [], []>} : vector<32x32xf32>, vector<32x32xf32>, vector<32x32xf32> -> vector<32x32xf32>
    %243 = arith.addf %241, %242 : vector<32x32xf32>
    %244 = arith.negf %243 : vector<32x32xf32>
    %245 = math.exp %244 : vector<32x32xf32>
    %cst_157 = arith.constant 1.000000e+00 : f32
    %246 = vector.broadcast %cst_157 : f32 to vector<32x32xf32>
    %247 = arith.addf %246, %245 : vector<32x32xf32>
    %248 = arith.divf %246, %247 : vector<32x32xf32>
    %c6_158 = arith.constant 6 : index
    %c2_159 = arith.constant 2 : index
    %c0_160 = arith.constant 0 : index
    %c0_161 = arith.constant 0 : index
    %249 = vector.load %arg1[%c6_158, %c2_159, %c0_160, %c0_161] : memref<8x4x32x32xf32, #tpu.memory_space<vmem>>, vector<1x1x32x32xf32>
    %250 = vector.shape_cast %249 : vector<1x1x32x32xf32> to vector<32x32xf32>
    %cst_162 = arith.constant dense<0.000000e+00> : vector<32x32xf32>
    %251 = tpu.matmul %234, %10, %cst_162 {dimension_numbers = #tpu.dot_dimension_numbers<[1], [0], [0], [1], [0, 0, 1, 1], [], []>} : vector<32x32xf32>, vector<32x32xf32>, vector<32x32xf32> -> vector<32x32xf32>
    %252 = arith.addf %250, %251 : vector<32x32xf32>
    %253 = arith.negf %252 : vector<32x32xf32>
    %254 = math.exp %253 : vector<32x32xf32>
    %cst_163 = arith.constant 1.000000e+00 : f32
    %255 = vector.broadcast %cst_163 : f32 to vector<32x32xf32>
    %256 = arith.addf %255, %254 : vector<32x32xf32>
    %257 = arith.divf %255, %256 : vector<32x32xf32>
    %c6_164 = arith.constant 6 : index
    %c3_165 = arith.constant 3 : index
    %c0_166 = arith.constant 0 : index
    %c0_167 = arith.constant 0 : index
    %258 = vector.load %arg1[%c6_164, %c3_165, %c0_166, %c0_167] : memref<8x4x32x32xf32, #tpu.memory_space<vmem>>, vector<1x1x32x32xf32>
    %259 = vector.shape_cast %258 : vector<1x1x32x32xf32> to vector<32x32xf32>
    %cst_168 = arith.constant dense<0.000000e+00> : vector<32x32xf32>
    %260 = tpu.matmul %234, %12, %cst_168 {dimension_numbers = #tpu.dot_dimension_numbers<[1], [0], [0], [1], [0, 0, 1, 1], [], []>} : vector<32x32xf32>, vector<32x32xf32>, vector<32x32xf32> -> vector<32x32xf32>
    %261 = arith.addf %259, %260 : vector<32x32xf32>
    %262 = arith.negf %261 : vector<32x32xf32>
    %263 = math.exp %262 : vector<32x32xf32>
    %cst_169 = arith.constant 1.000000e+00 : f32
    %264 = vector.broadcast %cst_169 : f32 to vector<32x32xf32>
    %265 = arith.addf %264, %263 : vector<32x32xf32>
    %266 = arith.divf %264, %265 : vector<32x32xf32>
    %267 = arith.mulf %239, %248 : vector<32x32xf32>
    %268 = arith.mulf %232, %257 : vector<32x32xf32>
    %269 = arith.addf %267, %268 : vector<32x32xf32>
    %270 = math.tanh %269 : vector<32x32xf32>
    %271 = arith.mulf %270, %266 : vector<32x32xf32>
    %c7 = arith.constant 7 : index
    %c0_170 = arith.constant 0 : index
    %c0_171 = arith.constant 0 : index
    %c0_172 = arith.constant 0 : index
    %272 = vector.load %arg1[%c7, %c0_170, %c0_171, %c0_172] : memref<8x4x32x32xf32, #tpu.memory_space<vmem>>, vector<1x1x32x32xf32>
    %273 = vector.shape_cast %272 : vector<1x1x32x32xf32> to vector<32x32xf32>
    %cst_173 = arith.constant dense<0.000000e+00> : vector<32x32xf32>
    %274 = tpu.matmul %271, %6, %cst_173 {dimension_numbers = #tpu.dot_dimension_numbers<[1], [0], [0], [1], [0, 0, 1, 1], [], []>} : vector<32x32xf32>, vector<32x32xf32>, vector<32x32xf32> -> vector<32x32xf32>
    %275 = arith.addf %273, %274 : vector<32x32xf32>
    %276 = math.tanh %275 : vector<32x32xf32>
    %c7_174 = arith.constant 7 : index
    %c1_175 = arith.constant 1 : index
    %c0_176 = arith.constant 0 : index
    %c0_177 = arith.constant 0 : index
    %277 = vector.load %arg1[%c7_174, %c1_175, %c0_176, %c0_177] : memref<8x4x32x32xf32, #tpu.memory_space<vmem>>, vector<1x1x32x32xf32>
    %278 = vector.shape_cast %277 : vector<1x1x32x32xf32> to vector<32x32xf32>
    %cst_178 = arith.constant dense<0.000000e+00> : vector<32x32xf32>
    %279 = tpu.matmul %271, %8, %cst_178 {dimension_numbers = #tpu.dot_dimension_numbers<[1], [0], [0], [1], [0, 0, 1, 1], [], []>} : vector<32x32xf32>, vector<32x32xf32>, vector<32x32xf32> -> vector<32x32xf32>
    %280 = arith.addf %278, %279 : vector<32x32xf32>
    %281 = arith.negf %280 : vector<32x32xf32>
    %282 = math.exp %281 : vector<32x32xf32>
    %cst_179 = arith.constant 1.000000e+00 : f32
    %283 = vector.broadcast %cst_179 : f32 to vector<32x32xf32>
    %284 = arith.addf %283, %282 : vector<32x32xf32>
    %285 = arith.divf %283, %284 : vector<32x32xf32>
    %c7_180 = arith.constant 7 : index
    %c2_181 = arith.constant 2 : index
    %c0_182 = arith.constant 0 : index
    %c0_183 = arith.constant 0 : index
    %286 = vector.load %arg1[%c7_180, %c2_181, %c0_182, %c0_183] : memref<8x4x32x32xf32, #tpu.memory_space<vmem>>, vector<1x1x32x32xf32>
    %287 = vector.shape_cast %286 : vector<1x1x32x32xf32> to vector<32x32xf32>
    %cst_184 = arith.constant dense<0.000000e+00> : vector<32x32xf32>
    %288 = tpu.matmul %271, %10, %cst_184 {dimension_numbers = #tpu.dot_dimension_numbers<[1], [0], [0], [1], [0, 0, 1, 1], [], []>} : vector<32x32xf32>, vector<32x32xf32>, vector<32x32xf32> -> vector<32x32xf32>
    %289 = arith.addf %287, %288 : vector<32x32xf32>
    %290 = arith.negf %289 : vector<32x32xf32>
    %291 = math.exp %290 : vector<32x32xf32>
    %cst_185 = arith.constant 1.000000e+00 : f32
    %292 = vector.broadcast %cst_185 : f32 to vector<32x32xf32>
    %293 = arith.addf %292, %291 : vector<32x32xf32>
    %294 = arith.divf %292, %293 : vector<32x32xf32>
    %c7_186 = arith.constant 7 : index
    %c3_187 = arith.constant 3 : index
    %c0_188 = arith.constant 0 : index
    %c0_189 = arith.constant 0 : index
    %295 = vector.load %arg1[%c7_186, %c3_187, %c0_188, %c0_189] : memref<8x4x32x32xf32, #tpu.memory_space<vmem>>, vector<1x1x32x32xf32>
    %296 = vector.shape_cast %295 : vector<1x1x32x32xf32> to vector<32x32xf32>
    %cst_190 = arith.constant dense<0.000000e+00> : vector<32x32xf32>
    %297 = tpu.matmul %271, %12, %cst_190 {dimension_numbers = #tpu.dot_dimension_numbers<[1], [0], [0], [1], [0, 0, 1, 1], [], []>} : vector<32x32xf32>, vector<32x32xf32>, vector<32x32xf32> -> vector<32x32xf32>
    %298 = arith.addf %296, %297 : vector<32x32xf32>
    %299 = arith.negf %298 : vector<32x32xf32>
    %300 = math.exp %299 : vector<32x32xf32>
    %cst_191 = arith.constant 1.000000e+00 : f32
    %301 = vector.broadcast %cst_191 : f32 to vector<32x32xf32>
    %302 = arith.addf %301, %300 : vector<32x32xf32>
    %303 = arith.divf %301, %302 : vector<32x32xf32>
    %304 = arith.mulf %276, %285 : vector<32x32xf32>
    %305 = arith.mulf %269, %294 : vector<32x32xf32>
    %306 = arith.addf %304, %305 : vector<32x32xf32>
    %307 = math.tanh %306 : vector<32x32xf32>
    %308 = arith.mulf %307, %303 : vector<32x32xf32>
    %c0_192 = arith.constant 0 : index
    %c0_193 = arith.constant 0 : index
    %309 = vector.load %arg4[%c0_192, %c0_193] : memref<32x32xf32, #tpu.memory_space<vmem>>, vector<32x32xf32>
    tpu.vector_store %arg4[%c0_192, %c0_193], %308 {strides = array<i32>} : memref<32x32xf32, #tpu.memory_space<vmem>>, vector<32x32xf32>,
    %c0_194 = arith.constant 0 : index
    %c0_195 = arith.constant 0 : index
    %310 = vector.load %arg5[%c0_194, %c0_195] : memref<32x32xf32, #tpu.memory_space<vmem>>, vector<32x32xf32>
    tpu.vector_store %arg5[%c0_194, %c0_195], %306 {strides = array<i32>} : memref<32x32xf32, #tpu.memory_space<vmem>>, vector<32x32xf32>,
    %c0_196 = arith.constant 0 : index
    %c0_197 = arith.constant 0 : index
    %311 = vector.load %arg3[%c0_196, %c0_197] : memref<32x32xf32, #tpu.memory_space<vmem>>, vector<32x32xf32>
    tpu.vector_store %arg3[%c0_196, %c0_197], %308 {strides = array<i32>} : memref<32x32xf32, #tpu.memory_space<vmem>>, vector<32x32xf32>,
    return
  }
  func.func @transform_0(%arg0: i32) -> (i32, i32, i32, i32) {
    %c0_i32 = arith.constant 0 : i32
    %c0_i32_0 = arith.constant 0 : i32
    %c0_i32_1 = arith.constant 0 : i32
    %c0_i32_2 = arith.constant 0 : i32
    return %arg0, %c0_i32, %c0_i32_0, %c0_i32_1 : i32, i32, i32, i32
  }
  func.func @transform_1(%arg0: i32) -> (i32, i32, i32) {
    %c0_i32 = arith.constant 0 : i32
    %c0_i32_0 = arith.constant 0 : i32
    %c0_i32_1 = arith.constant 0 : i32
    %c0_i32_2 = arith.constant 0 : i32
    return %c0_i32, %c0_i32_0, %c0_i32_1 : i32, i32, i32
  }
  func.func @transform_2(%arg0: i32) -> (i32, i32) {
    %c0_i32 = arith.constant 0 : i32
    %c0_i32_0 = arith.constant 0 : i32
    %c0_i32_1 = arith.constant 0 : i32
    return %c0_i32, %c0_i32_0 : i32, i32
  }
}

</mosaic_0001>

<llo_original>
// kernel: tpu_custom_call.1
$region0: #{tpu_custom_call.1}
  #allocation0 [shape = 'u32[]', space=smem, size = 0x4, offset = 0x4, fixed_abs, tag = 'smem constant byte address 0x4 - core index']
  #allocation1 [shape = 'u32[144,128]{1,0:T(1,128)}', space=vmem, size = 0x12000, scoped, tag = 'internal scratch']
  #allocation2 [shape = 'f32[32,32]{1,0:T(8,128)}', space=vmem, size = 0x4000, scoped, tag = 'scratch operand']
  #allocation3 [shape = 'f32[32,32]{1,0:T(8,128)}', space=vmem, size = 0x4000, scoped, tag = 'scratch operand']
  %s0 = inlined_call_operand.hbm [shape: f32[8,4,32,32], index: 0, kind: input, shape index: {}]
  %s1 = inlined_call_operand.hbm [shape: f32[4,32,32], index: 1, kind: input, shape index: {}]
  %s2 = inlined_call_operand.hbm [shape: f32[32,32], index: 2, kind: output, shape index: {}]
  %s3 = sld [smem:[#allocation0]]
  $region30: #{tpu_custom_call.1} parent=0
    _
  %s5 = ssub.s32 1, %s3
  %s6 = scalar_select 0, %s5, %s3
  $region1: #{tpu_custom_call.1} parent=0
    #allocation4 [shape = 'u8[524288]{0}', space=vmem, size = 0x80000, scoped, tag = 'input window, operand 0, single buffered']
    #allocation5 [shape = 's32[1]{0}', space=sflag, size = 0x4, scoped, tag = 'scoped memory for tpu_custom_call.1']
    #allocation6 [shape = 's32[1]{0}', space=sflag, size = 0x4, scoped, tag = 'scoped memory for tpu_custom_call.1']
    #allocation7 [shape = 'u8[65536]{0}', space=vmem, size = 0x10000, scoped, tag = 'input window, operand 1, single buffered']
    #allocation8 [shape = 's32[1]{0}', space=sflag, size = 0x4, scoped, tag = 'scoped memory for tpu_custom_call.1']
    #allocation9 [shape = 'u8[16384]{0}', space=vmem, size = 0x4000, scoped, tag = 'output window, operand 0, single buffered']
    %7 = vsyncpa [#allocation5], 0
    %8 = vsyncpa [#allocation8], 0
    %9 = vsyncpa [#allocation6], 0
    // Predicated region
    $region2: #{tpu_custom_call.1} parent=1 // pred_check
      _
    $region3: #{tpu_custom_call.1} parent=1 // pred_check_branch
      %11 = sbr.rel (0) target = $region5
    $region4: #{tpu_custom_call.1} parent=1 // pred_region
      %s13 = ssub.s32 16384, 16384
      %14 = vsyncadd [#allocation5], %s13
      %s15 = sshll.u32 [#allocation4], 4
      %s16 = int_to_ptr.vmem [resolvable:$true] %s15
      %21 = dma.hbm_to_vmem [thread:$0]  %s0, 16384, %s16, [#allocation5], 128, 128, 8
    $region5: #{tpu_custom_call.1} parent=1 // pred_fallthru
      _
    // Predicated region
    $region6: #{tpu_custom_call.1} parent=1 // pred_check
      _
    $region7: #{tpu_custom_call.1} parent=1 // pred_check_branch
      %23 = sbr.rel (0) target = $region9
    $region8: #{tpu_custom_call.1} parent=1 // pred_region
      %s25 = ssub.s32 2048, 2048
      %26 = vsyncadd [#allocation8], %s25
      %s27 = sshll.u32 [#allocation7], 4
      %s28 = int_to_ptr.vmem [resolvable:$true] %s27
      %33 = dma.hbm_to_vmem [thread:$0]  %s1, 2048, %s28, [#allocation8], 128, 128, 8
    $region9: #{tpu_custom_call.1} parent=1 // pred_fallthru
      _
    // Predicated region
    $region10: #{tpu_custom_call.1} parent=1 // pred_check
      _
    $region11: #{tpu_custom_call.1} parent=1 // pred_check_branch
      %35 = sbr.rel (0) target = $region13
    $region12: #{tpu_custom_call.1} parent=1 // pred_region
      %36 = dma.done [#allocation5], 16384
    $region13: #{tpu_custom_call.1} parent=1 // pred_fallthru
      _
    // Predicated region
    $region14: #{tpu_custom_call.1} parent=1 // pred_check
      _
    $region15: #{tpu_custom_call.1} parent=1 // pred_check_branch
      %38 = sbr.rel (0) target = $region17
    $region16: #{tpu_custom_call.1} parent=1 // pred_region
      %39 = dma.done [#allocation8], 2048
    $region17: #{tpu_custom_call.1} parent=1 // pred_fallthru
      _
    %p40 = scmp.eq.s32.totalorder 0, 0
    // Predicated region
    $region18: #{tpu_custom_call.1} parent=1 // pred_check
      %p41 = pneg %p40
    $region19: #{tpu_custom_call.1} parent=1 // pred_check_branch
      %43 = sbr.rel (%p41) target = $region21
    $region20: #{tpu_custom_call.1} parent=1 // pred_region
      %vm44 = vcmask 261120
      %45 = vst.msk [vmem:[#allocation2] sm:$0xff] %vm44, 0.0
      %46 = vst.msk [vmem:[#allocation2 + $0x8] sm:$0xff] %vm44, 0.0
      %47 = vst.msk [vmem:[#allocation2 + $0x10] sm:$0xff] %vm44, 0.0
      %48 = vst.msk [vmem:[#allocation2 + $0x18] sm:$0xff] %vm44, 0.0
      %49 = vst.msk [vmem:[#allocation3] sm:$0xff] %vm44, 0.0
      %50 = vst.msk [vmem:[#allocation3 + $0x8] sm:$0xff] %vm44, 0.0
      %51 = vst.msk [vmem:[#allocation3 + $0x10] sm:$0xff] %vm44, 0.0
      %52 = vst.msk [vmem:[#allocation3 + $0x18] sm:$0xff] %vm44, 0.0
    $region21: #{tpu_custom_call.1} parent=1 // pred_fallthru
      _
    %v53 = vld [vmem:[#allocation2] sm:$0xff]
    %v54 = vld [vmem:[#allocation2 + $0x8] sm:$0xff]
    %v55 = vld [vmem:[#allocation2 + $0x10] sm:$0xff]
    %v56 = vld [vmem:[#allocation2 + $0x18] sm:$0xff]
    %v57 = vld [vmem:[#allocation3] sm:$0xff]
    %v58 = vld [vmem:[#allocation3 + $0x8] sm:$0xff]
    %v59 = vld [vmem:[#allocation3 + $0x10] sm:$0xff]
    %v60 = vld [vmem:[#allocation3 + $0x18] sm:$0xff]
    %v61 = vld [vmem:[#allocation7] sm:$0xff]
    %v62 = vld [vmem:[#allocation7 + $0x8] sm:$0xff]
    %v63 = vld [vmem:[#allocation7 + $0x10] sm:$0xff]
    %v64 = vld [vmem:[#allocation7 + $0x18] sm:$0xff]
    %s65 = scalar_lea.vmem [#allocation7], 32
    %v66 = vld [vmem:[%s65] sm:$0xff]
    %v67 = vld [vmem:[%s65 + $0x8] sm:$0xff]
    %v68 = vld [vmem:[%s65 + $0x10] sm:$0xff]
    %v69 = vld [vmem:[%s65 + $0x18] sm:$0xff]
    %s70 = scalar_lea.vmem [#allocation7], 64
    %v71 = vld [vmem:[%s70] sm:$0xff]
    %v72 = vld [vmem:[%s70 + $0x8] sm:$0xff]
    %v73 = vld [vmem:[%s70 + $0x10] sm:$0xff]
    %v74 = vld [vmem:[%s70 + $0x18] sm:$0xff]
    %s75 = scalar_lea.vmem [#allocation7], 96
    %v76 = vld [vmem:[%s75] sm:$0xff]
    %v77 = vld [vmem:[%s75 + $0x8] sm:$0xff]
    %v78 = vld [vmem:[%s75 + $0x10] sm:$0xff]
    %v79 = vld [vmem:[%s75 + $0x18] sm:$0xff]
    %v80 = vld [vmem:[#allocation4] sm:$0xff]
    %v81 = vld [vmem:[#allocation4 + $0x8] sm:$0xff]
    %v82 = vld [vmem:[#allocation4 + $0x10] sm:$0xff]
    %v83 = vld [vmem:[#allocation4 + $0x18] sm:$0xff]
    %vm84 = vcmask 261120
    %v86 = vsel %vm84, %v53, 0
    %v89 = vsel %vm84, %v54, 0
    %v92 = vsel %vm84, %v55, 0
    %v95 = vsel %vm84, %v56, 0
    %97 = vmatprep.subr.mxu0 0.0
    %98 = vmatpush1.msra.mxu0 %v61
    %99 = vmatprep.subr.mxu0 0.0
    %100 = vmatpush1.msra.mxu0 %v62
    %101 = vmatprep.subr.mxu0 0.0
    %102 = vmatpush1.msra.mxu0 %v63
    %103 = vmatprep.subr.mxu0 0.0
    %104 = vmatpush1.msra.mxu0 %v64
    %105 = vmatprep.subr.mxu0 0.0
    %106 = vmatpush1.msra.mxu0 0.0
    %107 = vmatprep.subr.mxu0 0.0
    %108 = vmatpush1.msra.mxu0 0.0
    %109 = vmatprep.subr.mxu0 0.0
    %110 = vmatpush1.msra.mxu0 0.0
    %111 = vmatprep.subr.mxu0 0.0
    %112 = vmatpush1.msra.mxu0 0.0
    %113 = vmatprep.subr.mxu0 0.0
    %114 = vmatpush1.msra.mxu0 0.0
    %115 = vmatprep.subr.mxu0 0.0
    %116 = vmatpush1.msra.mxu0 0.0
    %117 = vmatprep.subr.mxu0 0.0
    %118 = vmatpush1.msra.mxu0 0.0
    %119 = vmatprep.subr.mxu0 0.0
    %120 = vmatpush1.msra.mxu0 0.0
    %121 = vmatprep.subr.mxu0 0.0
    %122 = vmatpush1.msra.mxu0 0.0
    %123 = vmatprep.subr.mxu0 0.0
    %124 = vmatpush1.msra.mxu0 0.0
    %125 = vmatprep.subr.mxu0 0.0
    %126 = vmatpush1.msra.mxu0 0.0
    %127 = vmatprep.subr.mxu0 0.0
    %128 = vmatpush1.msra.mxu0 0.0
    %129 = vmatprep.subr.mxu0 0.0
    %130 = vmatpush1.msra.mxu0 0.0
    %131 = vmatprep.subr.mxu0 0.0
    %132 = vmatpush1.msra.mxu0 0.0
    %133 = vmatprep.subr.mxu0 0.0
    %134 = vmatpush1.msra.mxu0 0.0
    %135 = vmatprep.subr.mxu0 0.0
    %136 = vmatpush1.msra.mxu0 0.0
    %137 = vmatprep.subr.mxu0 0.0
    %138 = vmatpush1.msra.mxu0 0.0
    %139 = vmatprep.subr.mxu0 0.0
    %140 = vmatpush1.msra.mxu0 0.0
    %141 = vmatprep.subr.mxu0 0.0
    %142 = vmatpush1.msra.mxu0 0.0
    %143 = vmatprep.subr.mxu0 0.0
    %144 = vmatpush1.msra.mxu0 0.0
    %145 = vmatprep.subr.mxu0 0.0
    %146 = vmatpush1.msra.mxu0 0.0
    %147 = vmatprep.subr.mxu0 0.0
    %148 = vmatpush1.msra.mxu0 0.0
    %149 = vmatprep.subr.mxu0 0.0
    %150 = vmatpush1.msra.mxu0 0.0
    %151 = vmatprep.subr.mxu0 0.0
    %152 = vmatpush1.msra.mxu0 0.0
    %153 = vmatprep.subr.mxu0 0.0
    %154 = vmatpush1.msra.mxu0 0.0
    %155 = vmatprep.subr.mxu0 0.0
    %156 = vmatpush1.msra.mxu0 0.0
    %157 = vmatprep.subr.mxu0 0.0
    %158 = vmatpush1.msra.mxu0 0.0
    %159 = vmatprep.subr.mxu0 0.0
    %160 = vmatpush1.msra.mxu0 0.0
    %161 = vmatprep.mubr.f32.mxu0 0.0
    %162 = vmatmul.mubr.f32.gmra.mrb[0].mxu0 %v86
    %v163 = vpop.f32.mrb[0].mxu0
    %v164 = vadd.f32 0.0, %v163
    %v165 = vpop.f32.mrb[0].mxu0
    %166 = vmatprep.mubr.f32.mxu0 0.0
    %167 = vmatmul.mubr.f32.gmra.mrb[0].mxu0 %v89
    %v168 = vpop.f32.mrb[0].mxu0
    %v169 = vadd.f32 0.0, %v168
    %v170 = vpop.f32.mrb[0].mxu0
    %171 = vmatprep.mubr.f32.mxu0 0.0
    %172 = vmatmul.mubr.f32.gmra.mrb[0].mxu0 %v92
    %v173 = vpop.f32.mrb[0].mxu0
    %v174 = vadd.f32 0.0, %v173
    %v175 = vpop.f32.mrb[0].mxu0
    %176 = vmatprep.mubr.f32.mxu0 0.0
    %177 = vmatmul.mubr.f32.gmra.mrb[0].mxu0 %v95
    %v178 = vpop.f32.mrb[0].mxu0
    %v179 = vadd.f32 0.0, %v178
    %v180 = vpop.f32.mrb[0].mxu0
    %181 = vdwg.mxu0
    %v182 = vadd.f32 %v80, %v164
    %v183 = vadd.f32 %v81, %v169
    %v184 = vadd.f32 %v82, %v174
    %v185 = vadd.f32 %v83, %v179
    %v186 = vtanh.pop %v182
    %v187 = vtanh.pop %v183
    %v188 = vtanh.pop %v184
    %v189 = vtanh.pop %v185
    %s190 = scalar_lea.vmem [#allocation4], 32
    %v191 = vld [vmem:[%s190] sm:$0xff]
    %v192 = vld [vmem:[%s190 + $0x8] sm:$0xff]
    %v193 = vld [vmem:[%s190 + $0x10] sm:$0xff]
    %v194 = vld [vmem:[%s190 + $0x18] sm:$0xff]
    %195 = vmatprep.subr.mxu0 0.0
    %196 = vmatpush1.msra.mxu0 %v66
    %197 = vmatprep.subr.mxu0 0.0
    %198 = vmatpush1.msra.mxu0 %v67
    %199 = vmatprep.subr.mxu0 0.0
    %200 = vmatpush1.msra.mxu0 %v68
    %201 = vmatprep.subr.mxu0 0.0
    %202 = vmatpush1.msra.mxu0 %v69
    %203 = vmatprep.subr.mxu0 0.0
    %204 = vmatpush1.msra.mxu0 0.0
    %205 = vmatprep.subr.mxu0 0.0
    %206 = vmatpush1.msra.mxu0 0.0
    %207 = vmatprep.subr.mxu0 0.0
    %208 = vmatpush1.msra.mxu0 0.0
    %209 = vmatprep.subr.mxu0 0.0
    %210 = vmatpush1.msra.mxu0 0.0
    %211 = vmatprep.subr.mxu0 0.0
    %212 = vmatpush1.msra.mxu0 0.0
    %213 = vmatprep.subr.mxu0 0.0
    %214 = vmatpush1.msra.mxu0 0.0
    %215 = vmatprep.subr.mxu0 0.0
    %216 = vmatpush1.msra.mxu0 0.0
    %217 = vmatprep.subr.mxu0 0.0
    %218 = vmatpush1.msra.mxu0 0.0
    %219 = vmatprep.subr.mxu0 0.0
    %220 = vmatpush1.msra.mxu0 0.0
    %221 = vmatprep.subr.mxu0 0.0
    %222 = vmatpush1.msra.mxu0 0.0
    %223 = vmatprep.subr.mxu0 0.0
    %224 = vmatpush1.msra.mxu0 0.0
    %225 = vmatprep.subr.mxu0 0.0
    %226 = vmatpush1.msra.mxu0 0.0
    %227 = vmatprep.subr.mxu0 0.0
    %228 = vmatpush1.msra.mxu0 0.0
    %229 = vmatprep.subr.mxu0 0.0
    %230 = vmatpush1.msra.mxu0 0.0
    %231 = vmatprep.subr.mxu0 0.0
    %232 = vmatpush1.msra.mxu0 0.0
    %233 = vmatprep.subr.mxu0 0.0
    %234 = vmatpush1.msra.mxu0 0.0
    %235 = vmatprep.subr.mxu0 0.0
    %236 = vmatpush1.msra.mxu0 0.0
    %237 = vmatprep.subr.mxu0 0.0
    %238 = vmatpush1.msra.mxu0 0.0
    %239 = vmatprep.subr.mxu0 0.0
    %240 = vmatpush1.msra.mxu0 0.0
    %241 = vmatprep.subr.mxu0 0.0
    %242 = vmatpush1.msra.mxu0 0.0
    %243 = vmatprep.subr.mxu0 0.0
    %244 = vmatpush1.msra.mxu0 0.0
    %245 = vmatprep.subr.mxu0 0.0
    %246 = vmatpush1.msra.mxu0 0.0
    %247 = vmatprep.subr.mxu0 0.0
    %248 = vmatpush1.msra.mxu0 0.0
    %249 = vmatprep.subr.mxu0 0.0
    %250 = vmatpush1.msra.mxu0 0.0
    %251 = vmatprep.subr.mxu0 0.0
    %252 = vmatpush1.msra.mxu0 0.0
    %253 = vmatprep.subr.mxu0 0.0
    %254 = vmatpush1.msra.mxu0 0.0
    %255 = vmatprep.subr.mxu0 0.0
    %256 = vmatpush1.msra.mxu0 0.0
    %257 = vmatprep.subr.mxu0 0.0
    %258 = vmatpush1.msra.mxu0 0.0
    %259 = vmatprep.mubr.f32.mxu0 0.0
    %260 = vmatmul.mubr.f32.gmra.mrb[0].mxu0 %v86
    %v261 = vpop.f32.mrb[0].mxu0
    %v262 = vadd.f32 0.0, %v261
    %v263 = vpop.f32.mrb[0].mxu0
    %264 = vmatprep.mubr.f32.mxu0 0.0
    %265 = vmatmul.mubr.f32.gmra.mrb[0].mxu0 %v89
    %v266 = vpop.f32.mrb[0].mxu0
    %v267 = vadd.f32 0.0, %v266
    %v268 = vpop.f32.mrb[0].mxu0
    %269 = vmatprep.mubr.f32.mxu0 0.0
    %270 = vmatmul.mubr.f32.gmra.mrb[0].mxu0 %v92
    %v271 = vpop.f32.mrb[0].mxu0
    %v272 = vadd.f32 0.0, %v271
    %v273 = vpop.f32.mrb[0].mxu0
    %274 = vmatprep.mubr.f32.mxu0 0.0
    %275 = vmatmul.mubr.f32.gmra.mrb[0].mxu0 %v95
    %v276 = vpop.f32.mrb[0].mxu0
    %v277 = vadd.f32 0.0, %v276
    %v278 = vpop.f32.mrb[0].mxu0
    %279 = vdwg.mxu0
    %v280 = vadd.f32 %v191, %v262
    %v281 = vadd.f32 %v192, %v267
    %v282 = vadd.f32 %v193, %v272
    %v283 = vadd.f32 %v194, %v277
    %v284 = vxor.u32 %v280, 2147483648
    %v285 = vxor.u32 %v281, 2147483648
    %v286 = vxor.u32 %v282, 2147483648
    %v287 = vxor.u32 %v283, 2147483648
    %v288 = vmul.f32 %v284, 1.442695
    %v289 = vpow.pop %v288
    %v290 = vmul.f32 %v285, 1.442695
    %v291 = vpow.pop %v290
    %v292 = vmul.f32 %v286, 1.442695
    %v293 = vpow.pop %v292
    %v294 = vmul.f32 %v287, 1.442695
    %v295 = vpow.pop %v294
    %v296 = vadd.f32 %v289, 1.0
    %v297 = vadd.f32 %v291, 1.0
    %v298 = vadd.f32 %v293, 1.0
    %v299 = vadd.f32 %v295, 1.0
    %v300 = vrcp.pop %v296
    %v301 = vmul.f32 1.0, %v300
    %v302 = vrcp.pop %v297
    %v303 = vmul.f32 1.0, %v302
    %v304 = vrcp.pop %v298
    %v305 = vmul.f32 1.0, %v304
    %v306 = vrcp.pop %v299
    %v307 = vmul.f32 1.0, %v306
    %s308 = scalar_lea.vmem [#allocation4], 64
    %v309 = vld [vmem:[%s308] sm:$0xff]
    %v310 = vld [vmem:[%s308 + $0x8] sm:$0xff]
    %v311 = vld [vmem:[%s308 + $0x10] sm:$0xff]
    %v312 = vld [vmem:[%s308 + $0x18] sm:$0xff]
    %313 = vmatprep.subr.mxu0 0.0
    %314 = vmatpush1.msra.mxu0 %v71
    %315 = vmatprep.subr.mxu0 0.0
    %316 = vmatpush1.msra.mxu0 %v72
    %317 = vmatprep.subr.mxu0 0.0
    %318 = vmatpush1.msra.mxu0 %v73
    %319 = vmatprep.subr.mxu0 0.0
    %320 = vmatpush1.msra.mxu0 %v74
    %321 = vmatprep.subr.mxu0 0.0
    %322 = vmatpush1.msra.mxu0 0.0
    %323 = vmatprep.subr.mxu0 0.0
    %324 = vmatpush1.msra.mxu0 0.0
    %325 = vmatprep.subr.mxu0 0.0
    %326 = vmatpush1.msra.mxu0 0.0
    %327 = vmatprep.subr.mxu0 0.0
    %328 = vmatpush1.msra.mxu0 0.0
    %329 = vmatprep.subr.mxu0 0.0
    %330 = vmatpush1.msra.mxu0 0.0
    %331 = vmatprep.subr.mxu0 0.0
    %332 = vmatpush1.msra.mxu0 0.0
    %333 = vmatprep.subr.mxu0 0.0
    %334 = vmatpush1.msra.mxu0 0.0
    %335 = vmatprep.subr.mxu0 0.0
    %336 = vmatpush1.msra.mxu0 0.0
    %337 = vmatprep.subr.mxu0 0.0
    %338 = vmatpush1.msra.mxu0 0.0
    %339 = vmatprep.subr.mxu0 0.0
    %340 = vmatpush1.msra.mxu0 0.0
    %341 = vmatprep.subr.mxu0 0.0
    %342 = vmatpush1.msra.mxu0 0.0
    %343 = vmatprep.subr.mxu0 0.0
    %344 = vmatpush1.msra.mxu0 0.0
    %345 = vmatprep.subr.mxu0 0.0
    %346 = vmatpush1.msra.mxu0 0.0
    %347 = vmatprep.subr.mxu0 0.0
    %348 = vmatpush1.msra.mxu0 0.0
    %349 = vmatprep.subr.mxu0 0.0
    %350 = vmatpush1.msra.mxu0 0.0
    %351 = vmatprep.subr.mxu0 0.0
    %352 = vmatpush1.msra.mxu0 0.0
    %353 = vmatprep.subr.mxu0 0.0
    %354 = vmatpush1.msra.mxu0 0.0
    %355 = vmatprep.subr.mxu0 0.0
    %356 = vmatpush1.msra.mxu0 0.0
    %357 = vmatprep.subr.mxu0 0.0
    %358 = vmatpush1.msra.mxu0 0.0
    %359 = vmatprep.subr.mxu0 0.0
    %360 = vmatpush1.msra.mxu0 0.0
    %361 = vmatprep.subr.mxu0 0.0
    %362 = vmatpush1.msra.mxu0 0.0
    %363 = vmatprep.subr.mxu0 0.0
    %364 = vmatpush1.msra.mxu0 0.0
    %365 = vmatprep.subr.mxu0 0.0
    %366 = vmatpush1.msra.mxu0 0.0
    %367 = vmatprep.subr.mxu0 0.0
    %368 = vmatpush1.msra.mxu0 0.0
    %369 = vmatprep.subr.mxu0 0.0
    %370 = vmatpush1.msra.mxu0 0.0
    %371 = vmatprep.subr.mxu0 0.0
    %372 = vmatpush1.msra.mxu0 0.0
    %373 = vmatprep.subr.mxu0 0.0
    %374 = vmatpush1.msra.mxu0 0.0
    %375 = vmatprep.subr.mxu0 0.0
    %376 = vmatpush1.msra.mxu0 0.0
    %377 = vmatprep.mubr.f32.mxu0 0.0
    %378 = vmatmul.mubr.f32.gmra.mrb[0].mxu0 %v86
    %v379 = vpop.f32.mrb[0].mxu0
    %v380 = vadd.f32 0.0, %v379
    %v381 = vpop.f32.mrb[0].mxu0
    %382 = vmatprep.mubr.f32.mxu0 0.0
    %383 = vmatmul.mubr.f32.gmra.mrb[0].mxu0 %v89
    %v384 = vpop.f32.mrb[0].mxu0
    %v385 = vadd.f32 0.0, %v384
    %v386 = vpop.f32.mrb[0].mxu0
    %387 = vmatprep.mubr.f32.mxu0 0.0
    %388 = vmatmul.mubr.f32.gmra.mrb[0].mxu0 %v92
    %v389 = vpop.f32.mrb[0].mxu0
    %v390 = vadd.f32 0.0, %v389
    %v391 = vpop.f32.mrb[0].mxu0
    %392 = vmatprep.mubr.f32.mxu0 0.0
    %393 = vmatmul.mubr.f32.gmra.mrb[0].mxu0 %v95
    %v394 = vpop.f32.mrb[0].mxu0
    %v395 = vadd.f32 0.0, %v394
    %v396 = vpop.f32.mrb[0].mxu0
    %397 = vdwg.mxu0
    %v398 = vadd.f32 %v309, %v380
    %v399 = vadd.f32 %v310, %v385
    %v400 = vadd.f32 %v311, %v390
    %v401 = vadd.f32 %v312, %v395
    %v402 = vxor.u32 %v398, 2147483648
    %v403 = vxor.u32 %v399, 2147483648
    %v404 = vxor.u32 %v400, 2147483648
    %v405 = vxor.u32 %v401, 2147483648
    %v406 = vmul.f32 %v402, 1.442695
    %v407 = vpow.pop %v406
    %v408 = vmul.f32 %v403, 1.442695
    %v409 = vpow.pop %v408
    %v410 = vmul.f32 %v404, 1.442695
    %v411 = vpow.pop %v410
    %v412 = vmul.f32 %v405, 1.442695
    %v413 = vpow.pop %v412
    %v414 = vadd.f32 %v407, 1.0
    %v415 = vadd.f32 %v409, 1.0
    %v416 = vadd.f32 %v411, 1.0
    %v417 = vadd.f32 %v413, 1.0
    %v418 = vrcp.pop %v414
    %v419 = vmul.f32 1.0, %v418
    %v420 = vrcp.pop %v415
    %v421 = vmul.f32 1.0, %v420
    %v422 = vrcp.pop %v416
    %v423 = vmul.f32 1.0, %v422
    %v424 = vrcp.pop %v417
    %v425 = vmul.f32 1.0, %v424
    %s426 = scalar_lea.vmem [#allocation4], 96
    %v427 = vld [vmem:[%s426] sm:$0xff]
    %v428 = vld [vmem:[%s426 + $0x8] sm:$0xff]
    %v429 = vld [vmem:[%s426 + $0x10] sm:$0xff]
    %v430 = vld [vmem:[%s426 + $0x18] sm:$0xff]
    %431 = vmatprep.subr.mxu0 0.0
    %432 = vmatpush1.msra.mxu0 %v76
    %433 = vmatprep.subr.mxu0 0.0
    %434 = vmatpush1.msra.mxu0 %v77
    %435 = vmatprep.subr.mxu0 0.0
    %436 = vmatpush1.msra.mxu0 %v78
    %437 = vmatprep.subr.mxu0 0.0
    %438 = vmatpush1.msra.mxu0 %v79
    %439 = vmatprep.subr.mxu0 0.0
    %440 = vmatpush1.msra.mxu0 0.0
    %441 = vmatprep.subr.mxu0 0.0
    %442 = vmatpush1.msra.mxu0 0.0
    %443 = vmatprep.subr.mxu0 0.0
    %444 = vmatpush1.msra.mxu0 0.0
    %445 = vmatprep.subr.mxu0 0.0
    %446 = vmatpush1.msra.mxu0 0.0
    %447 = vmatprep.subr.mxu0 0.0
    %448 = vmatpush1.msra.mxu0 0.0
    %449 = vmatprep.subr.mxu0 0.0
    %450 = vmatpush1.msra.mxu0 0.0
    %451 = vmatprep.subr.mxu0 0.0
    %452 = vmatpush1.msra.mxu0 0.0
    %453 = vmatprep.subr.mxu0 0.0
    %454 = vmatpush1.msra.mxu0 0.0
    %455 = vmatprep.subr.mxu0 0.0
    %456 = vmatpush1.msra.mxu0 0.0
    %457 = vmatprep.subr.mxu0 0.0
    %458 = vmatpush1.msra.mxu0 0.0
    %459 = vmatprep.subr.mxu0 0.0
    %460 = vmatpush1.msra.mxu0 0.0
    %461 = vmatprep.subr.mxu0 0.0
    %462 = vmatpush1.msra.mxu0 0.0
    %463 = vmatprep.subr.mxu0 0.0
    %464 = vmatpush1.msra.mxu0 0.0
    %465 = vmatprep.subr.mxu0 0.0
    %466 = vmatpush1.msra.mxu0 0.0
    %467 = vmatprep.subr.mxu0 0.0
    %468 = vmatpush1.msra.mxu0 0.0
    %469 = vmatprep.subr.mxu0 0.0
    %470 = vmatpush1.msra.mxu0 0.0
    %471 = vmatprep.subr.mxu0 0.0
    %472 = vmatpush1.msra.mxu0 0.0
    %473 = vmatprep.subr.mxu0 0.0
    %474 = vmatpush1.msra.mxu0 0.0
    %475 = vmatprep.subr.mxu0 0.0
    %476 = vmatpush1.msra.mxu0 0.0
    %477 = vmatprep.subr.mxu0 0.0
    %478 = vmatpush1.msra.mxu0 0.0
    %479 = vmatprep.subr.mxu0 0.0
    %480 = vmatpush1.msra.mxu0 0.0
    %481 = vmatprep.subr.mxu0 0.0
    %482 = vmatpush1.msra.mxu0 0.0
    %483 = vmatprep.subr.mxu0 0.0
    %484 = vmatpush1.msra.mxu0 0.0
    %485 = vmatprep.subr.mxu0 0.0
    %486 = vmatpush1.msra.mxu0 0.0
    %487 = vmatprep.subr.mxu0 0.0
    %488 = vmatpush1.msra.mxu0 0.0
    %489 = vmatprep.subr.mxu0 0.0
    %490 = vmatpush1.msra.mxu0 0.0
    %491 = vmatprep.subr.mxu0 0.0
    %492 = vmatpush1.msra.mxu0 0.0
    %493 = vmatprep.subr.mxu0 0.0
    %494 = vmatpush1.msra.mxu0 0.0
    %495 = vmatprep.mubr.f32.mxu0 0.0
    %496 = vmatmul.mubr.f32.gmra.mrb[0].mxu0 %v86
    %v497 = vpop.f32.mrb[0].mxu0
    %v498 = vadd.f32 0.0, %v497
    %v499 = vpop.f32.mrb[0].mxu0
    %500 = vmatprep.mubr.f32.mxu0 0.0
    %501 = vmatmul.mubr.f32.gmra.mrb[0].mxu0 %v89
    %v502 = vpop.f32.mrb[0].mxu0
    %v503 = vadd.f32 0.0, %v502
    %v504 = vpop.f32.mrb[0].mxu0
    %505 = vmatprep.mubr.f32.mxu0 0.0
    %506 = vmatmul.mubr.f32.gmra.mrb[0].mxu0 %v92
    %v507 = vpop.f32.mrb[0].mxu0
    %v508 = vadd.f32 0.0, %v507
    %v509 = vpop.f32.mrb[0].mxu0
    %510 = vmatprep.mubr.f32.mxu0 0.0
    %511 = vmatmul.mubr.f32.gmra.mrb[0].mxu0 %v95
    %v512 = vpop.f32.mrb[0].mxu0
    %v513 = vadd.f32 0.0, %v512
    %v514 = vpop.f32.mrb[0].mxu0
    %515 = vdwg.mxu0
    %v516 = vadd.f32 %v427, %v498
    %v517 = vadd.f32 %v428, %v503
    %v518 = vadd.f32 %v429, %v508
    %v519 = vadd.f32 %v430, %v513
    %v520 = vxor.u32 %v516, 2147483648
    %v521 = vxor.u32 %v517, 2147483648
    %v522 = vxor.u32 %v518, 2147483648
    %v523 = vxor.u32 %v519, 2147483648
    %v524 = vmul.f32 %v520, 1.442695
    %v525 = vpow.pop %v524
    %v526 = vmul.f32 %v521, 1.442695
    %v527 = vpow.pop %v526
    %v528 = vmul.f32 %v522, 1.442695
    %v529 = vpow.pop %v528
    %v530 = vmul.f32 %v523, 1.442695
    %v531 = vpow.pop %v530
    %v532 = vadd.f32 %v525, 1.0
    %v533 = vadd.f32 %v527, 1.0
    %v534 = vadd.f32 %v529, 1.0
    %v535 = vadd.f32 %v531, 1.0
    %v536 = vrcp.pop %v532
    %v537 = vmul.f32 1.0, %v536
    %v538 = vrcp.pop %v533
    %v539 = vmul.f32 1.0, %v538
    %v540 = vrcp.pop %v534
    %v541 = vmul.f32 1.0, %v540
    %v542 = vrcp.pop %v535
    %v543 = vmul.f32 1.0, %v542
    %v544 = vmul.f32 %v186, %v301
    %v545 = vmul.f32 %v187, %v303
    %v546 = vmul.f32 %v188, %v305
    %v547 = vmul.f32 %v189, %v307
    %v548 = vmul.f32 %v57, %v419
    %v549 = vmul.f32 %v58, %v421
    %v550 = vmul.f32 %v59, %v423
    %v551 = vmul.f32 %v60, %v425
    %v552 = vadd.f32 %v544, %v548
    %v553 = vadd.f32 %v545, %v549
    %v554 = vadd.f32 %v546, %v550
    %v555 = vadd.f32 %v547, %v551
    %v556 = vtanh.pop %v552
    %v557 = vtanh.pop %v553
    %v558 = vtanh.pop %v554
    %v559 = vtanh.pop %v555
    %v560 = vmul.f32 %v556, %v537
    %v561 = vmul.f32 %v557, %v539
    %v562 = vmul.f32 %v558, %v541
    %v563 = vmul.f32 %v559, %v543
    %s564 = scalar_lea.vmem [#allocation4], 128
    %v565 = vld [vmem:[%s564] sm:$0xff]
    %v566 = vld [vmem:[%s564 + $0x8] sm:$0xff]
    %v567 = vld [vmem:[%s564 + $0x10] sm:$0xff]
    %v568 = vld [vmem:[%s564 + $0x18] sm:$0xff]
    %v570 = vsel %vm84, %v560, 0
    %v573 = vsel %vm84, %v561, 0
    %v576 = vsel %vm84, %v562, 0
    %v579 = vsel %vm84, %v563, 0
    %581 = vmatprep.subr.mxu0 0.0
    %582 = vmatpush1.msra.mxu0 %v61
    %583 = vmatprep.subr.mxu0 0.0
    %584 = vmatpush1.msra.mxu0 %v62
    %585 = vmatprep.subr.mxu0 0.0
    %586 = vmatpush1.msra.mxu0 %v63
    %587 = vmatprep.subr.mxu0 0.0
    %588 = vmatpush1.msra.mxu0 %v64
    %589 = vmatprep.subr.mxu0 0.0
    %590 = vmatpush1.msra.mxu0 0.0
    %591 = vmatprep.subr.mxu0 0.0
    %592 = vmatpush1.msra.mxu0 0.0
    %593 = vmatprep.subr.mxu0 0.0
    %594 = vmatpush1.msra.mxu0 0.0
    %595 = vmatprep.subr.mxu0 0.0
    %596 = vmatpush1.msra.mxu0 0.0
    %597 = vmatprep.subr.mxu0 0.0
    %598 = vmatpush1.msra.mxu0 0.0
    %599 = vmatprep.subr.mxu0 0.0
    %600 = vmatpush1.msra.mxu0 0.0
    %601 = vmatprep.subr.mxu0 0.0
    %602 = vmatpush1.msra.mxu0 0.0
    %603 = vmatprep.subr.mxu0 0.0
    %604 = vmatpush1.msra.mxu0 0.0
    %605 = vmatprep.subr.mxu0 0.0
    %606 = vmatpush1.msra.mxu0 0.0
    %607 = vmatprep.subr.mxu0 0.0
    %608 = vmatpush1.msra.mxu0 0.0
    %609 = vmatprep.subr.mxu0 0.0
    %610 = vmatpush1.msra.mxu0 0.0
    %611 = vmatprep.subr.mxu0 0.0
    %612 = vmatpush1.msra.mxu0 0.0
    %613 = vmatprep.subr.mxu0 0.0
    %614 = vmatpush1.msra.mxu0 0.0
    %615 = vmatprep.subr.mxu0 0.0
    %616 = vmatpush1.msra.mxu0 0.0
    %617 = vmatprep.subr.mxu0 0.0
    %618 = vmatpush1.msra.mxu0 0.0
    %619 = vmatprep.subr.mxu0 0.0
    %620 = vmatpush1.msra.mxu0 0.0
    %621 = vmatprep.subr.mxu0 0.0
    %622 = vmatpush1.msra.mxu0 0.0
    %623 = vmatprep.subr.mxu0 0.0
    %624 = vmatpush1.msra.mxu0 0.0
    %625 = vmatprep.subr.mxu0 0.0
    %626 = vmatpush1.msra.mxu0 0.0
    %627 = vmatprep.subr.mxu0 0.0
    %628 = vmatpush1.msra.mxu0 0.0
    %629 = vmatprep.subr.mxu0 0.0
    %630 = vmatpush1.msra.mxu0 0.0
    %631 = vmatprep.subr.mxu0 0.0
    %632 = vmatpush1.msra.mxu0 0.0
    %633 = vmatprep.subr.mxu0 0.0
    %634 = vmatpush1.msra.mxu0 0.0
    %635 = vmatprep.subr.mxu0 0.0
    %636 = vmatpush1.msra.mxu0 0.0
    %637 = vmatprep.subr.mxu0 0.0
    %638 = vmatpush1.msra.mxu0 0.0
    %639 = vmatprep.subr.mxu0 0.0
    %640 = vmatpush1.msra.mxu0 0.0
    %641 = vmatprep.subr.mxu0 0.0
    %642 = vmatpush1.msra.mxu0 0.0
    %643 = vmatprep.subr.mxu0 0.0
    %644 = vmatpush1.msra.mxu0 0.0
    %645 = vmatprep.mubr.f32.mxu0 0.0
    %646 = vmatmul.mubr.f32.gmra.mrb[0].mxu0 %v570
    %v647 = vpop.f32.mrb[0].mxu0
    %v648 = vadd.f32 0.0, %v647
    %v649 = vpop.f32.mrb[0].mxu0
    %650 = vmatprep.mubr.f32.mxu0 0.0
    %651 = vmatmul.mubr.f32.gmra.mrb[0].mxu0 %v573
    %v652 = vpop.f32.mrb[0].mxu0
    %v653 = vadd.f32 0.0, %v652
    %v654 = vpop.f32.mrb[0].mxu0
    %655 = vmatprep.mubr.f32.mxu0 0.0
    %656 = vmatmul.mubr.f32.gmra.mrb[0].mxu0 %v576
    %v657 = vpop.f32.mrb[0].mxu0
    %v658 = vadd.f32 0.0, %v657
    %v659 = vpop.f32.mrb[0].mxu0
    %660 = vmatprep.mubr.f32.mxu0 0.0
    %661 = vmatmul.mubr.f32.gmra.mrb[0].mxu0 %v579
    %v662 = vpop.f32.mrb[0].mxu0
    %v663 = vadd.f32 0.0, %v662
    %v664 = vpop.f32.mrb[0].mxu0
    %665 = vdwg.mxu0
    %v666 = vadd.f32 %v565, %v648
    %v667 = vadd.f32 %v566, %v653
    %v668 = vadd.f32 %v567, %v658
    %v669 = vadd.f32 %v568, %v663
    %v670 = vtanh.pop %v666
    %v671 = vtanh.pop %v667
    %v672 = vtanh.pop %v668
    %v673 = vtanh.pop %v669
    %s674 = scalar_lea.vmem [#allocation4], 160
    %v675 = vld [vmem:[%s674] sm:$0xff]
    %v676 = vld [vmem:[%s674 + $0x8] sm:$0xff]
    %v677 = vld [vmem:[%s674 + $0x10] sm:$0xff]
    %v678 = vld [vmem:[%s674 + $0x18] sm:$0xff]
    %679 = vmatprep.subr.mxu0 0.0
    %680 = vmatpush1.msra.mxu0 %v66
    %681 = vmatprep.subr.mxu0 0.0
    %682 = vmatpush1.msra.mxu0 %v67
    %683 = vmatprep.subr.mxu0 0.0
    %684 = vmatpush1.msra.mxu0 %v68
    %685 = vmatprep.subr.mxu0 0.0
    %686 = vmatpush1.msra.mxu0 %v69
    %687 = vmatprep.subr.mxu0 0.0
    %688 = vmatpush1.msra.mxu0 0.0
    %689 = vmatprep.subr.mxu0 0.0
    %690 = vmatpush1.msra.mxu0 0.0
    %691 = vmatprep.subr.mxu0 0.0
    %692 = vmatpush1.msra.mxu0 0.0
    %693 = vmatprep.subr.mxu0 0.0
    %694 = vmatpush1.msra.mxu0 0.0
    %695 = vmatprep.subr.mxu0 0.0
    %696 = vmatpush1.msra.mxu0 0.0
    %697 = vmatprep.subr.mxu0 0.0
    %698 = vmatpush1.msra.mxu0 0.0
    %699 = vmatprep.subr.mxu0 0.0
    %700 = vmatpush1.msra.mxu0 0.0
    %701 = vmatprep.subr.mxu0 0.0
    %702 = vmatpush1.msra.mxu0 0.0
    %703 = vmatprep.subr.mxu0 0.0
    %704 = vmatpush1.msra.mxu0 0.0
    %705 = vmatprep.subr.mxu0 0.0
    %706 = vmatpush1.msra.mxu0 0.0
    %707 = vmatprep.subr.mxu0 0.0
    %708 = vmatpush1.msra.mxu0 0.0
    %709 = vmatprep.subr.mxu0 0.0
    %710 = vmatpush1.msra.mxu0 0.0
    %711 = vmatprep.subr.mxu0 0.0
    %712 = vmatpush1.msra.mxu0 0.0
    %713 = vmatprep.subr.mxu0 0.0
    %714 = vmatpush1.msra.mxu0 0.0
    %715 = vmatprep.subr.mxu0 0.0
    %716 = vmatpush1.msra.mxu0 0.0
    %717 = vmatprep.subr.mxu0 0.0
    %718 = vmatpush1.msra.mxu0 0.0
    %719 = vmatprep.subr.mxu0 0.0
    %720 = vmatpush1.msra.mxu0 0.0
    %721 = vmatprep.subr.mxu0 0.0
    %722 = vmatpush1.msra.mxu0 0.0
    %723 = vmatprep.subr.mxu0 0.0
    %724 = vmatpush1.msra.mxu0 0.0
    %725 = vmatprep.subr.mxu0 0.0
    %726 = vmatpush1.msra.mxu0 0.0
    %727 = vmatprep.subr.mxu0 0.0
    %728 = vmatpush1.msra.mxu0 0.0
    %729 = vmatprep.subr.mxu0 0.0
    %730 = vmatpush1.msra.mxu0 0.0
    %731 = vmatprep.subr.mxu0 0.0
    %732 = vmatpush1.msra.mxu0 0.0
    %733 = vmatprep.subr.mxu0 0.0
    %734 = vmatpush1.msra.mxu0 0.0
    %735 = vmatprep.subr.mxu0 0.0
    %736 = vmatpush1.msra.mxu0 0.0
    %737 = vmatprep.subr.mxu0 0.0
    %738 = vmatpush1.msra.mxu0 0.0
    %739 = vmatprep.subr.mxu0 0.0
    %740 = vmatpush1.msra.mxu0 0.0
    %741 = vmatprep.subr.mxu0 0.0
    %742 = vmatpush1.msra.mxu0 0.0
    %743 = vmatprep.mubr.f32.mxu0 0.0
    %744 = vmatmul.mubr.f32.gmra.mrb[0].mxu0 %v570
    %v745 = vpop.f32.mrb[0].mxu0
    %v746 = vadd.f32 0.0, %v745
    %v747 = vpop.f32.mrb[0].mxu0
    %748 = vmatprep.mubr.f32.mxu0 0.0
    %749 = vmatmul.mubr.f32.gmra.mrb[0].mxu0 %v573
    %v750 = vpop.f32.mrb[0].mxu0
    %v751 = vadd.f32 0.0, %v750
    %v752 = vpop.f32.mrb[0].mxu0
    %753 = vmatprep.mubr.f32.mxu0 0.0
    %754 = vmatmul.mubr.f32.gmra.mrb[0].mxu0 %v576
    %v755 = vpop.f32.mrb[0].mxu0
    %v756 = vadd.f32 0.0, %v755
    %v757 = vpop.f32.mrb[0].mxu0
    %758 = vmatprep.mubr.f32.mxu0 0.0
    %759 = vmatmul.mubr.f32.gmra.mrb[0].mxu0 %v579
    %v760 = vpop.f32.mrb[0].mxu0
    %v761 = vadd.f32 0.0, %v760
    %v762 = vpop.f32.mrb[0].mxu0
    %763 = vdwg.mxu0
    %v764 = vadd.f32 %v675, %v746
    %v765 = vadd.f32 %v676, %v751
    %v766 = vadd.f32 %v677, %v756
    %v767 = vadd.f32 %v678, %v761
    %v768 = vxor.u32 %v764, 2147483648
    %v769 = vxor.u32 %v765, 2147483648
    %v770 = vxor.u32 %v766, 2147483648
    %v771 = vxor.u32 %v767, 2147483648
    %v772 = vmul.f32 %v768, 1.442695
    %v773 = vpow.pop %v772
    %v774 = vmul.f32 %v769, 1.442695
    %v775 = vpow.pop %v774
    %v776 = vmul.f32 %v770, 1.442695
    %v777 = vpow.pop %v776
    %v778 = vmul.f32 %v771, 1.442695
    %v779 = vpow.pop %v778
    %v780 = vadd.f32 %v773, 1.0
    %v781 = vadd.f32 %v775, 1.0
    %v782 = vadd.f32 %v777, 1.0
    %v783 = vadd.f32 %v779, 1.0
    %v784 = vrcp.pop %v780
    %v785 = vmul.f32 1.0, %v784
    %v786 = vrcp.pop %v781
    %v787 = vmul.f32 1.0, %v786
    %v788 = vrcp.pop %v782
    %v789 = vmul.f32 1.0, %v788
    %v790 = vrcp.pop %v783
    %v791 = vmul.f32 1.0, %v790
    %s792 = scalar_lea.vmem [#allocation4], 192
    %v793 = vld [vmem:[%s792] sm:$0xff]
    %v794 = vld [vmem:[%s792 + $0x8] sm:$0xff]
    %v795 = vld [vmem:[%s792 + $0x10] sm:$0xff]
    %v796 = vld [vmem:[%s792 + $0x18] sm:$0xff]
    %797 = vmatprep.subr.mxu0 0.0
    %798 = vmatpush1.msra.mxu0 %v71
    %799 = vmatprep.subr.mxu0 0.0
    %800 = vmatpush1.msra.mxu0 %v72
    %801 = vmatprep.subr.mxu0 0.0
    %802 = vmatpush1.msra.mxu0 %v73
    %803 = vmatprep.subr.mxu0 0.0
    %804 = vmatpush1.msra.mxu0 %v74
    %805 = vmatprep.subr.mxu0 0.0
    %806 = vmatpush1.msra.mxu0 0.0
    %807 = vmatprep.subr.mxu0 0.0
    %808 = vmatpush1.msra.mxu0 0.0
    %809 = vmatprep.subr.mxu0 0.0
    %810 = vmatpush1.msra.mxu0 0.0
    %811 = vmatprep.subr.mxu0 0.0
    %812 = vmatpush1.msra.mxu0 0.0
    %813 = vmatprep.subr.mxu0 0.0
    %814 = vmatpush1.msra.mxu0 0.0
    %815 = vmatprep.subr.mxu0 0.0
    %816 = vmatpush1.msra.mxu0 0.0
    %817 = vmatprep.subr.mxu0 0.0
    %818 = vmatpush1.msra.mxu0 0.0
    %819 = vmatprep.subr.mxu0 0.0
    %820 = vmatpush1.msra.mxu0 0.0
    %821 = vmatprep.subr.mxu0 0.0
    %822 = vmatpush1.msra.mxu0 0.0
    %823 = vmatprep.subr.mxu0 0.0
    %824 = vmatpush1.msra.mxu0 0.0
    %825 = vmatprep.subr.mxu0 0.0
    %826 = vmatpush1.msra.mxu0 0.0
    %827 = vmatprep.subr.mxu0 0.0
    %828 = vmatpush1.msra.mxu0 0.0
    %829 = vmatprep.subr.mxu0 0.0
    %830 = vmatpush1.msra.mxu0 0.0
    %831 = vmatprep.subr.mxu0 0.0
    %832 = vmatpush1.msra.mxu0 0.0
    %833 = vmatprep.subr.mxu0 0.0
    %834 = vmatpush1.msra.mxu0 0.0
    %835 = vmatprep.subr.mxu0 0.0
    %836 = vmatpush1.msra.mxu0 0.0
    %837 = vmatprep.subr.mxu0 0.0
    %838 = vmatpush1.msra.mxu0 0.0
    %839 = vmatprep.subr.mxu0 0.0
    %840 = vmatpush1.msra.mxu0 0.0
    %841 = vmatprep.subr.mxu0 0.0
    %842 = vmatpush1.msra.mxu0 0.0
    %843 = vmatprep.subr.mxu0 0.0
    %844 = vmatpush1.msra.mxu0 0.0
    %845 = vmatprep.subr.mxu0 0.0
    %846 = vmatpush1.msra.mxu0 0.0
    %847 = vmatprep.subr.mxu0 0.0
    %848 = vmatpush1.msra.mxu0 0.0
    %849 = vmatprep.subr.mxu0 0.0
    %850 = vmatpush1.msra.mxu0 0.0
    %851 = vmatprep.subr.mxu0 0.0
    %852 = vmatpush1.msra.mxu0 0.0
    %853 = vmatprep.subr.mxu0 0.0
    %854 = vmatpush1.msra.mxu0 0.0
    %855 = vmatprep.subr.mxu0 0.0
    %856 = vmatpush1.msra.mxu0 0.0
    %857 = vmatprep.subr.mxu0 0.0
    %858 = vmatpush1.msra.mxu0 0.0
    %859 = vmatprep.subr.mxu0 0.0
    %860 = vmatpush1.msra.mxu0 0.0
    %861 = vmatprep.mubr.f32.mxu0 0.0
    %862 = vmatmul.mubr.f32.gmra.mrb[0].mxu0 %v570
    %v863 = vpop.f32.mrb[0].mxu0
    %v864 = vadd.f32 0.0, %v863
    %v865 = vpop.f32.mrb[0].mxu0
    %866 = vmatprep.mubr.f32.mxu0 0.0
    %867 = vmatmul.mubr.f32.gmra.mrb[0].mxu0 %v573
    %v868 = vpop.f32.mrb[0].mxu0
    %v869 = vadd.f32 0.0, %v868
    %v870 = vpop.f32.mrb[0].mxu0
    %871 = vmatprep.mubr.f32.mxu0 0.0
    %872 = vmatmul.mubr.f32.gmra.mrb[0].mxu0 %v576
    %v873 = vpop.f32.mrb[0].mxu0
    %v874 = vadd.f32 0.0, %v873
    %v875 = vpop.f32.mrb[0].mxu0
    %876 = vmatprep.mubr.f32.mxu0 0.0
    %877 = vmatmul.mubr.f32.gmra.mrb[0].mxu0 %v579
    %v878 = vpop.f32.mrb[0].mxu0
    %v879 = vadd.f32 0.0, %v878
    %v880 = vpop.f32.mrb[0].mxu0
    %881 = vdwg.mxu0
    %v882 = vadd.f32 %v793, %v864
    %v883 = vadd.f32 %v794, %v869
    %v884 = vadd.f32 %v795, %v874
    %v885 = vadd.f32 %v796, %v879
    %v886 = vxor.u32 %v882, 2147483648
    %v887 = vxor.u32 %v883, 2147483648
    %v888 = vxor.u32 %v884, 2147483648
    %v889 = vxor.u32 %v885, 2147483648
    %v890 = vmul.f32 %v886, 1.442695
    %v891 = vpow.pop %v890
    %v892 = vmul.f32 %v887, 1.442695
    %v893 = vpow.pop %v892
    %v894 = vmul.f32 %v888, 1.442695
    %v895 = vpow.pop %v894
    %v896 = vmul.f32 %v889, 1.442695
    %v897 = vpow.pop %v896
    %v898 = vadd.f32 %v891, 1.0
    %v899 = vadd.f32 %v893, 1.0
    %v900 = vadd.f32 %v895, 1.0
    %v901 = vadd.f32 %v897, 1.0
    %v902 = vrcp.pop %v898
    %v903 = vmul.f32 1.0, %v902
    %v904 = vrcp.pop %v899
    %v905 = vmul.f32 1.0, %v904
    %v906 = vrcp.pop %v900
    %v907 = vmul.f32 1.0, %v906
    %v908 = vrcp.pop %v901
    %v909 = vmul.f32 1.0, %v908
    %s910 = scalar_lea.vmem [#allocation4], 224
    %v911 = vld [vmem:[%s910] sm:$0xff]
    %v912 = vld [vmem:[%s910 + $0x8] sm:$0xff]
    %v913 = vld [vmem:[%s910 + $0x10] sm:$0xff]
    %v914 = vld [vmem:[%s910 + $0x18] sm:$0xff]
    %915 = vmatprep.subr.mxu0 0.0
    %916 = vmatpush1.msra.mxu0 %v76
    %917 = vmatprep.subr.mxu0 0.0
    %918 = vmatpush1.msra.mxu0 %v77
    %919 = vmatprep.subr.mxu0 0.0
    %920 = vmatpush1.msra.mxu0 %v78
    %921 = vmatprep.subr.mxu0 0.0
    %922 = vmatpush1.msra.mxu0 %v79
    %923 = vmatprep.subr.mxu0 0.0
    %924 = vmatpush1.msra.mxu0 0.0
    %925 = vmatprep.subr.mxu0 0.0
    %926 = vmatpush1.msra.mxu0 0.0
    %927 = vmatprep.subr.mxu0 0.0
    %928 = vmatpush1.msra.mxu0 0.0
    %929 = vmatprep.subr.mxu0 0.0
    %930 = vmatpush1.msra.mxu0 0.0
    %931 = vmatprep.subr.mxu0 0.0
    %932 = vmatpush1.msra.mxu0 0.0
    %933 = vmatprep.subr.mxu0 0.0
    %934 = vmatpush1.msra.mxu0 0.0
    %935 = vmatprep.subr.mxu0 0.0
    %936 = vmatpush1.msra.mxu0 0.0
    %937 = vmatprep.subr.mxu0 0.0
    %938 = vmatpush1.msra.mxu0 0.0
    %939 = vmatprep.subr.mxu0 0.0
    %940 = vmatpush1.msra.mxu0 0.0
    %941 = vmatprep.subr.mxu0 0.0
    %942 = vmatpush1.msra.mxu0 0.0
    %943 = vmatprep.subr.mxu0 0.0
    %944 = vmatpush1.msra.mxu0 0.0
    %945 = vmatprep.subr.mxu0 0.0
    %946 = vmatpush1.msra.mxu0 0.0
    %947 = vmatprep.subr.mxu0 0.0
    %948 = vmatpush1.msra.mxu0 0.0
    %949 = vmatprep.subr.mxu0 0.0
    %950 = vmatpush1.msra.mxu0 0.0
    %951 = vmatprep.subr.mxu0 0.0
    %952 = vmatpush1.msra.mxu0 0.0
    %953 = vmatprep.subr.mxu0 0.0
    %954 = vmatpush1.msra.mxu0 0.0
    %955 = vmatprep.subr.mxu0 0.0
    %956 = vmatpush1.msra.mxu0 0.0
    %957 = vmatprep.subr.mxu0 0.0
    %958 = vmatpush1.msra.mxu0 0.0
    %959 = vmatprep.subr.mxu0 0.0
    %960 = vmatpush1.msra.mxu0 0.0
    %961 = vmatprep.subr.mxu0 0.0
    %962 = vmatpush1.msra.mxu0 0.0
    %963 = vmatprep.subr.mxu0 0.0
    %964 = vmatpush1.msra.mxu0 0.0
    %965 = vmatprep.subr.mxu0 0.0
    %966 = vmatpush1.msra.mxu0 0.0
    %967 = vmatprep.subr.mxu0 0.0
    %968 = vmatpush1.msra.mxu0 0.0
    %969 = vmatprep.subr.mxu0 0.0
    %970 = vmatpush1.msra.mxu0 0.0
    %971 = vmatprep.subr.mxu0 0.0
    %972 = vmatpush1.msra.mxu0 0.0
    %973 = vmatprep.subr.mxu0 0.0
    %974 = vmatpush1.msra.mxu0 0.0
    %975 = vmatprep.subr.mxu0 0.0
    %976 = vmatpush1.msra.mxu0 0.0
    %977 = vmatprep.subr.mxu0 0.0
    %978 = vmatpush1.msra.mxu0 0.0
    %979 = vmatprep.mubr.f32.mxu0 0.0
    %980 = vmatmul.mubr.f32.gmra.mrb[0].mxu0 %v570
    %v981 = vpop.f32.mrb[0].mxu0
    %v982 = vadd.f32 0.0, %v981
    %v983 = vpop.f32.mrb[0].mxu0
    %984 = vmatprep.mubr.f32.mxu0 0.0
    %985 = vmatmul.mubr.f32.gmra.mrb[0].mxu0 %v573
    %v986 = vpop.f32.mrb[0].mxu0
    %v987 = vadd.f32 0.0, %v986
    %v988 = vpop.f32.mrb[0].mxu0
    %989 = vmatprep.mubr.f32.mxu0 0.0
    %990 = vmatmul.mubr.f32.gmra.mrb[0].mxu0 %v576
    %v991 = vpop.f32.mrb[0].mxu0
    %v992 = vadd.f32 0.0, %v991
    %v993 = vpop.f32.mrb[0].mxu0
    %994 = vmatprep.mubr.f32.mxu0 0.0
    %995 = vmatmul.mubr.f32.gmra.mrb[0].mxu0 %v579
    %v996 = vpop.f32.mrb[0].mxu0
    %v997 = vadd.f32 0.0, %v996
    %v998 = vpop.f32.mrb[0].mxu0
    %999 = vdwg.mxu0
    %v1000 = vadd.f32 %v911, %v982
    %v1001 = vadd.f32 %v912, %v987
    %v1002 = vadd.f32 %v913, %v992
    %v1003 = vadd.f32 %v914, %v997
    %v1004 = vxor.u32 %v1000, 2147483648
    %v1005 = vxor.u32 %v1001, 2147483648
    %v1006 = vxor.u32 %v1002, 2147483648
    %v1007 = vxor.u32 %v1003, 2147483648
    %v1008 = vmul.f32 %v1004, 1.442695
    %v1009 = vpow.pop %v1008
    %v1010 = vmul.f32 %v1005, 1.442695
    %v1011 = vpow.pop %v1010
    %v1012 = vmul.f32 %v1006, 1.442695
    %v1013 = vpow.pop %v1012
    %v1014 = vmul.f32 %v1007, 1.442695
    %v1015 = vpow.pop %v1014
    %v1016 = vadd.f32 %v1009, 1.0
    %v1017 = vadd.f32 %v1011, 1.0
    %v1018 = vadd.f32 %v1013, 1.0
    %v1019 = vadd.f32 %v1015, 1.0
    %v1020 = vrcp.pop %v1016
    %v1021 = vmul.f32 1.0, %v1020
    %v1022 = vrcp.pop %v1017
    %v1023 = vmul.f32 1.0, %v1022
    %v1024 = vrcp.pop %v1018
    %v1025 = vmul.f32 1.0, %v1024
    %v1026 = vrcp.pop %v1019
    %v1027 = vmul.f32 1.0, %v1026
    %v1028 = vmul.f32 %v670, %v785
    %v1029 = vmul.f32 %v671, %v787
    %v1030 = vmul.f32 %v672, %v789
    %v1031 = vmul.f32 %v673, %v791
    %v1032 = vmul.f32 %v552, %v903
    %v1033 = vmul.f32 %v553, %v905
    %v1034 = vmul.f32 %v554, %v907
    %v1035 = vmul.f32 %v555, %v909
    %v1036 = vadd.f32 %v1028, %v1032
    %v1037 = vadd.f32 %v1029, %v1033
    %v1038 = vadd.f32 %v1030, %v1034
    %v1039 = vadd.f32 %v1031, %v1035
    %v1040 = vtanh.pop %v1036
    %v1041 = vtanh.pop %v1037
    %v1042 = vtanh.pop %v1038
    %v1043 = vtanh.pop %v1039
    %v1044 = vmul.f32 %v1040, %v1021
    %v1045 = vmul.f32 %v1041, %v1023
    %v1046 = vmul.f32 %v1042, %v1025
    %v1047 = vmul.f32 %v1043, %v1027
    %s1048 = scalar_lea.vmem [#allocation4], 256
    %v1049 = vld [vmem:[%s1048] sm:$0xff]
    %v1050 = vld [vmem:[%s1048 + $0x8] sm:$0xff]
    %v1051 = vld [vmem:[%s1048 + $0x10] sm:$0xff]
    %v1052 = vld [vmem:[%s1048 + $0x18] sm:$0xff]
    %v1054 = vsel %vm84, %v1044, 0
    %v1057 = vsel %vm84, %v1045, 0
    %v1060 = vsel %vm84, %v1046, 0
    %v1063 = vsel %vm84, %v1047, 0
    %1065 = vmatprep.subr.mxu0 0.0
    %1066 = vmatpush1.msra.mxu0 %v61
    %1067 = vmatprep.subr.mxu0 0.0
    %1068 = vmatpush1.msra.mxu0 %v62
    %1069 = vmatprep.subr.mxu0 0.0
    %1070 = vmatpush1.msra.mxu0 %v63
    %1071 = vmatprep.subr.mxu0 0.0
    %1072 = vmatpush1.msra.mxu0 %v64
    %1073 = vmatprep.subr.mxu0 0.0
    %1074 = vmatpush1.msra.mxu0 0.0
    %1075 = vmatprep.subr.mxu0 0.0
    %1076 = vmatpush1.msra.mxu0 0.0
    %1077 = vmatprep.subr.mxu0 0.0
    %1078 = vmatpush1.msra.mxu0 0.0
    %1079 = vmatprep.subr.mxu0 0.0
    %1080 = vmatpush1.msra.mxu0 0.0
    %1081 = vmatprep.subr.mxu0 0.0
    %1082 = vmatpush1.msra.mxu0 0.0
    %1083 = vmatprep.subr.mxu0 0.0
    %1084 = vmatpush1.msra.mxu0 0.0
    %1085 = vmatprep.subr.mxu0 0.0
    %1086 = vmatpush1.msra.mxu0 0.0
    %1087 = vmatprep.subr.mxu0 0.0
    %1088 = vmatpush1.msra.mxu0 0.0
    %1089 = vmatprep.subr.mxu0 0.0
    %1090 = vmatpush1.msra.mxu0 0.0
    %1091 = vmatprep.subr.mxu0 0.0
    %1092 = vmatpush1.msra.mxu0 0.0
    %1093 = vmatprep.subr.mxu0 0.0
    %1094 = vmatpush1.msra.mxu0 0.0
    %1095 = vmatprep.subr.mxu0 0.0
    %1096 = vmatpush1.msra.mxu0 0.0
    %1097 = vmatprep.subr.mxu0 0.0
    %1098 = vmatpush1.msra.mxu0 0.0
    %1099 = vmatprep.subr.mxu0 0.0
    %1100 = vmatpush1.msra.mxu0 0.0
    %1101 = vmatprep.subr.mxu0 0.0
    %1102 = vmatpush1.msra.mxu0 0.0
    %1103 = vmatprep.subr.mxu0 0.0
    %1104 = vmatpush1.msra.mxu0 0.0
    %1105 = vmatprep.subr.mxu0 0.0
    %1106 = vmatpush1.msra.mxu0 0.0
    %1107 = vmatprep.subr.mxu0 0.0
    %1108 = vmatpush1.msra.mxu0 0.0
    %1109 = vmatprep.subr.mxu0 0.0
    %1110 = vmatpush1.msra.mxu0 0.0
    %1111 = vmatprep.subr.mxu0 0.0
    %1112 = vmatpush1.msra.mxu0 0.0
    %1113 = vmatprep.subr.mxu0 0.0
    %1114 = vmatpush1.msra.mxu0 0.0
    %1115 = vmatprep.subr.mxu0 0.0
    %1116 = vmatpush1.msra.mxu0 0.0
    %1117 = vmatprep.subr.mxu0 0.0
    %1118 = vmatpush1.msra.mxu0 0.0
    %1119 = vmatprep.subr.mxu0 0.0
    %1120 = vmatpush1.msra.mxu0 0.0
    %1121 = vmatprep.subr.mxu0 0.0
    %1122 = vmatpush1.msra.mxu0 0.0
    %1123 = vmatprep.subr.mxu0 0.0
    %1124 = vmatpush1.msra.mxu0 0.0
    %1125 = vmatprep.subr.mxu0 0.0
    %1126 = vmatpush1.msra.mxu0 0.0
    %1127 = vmatprep.subr.mxu0 0.0
    %1128 = vmatpush1.msra.mxu0 0.0
    %1129 = vmatprep.mubr.f32.mxu0 0.0
    %1130 = vmatmul.mubr.f32.gmra.mrb[0].mxu0 %v1054
    %v1131 = vpop.f32.mrb[0].mxu0
    %v1132 = vadd.f32 0.0, %v1131
    %v1133 = vpop.f32.mrb[0].mxu0
    %1134 = vmatprep.mubr.f32.mxu0 0.0
    %1135 = vmatmul.mubr.f32.gmra.mrb[0].mxu0 %v1057
    %v1136 = vpop.f32.mrb[0].mxu0
    %v1137 = vadd.f32 0.0, %v1136
    %v1138 = vpop.f32.mrb[0].mxu0
    %1139 = vmatprep.mubr.f32.mxu0 0.0
    %1140 = vmatmul.mubr.f32.gmra.mrb[0].mxu0 %v1060
    %v1141 = vpop.f32.mrb[0].mxu0
    %v1142 = vadd.f32 0.0, %v1141
    %v1143 = vpop.f32.mrb[0].mxu0
    %1144 = vmatprep.mubr.f32.mxu0 0.0
    %1145 = vmatmul.mubr.f32.gmra.mrb[0].mxu0 %v1063
    %v1146 = vpop.f32.mrb[0].mxu0
    %v1147 = vadd.f32 0.0, %v1146
    %v1148 = vpop.f32.mrb[0].mxu0
    %1149 = vdwg.mxu0
    %v1150 = vadd.f32 %v1049, %v1132
    %v1151 = vadd.f32 %v1050, %v1137
    %v1152 = vadd.f32 %v1051, %v1142
    %v1153 = vadd.f32 %v1052, %v1147
    %v1154 = vtanh.pop %v1150
    %v1155 = vtanh.pop %v1151
    %v1156 = vtanh.pop %v1152
    %v1157 = vtanh.pop %v1153
    %s1158 = scalar_lea.vmem [#allocation4], 288
    %v1159 = vld [vmem:[%s1158] sm:$0xff]
    %v1160 = vld [vmem:[%s1158 + $0x8] sm:$0xff]
    %v1161 = vld [vmem:[%s1158 + $0x10] sm:$0xff]
    %v1162 = vld [vmem:[%s1158 + $0x18] sm:$0xff]
    %1163 = vmatprep.subr.mxu0 0.0
    %1164 = vmatpush1.msra.mxu0 %v66
    %1165 = vmatprep.subr.mxu0 0.0
    %1166 = vmatpush1.msra.mxu0 %v67
    %1167 = vmatprep.subr.mxu0 0.0
    %1168 = vmatpush1.msra.mxu0 %v68
    %1169 = vmatprep.subr.mxu0 0.0
    %1170 = vmatpush1.msra.mxu0 %v69
    %1171 = vmatprep.subr.mxu0 0.0
    %1172 = vmatpush1.msra.mxu0 0.0
    %1173 = vmatprep.subr.mxu0 0.0
    %1174 = vmatpush1.msra.mxu0 0.0
    %1175 = vmatprep.subr.mxu0 0.0
    %1176 = vmatpush1.msra.mxu0 0.0
    %1177 = vmatprep.subr.mxu0 0.0
    %1178 = vmatpush1.msra.mxu0 0.0
    %1179 = vmatprep.subr.mxu0 0.0
    %1180 = vmatpush1.msra.mxu0 0.0
    %1181 = vmatprep.subr.mxu0 0.0
    %1182 = vmatpush1.msra.mxu0 0.0
    %1183 = vmatprep.subr.mxu0 0.0
    %1184 = vmatpush1.msra.mxu0 0.0
    %1185 = vmatprep.subr.mxu0 0.0
    %1186 = vmatpush1.msra.mxu0 0.0
    %1187 = vmatprep.subr.mxu0 0.0
    %1188 = vmatpush1.msra.mxu0 0.0
    %1189 = vmatprep.subr.mxu0 0.0
    %1190 = vmatpush1.msra.mxu0 0.0
    %1191 = vmatprep.subr.mxu0 0.0
    %1192 = vmatpush1.msra.mxu0 0.0
    %1193 = vmatprep.subr.mxu0 0.0
    %1194 = vmatpush1.msra.mxu0 0.0
    %1195 = vmatprep.subr.mxu0 0.0
    %1196 = vmatpush1.msra.mxu0 0.0
    %1197 = vmatprep.subr.mxu0 0.0
    %1198 = vmatpush1.msra.mxu0 0.0
    %1199 = vmatprep.subr.mxu0 0.0
    %1200 = vmatpush1.msra.mxu0 0.0
    %1201 = vmatprep.subr.mxu0 0.0
    %1202 = vmatpush1.msra.mxu0 0.0
    %1203 = vmatprep.subr.mxu0 0.0
    %1204 = vmatpush1.msra.mxu0 0.0
    %1205 = vmatprep.subr.mxu0 0.0
    %1206 = vmatpush1.msra.mxu0 0.0
    %1207 = vmatprep.subr.mxu0 0.0
    %1208 = vmatpush1.msra.mxu0 0.0
    %1209 = vmatprep.subr.mxu0 0.0
    %1210 = vmatpush1.msra.mxu0 0.0
    %1211 = vmatprep.subr.mxu0 0.0
    %1212 = vmatpush1.msra.mxu0 0.0
    %1213 = vmatprep.subr.mxu0 0.0
    %1214 = vmatpush1.msra.mxu0 0.0
    %1215 = vmatprep.subr.mxu0 0.0
    %1216 = vmatpush1.msra.mxu0 0.0
    %1217 = vmatprep.subr.mxu0 0.0
    %1218 = vmatpush1.msra.mxu0 0.0
    %1219 = vmatprep.subr.mxu0 0.0
    %1220 = vmatpush1.msra.mxu0 0.0
    %1221 = vmatprep.subr.mxu0 0.0
    %1222 = vmatpush1.msra.mxu0 0.0
    %1223 = vmatprep.subr.mxu0 0.0
    %1224 = vmatpush1.msra.mxu0 0.0
    %1225 = vmatprep.subr.mxu0 0.0
    %1226 = vmatpush1.msra.mxu0 0.0
    %1227 = vmatprep.mubr.f32.mxu0 0.0
    %1228 = vmatmul.mubr.f32.gmra.mrb[0].mxu0 %v1054
    %v1229 = vpop.f32.mrb[0].mxu0
    %v1230 = vadd.f32 0.0, %v1229
    %v1231 = vpop.f32.mrb[0].mxu0
    %1232 = vmatprep.mubr.f32.mxu0 0.0
    %1233 = vmatmul.mubr.f32.gmra.mrb[0].mxu0 %v1057
    %v1234 = vpop.f32.mrb[0].mxu0
    %v1235 = vadd.f32 0.0, %v1234
    %v1236 = vpop.f32.mrb[0].mxu0
    %1237 = vmatprep.mubr.f32.mxu0 0.0
    %1238 = vmatmul.mubr.f32.gmra.mrb[0].mxu0 %v1060
    %v1239 = vpop.f32.mrb[0].mxu0
    %v1240 = vadd.f32 0.0, %v1239
    %v1241 = vpop.f32.mrb[0].mxu0
    %1242 = vmatprep.mubr.f32.mxu0 0.0
    %1243 = vmatmul.mubr.f32.gmra.mrb[0].mxu0 %v1063
    %v1244 = vpop.f32.mrb[0].mxu0
    %v1245 = vadd.f32 0.0, %v1244
    %v1246 = vpop.f32.mrb[0].mxu0
    %1247 = vdwg.mxu0
    %v1248 = vadd.f32 %v1159, %v1230
    %v1249 = vadd.f32 %v1160, %v1235
    %v1250 = vadd.f32 %v1161, %v1240
    %v1251 = vadd.f32 %v1162, %v1245
    %v1252 = vxor.u32 %v1248, 2147483648
    %v1253 = vxor.u32 %v1249, 2147483648
    %v1254 = vxor.u32 %v1250, 2147483648
    %v1255 = vxor.u32 %v1251, 2147483648
    %v1256 = vmul.f32 %v1252, 1.442695
    %v1257 = vpow.pop %v1256
    %v1258 = vmul.f32 %v1253, 1.442695
    %v1259 = vpow.pop %v1258
    %v1260 = vmul.f32 %v1254, 1.442695
    %v1261 = vpow.pop %v1260
    %v1262 = vmul.f32 %v1255, 1.442695
    %v1263 = vpow.pop %v1262
    %v1264 = vadd.f32 %v1257, 1.0
    %v1265 = vadd.f32 %v1259, 1.0
    %v1266 = vadd.f32 %v1261, 1.0
    %v1267 = vadd.f32 %v1263, 1.0
    %v1268 = vrcp.pop %v1264
    %v1269 = vmul.f32 1.0, %v1268
    %v1270 = vrcp.pop %v1265
    %v1271 = vmul.f32 1.0, %v1270
    %v1272 = vrcp.pop %v1266
    %v1273 = vmul.f32 1.0, %v1272
    %v1274 = vrcp.pop %v1267
    %v1275 = vmul.f32 1.0, %v1274
    %s1276 = scalar_lea.vmem [#allocation4], 320
    %v1277 = vld [vmem:[%s1276] sm:$0xff]
    %v1278 = vld [vmem:[%s1276 + $0x8] sm:$0xff]
    %v1279 = vld [vmem:[%s1276 + $0x10] sm:$0xff]
    %v1280 = vld [vmem:[%s1276 + $0x18] sm:$0xff]
    %1281 = vmatprep.subr.mxu0 0.0
    %1282 = vmatpush1.msra.mxu0 %v71
    %1283 = vmatprep.subr.mxu0 0.0
    %1284 = vmatpush1.msra.mxu0 %v72
    %1285 = vmatprep.subr.mxu0 0.0
    %1286 = vmatpush1.msra.mxu0 %v73
    %1287 = vmatprep.subr.mxu0 0.0
    %1288 = vmatpush1.msra.mxu0 %v74
    %1289 = vmatprep.subr.mxu0 0.0
    %1290 = vmatpush1.msra.mxu0 0.0
    %1291 = vmatprep.subr.mxu0 0.0
    %1292 = vmatpush1.msra.mxu0 0.0
    %1293 = vmatprep.subr.mxu0 0.0
    %1294 = vmatpush1.msra.mxu0 0.0
    %1295 = vmatprep.subr.mxu0 0.0
    %1296 = vmatpush1.msra.mxu0 0.0
    %1297 = vmatprep.subr.mxu0 0.0
    %1298 = vmatpush1.msra.mxu0 0.0
    %1299 = vmatprep.subr.mxu0 0.0
    %1300 = vmatpush1.msra.mxu0 0.0
    %1301 = vmatprep.subr.mxu0 0.0
    %1302 = vmatpush1.msra.mxu0 0.0
    %1303 = vmatprep.subr.mxu0 0.0
    %1304 = vmatpush1.msra.mxu0 0.0
    %1305 = vmatprep.subr.mxu0 0.0
    %1306 = vmatpush1.msra.mxu0 0.0
    %1307 = vmatprep.subr.mxu0 0.0
    %1308 = vmatpush1.msra.mxu0 0.0
    %1309 = vmatprep.subr.mxu0 0.0
    %1310 = vmatpush1.msra.mxu0 0.0
    %1311 = vmatprep.subr.mxu0 0.0
    %1312 = vmatpush1.msra.mxu0 0.0
    %1313 = vmatprep.subr.mxu0 0.0
    %1314 = vmatpush1.msra.mxu0 0.0
    %1315 = vmatprep.subr.mxu0 0.0
    %1316 = vmatpush1.msra.mxu0 0.0
    %1317 = vmatprep.subr.mxu0 0.0
    %1318 = vmatpush1.msra.mxu0 0.0
    %1319 = vmatprep.subr.mxu0 0.0
    %1320 = vmatpush1.msra.mxu0 0.0
    %1321 = vmatprep.subr.mxu0 0.0
    %1322 = vmatpush1.msra.mxu0 0.0
    %1323 = vmatprep.subr.mxu0 0.0
    %1324 = vmatpush1.msra.mxu0 0.0
    %1325 = vmatprep.subr.mxu0 0.0
    %1326 = vmatpush1.msra.mxu0 0.0
    %1327 = vmatprep.subr.mxu0 0.0
    %1328 = vmatpush1.msra.mxu0 0.0
    %1329 = vmatprep.subr.mxu0 0.0
    %1330 = vmatpush1.msra.mxu0 0.0
    %1331 = vmatprep.subr.mxu0 0.0
    %1332 = vmatpush1.msra.mxu0 0.0
    %1333 = vmatprep.subr.mxu0 0.0
    %1334 = vmatpush1.msra.mxu0 0.0
    %1335 = vmatprep.subr.mxu0 0.0
    %1336 = vmatpush1.msra.mxu0 0.0
    %1337 = vmatprep.subr.mxu0 0.0
    %1338 = vmatpush1.msra.mxu0 0.0
    %1339 = vmatprep.subr.mxu0 0.0
    %1340 = vmatpush1.msra.mxu0 0.0
    %1341 = vmatprep.subr.mxu0 0.0
    %1342 = vmatpush1.msra.mxu0 0.0
    %1343 = vmatprep.subr.mxu0 0.0
    %1344 = vmatpush1.msra.mxu0 0.0
    %1345 = vmatprep.mubr.f32.mxu0 0.0
    %1346 = vmatmul.mubr.f32.gmra.mrb[0].mxu0 %v1054
    %v1347 = vpop.f32.mrb[0].mxu0
    %v1348 = vadd.f32 0.0, %v1347
    %v1349 = vpop.f32.mrb[0].mxu0
    %1350 = vmatprep.mubr.f32.mxu0 0.0
    %1351 = vmatmul.mubr.f32.gmra.mrb[0].mxu0 %v1057
    %v1352 = vpop.f32.mrb[0].mxu0
    %v1353 = vadd.f32 0.0, %v1352
    %v1354 = vpop.f32.mrb[0].mxu0
    %1355 = vmatprep.mubr.f32.mxu0 0.0
    %1356 = vmatmul.mubr.f32.gmra.mrb[0].mxu0 %v1060
    %v1357 = vpop.f32.mrb[0].mxu0
    %v1358 = vadd.f32 0.0, %v1357
    %v1359 = vpop.f32.mrb[0].mxu0
    %1360 = vmatprep.mubr.f32.mxu0 0.0
    %1361 = vmatmul.mubr.f32.gmra.mrb[0].mxu0 %v1063
    %v1362 = vpop.f32.mrb[0].mxu0
    %v1363 = vadd.f32 0.0, %v1362
    %v1364 = vpop.f32.mrb[0].mxu0
    %1365 = vdwg.mxu0
    %v1366 = vadd.f32 %v1277, %v1348
    %v1367 = vadd.f32 %v1278, %v1353
    %v1368 = vadd.f32 %v1279, %v1358
    %v1369 = vadd.f32 %v1280, %v1363
    %v1370 = vxor.u32 %v1366, 2147483648
    %v1371 = vxor.u32 %v1367, 2147483648
    %v1372 = vxor.u32 %v1368, 2147483648
    %v1373 = vxor.u32 %v1369, 2147483648
    %v1374 = vmul.f32 %v1370, 1.442695
    %v1375 = vpow.pop %v1374
    %v1376 = vmul.f32 %v1371, 1.442695
    %v1377 = vpow.pop %v1376
    %v1378 = vmul.f32 %v1372, 1.442695
    %v1379 = vpow.pop %v1378
    %v1380 = vmul.f32 %v1373, 1.442695
    %v1381 = vpow.pop %v1380
    %v1382 = vadd.f32 %v1375, 1.0
    %v1383 = vadd.f32 %v1377, 1.0
    %v1384 = vadd.f32 %v1379, 1.0
    %v1385 = vadd.f32 %v1381, 1.0
    %v1386 = vrcp.pop %v1382
    %v1387 = vmul.f32 1.0, %v1386
    %v1388 = vrcp.pop %v1383
    %v1389 = vmul.f32 1.0, %v1388
    %v1390 = vrcp.pop %v1384
    %v1391 = vmul.f32 1.0, %v1390
    %v1392 = vrcp.pop %v1385
    %v1393 = vmul.f32 1.0, %v1392
    %s1394 = scalar_lea.vmem [#allocation4], 352
    %v1395 = vld [vmem:[%s1394] sm:$0xff]
    %v1396 = vld [vmem:[%s1394 + $0x8] sm:$0xff]
    %v1397 = vld [vmem:[%s1394 + $0x10] sm:$0xff]
    %v1398 = vld [vmem:[%s1394 + $0x18] sm:$0xff]
    %1399 = vmatprep.subr.mxu0 0.0
    %1400 = vmatpush1.msra.mxu0 %v76
    %1401 = vmatprep.subr.mxu0 0.0
    %1402 = vmatpush1.msra.mxu0 %v77
    %1403 = vmatprep.subr.mxu0 0.0
    %1404 = vmatpush1.msra.mxu0 %v78
    %1405 = vmatprep.subr.mxu0 0.0
    %1406 = vmatpush1.msra.mxu0 %v79
    %1407 = vmatprep.subr.mxu0 0.0
    %1408 = vmatpush1.msra.mxu0 0.0
    %1409 = vmatprep.subr.mxu0 0.0
    %1410 = vmatpush1.msra.mxu0 0.0
    %1411 = vmatprep.subr.mxu0 0.0
    %1412 = vmatpush1.msra.mxu0 0.0
    %1413 = vmatprep.subr.mxu0 0.0
    %1414 = vmatpush1.msra.mxu0 0.0
    %1415 = vmatprep.subr.mxu0 0.0
    %1416 = vmatpush1.msra.mxu0 0.0
    %1417 = vmatprep.subr.mxu0 0.0
    %1418 = vmatpush1.msra.mxu0 0.0
    %1419 = vmatprep.subr.mxu0 0.0
    %1420 = vmatpush1.msra.mxu0 0.0
    %1421 = vmatprep.subr.mxu0 0.0
    %1422 = vmatpush1.msra.mxu0 0.0
    %1423 = vmatprep.subr.mxu0 0.0
    %1424 = vmatpush1.msra.mxu0 0.0
    %1425 = vmatprep.subr.mxu0 0.0
    %1426 = vmatpush1.msra.mxu0 0.0
    %1427 = vmatprep.subr.mxu0 0.0
    %1428 = vmatpush1.msra.mxu0 0.0
    %1429 = vmatprep.subr.mxu0 0.0
    %1430 = vmatpush1.msra.mxu0 0.0
    %1431 = vmatprep.subr.mxu0 0.0
    %1432 = vmatpush1.msra.mxu0 0.0
    %1433 = vmatprep.subr.mxu0 0.0
    %1434 = vmatpush1.msra.mxu0 0.0
    %1435 = vmatprep.subr.mxu0 0.0
    %1436 = vmatpush1.msra.mxu0 0.0
    %1437 = vmatprep.subr.mxu0 0.0
    %1438 = vmatpush1.msra.mxu0 0.0
    %1439 = vmatprep.subr.mxu0 0.0
    %1440 = vmatpush1.msra.mxu0 0.0
    %1441 = vmatprep.subr.mxu0 0.0
    %1442 = vmatpush1.msra.mxu0 0.0
    %1443 = vmatprep.subr.mxu0 0.0
    %1444 = vmatpush1.msra.mxu0 0.0
    %1445 = vmatprep.subr.mxu0 0.0
    %1446 = vmatpush1.msra.mxu0 0.0
    %1447 = vmatprep.subr.mxu0 0.0
    %1448 = vmatpush1.msra.mxu0 0.0
    %1449 = vmatprep.subr.mxu0 0.0
    %1450 = vmatpush1.msra.mxu0 0.0
    %1451 = vmatprep.subr.mxu0 0.0
    %1452 = vmatpush1.msra.mxu0 0.0
    %1453 = vmatprep.subr.mxu0 0.0
    %1454 = vmatpush1.msra.mxu0 0.0
    %1455 = vmatprep.subr.mxu0 0.0
    %1456 = vmatpush1.msra.mxu0 0.0
    %1457 = vmatprep.subr.mxu0 0.0
    %1458 = vmatpush1.msra.mxu0 0.0
    %1459 = vmatprep.subr.mxu0 0.0
    %1460 = vmatpush1.msra.mxu0 0.0
    %1461 = vmatprep.subr.mxu0 0.0
    %1462 = vmatpush1.msra.mxu0 0.0
    %1463 = vmatprep.mubr.f32.mxu0 0.0
    %1464 = vmatmul.mubr.f32.gmra.mrb[0].mxu0 %v1054
    %v1465 = vpop.f32.mrb[0].mxu0
    %v1466 = vadd.f32 0.0, %v1465
    %v1467 = vpop.f32.mrb[0].mxu0
    %1468 = vmatprep.mubr.f32.mxu0 0.0
    %1469 = vmatmul.mubr.f32.gmra.mrb[0].mxu0 %v1057
    %v1470 = vpop.f32.mrb[0].mxu0
    %v1471 = vadd.f32 0.0, %v1470
    %v1472 = vpop.f32.mrb[0].mxu0
    %1473 = vmatprep.mubr.f32.mxu0 0.0
    %1474 = vmatmul.mubr.f32.gmra.mrb[0].mxu0 %v1060
    %v1475 = vpop.f32.mrb[0].mxu0
    %v1476 = vadd.f32 0.0, %v1475
    %v1477 = vpop.f32.mrb[0].mxu0
    %1478 = vmatprep.mubr.f32.mxu0 0.0
    %1479 = vmatmul.mubr.f32.gmra.mrb[0].mxu0 %v1063
    %v1480 = vpop.f32.mrb[0].mxu0
    %v1481 = vadd.f32 0.0, %v1480
    %v1482 = vpop.f32.mrb[0].mxu0
    %1483 = vdwg.mxu0
    %v1484 = vadd.f32 %v1395, %v1466
    %v1485 = vadd.f32 %v1396, %v1471
    %v1486 = vadd.f32 %v1397, %v1476
    %v1487 = vadd.f32 %v1398, %v1481
    %v1488 = vxor.u32 %v1484, 2147483648
    %v1489 = vxor.u32 %v1485, 2147483648
    %v1490 = vxor.u32 %v1486, 2147483648
    %v1491 = vxor.u32 %v1487, 2147483648
    %v1492 = vmul.f32 %v1488, 1.442695
    %v1493 = vpow.pop %v1492
    %v1494 = vmul.f32 %v1489, 1.442695
    %v1495 = vpow.pop %v1494
    %v1496 = vmul.f32 %v1490, 1.442695
    %v1497 = vpow.pop %v1496
    %v1498 = vmul.f32 %v1491, 1.442695
    %v1499 = vpow.pop %v1498
    %v1500 = vadd.f32 %v1493, 1.0
    %v1501 = vadd.f32 %v1495, 1.0
    %v1502 = vadd.f32 %v1497, 1.0
    %v1503 = vadd.f32 %v1499, 1.0
    %v1504 = vrcp.pop %v1500
    %v1505 = vmul.f32 1.0, %v1504
    %v1506 = vrcp.pop %v1501
    %v1507 = vmul.f32 1.0, %v1506
    %v1508 = vrcp.pop %v1502
    %v1509 = vmul.f32 1.0, %v1508
    %v1510 = vrcp.pop %v1503
    %v1511 = vmul.f32 1.0, %v1510
    %v1512 = vmul.f32 %v1154, %v1269
    %v1513 = vmul.f32 %v1155, %v1271
    %v1514 = vmul.f32 %v1156, %v1273
    %v1515 = vmul.f32 %v1157, %v1275
    %v1516 = vmul.f32 %v1036, %v1387
    %v1517 = vmul.f32 %v1037, %v1389
    %v1518 = vmul.f32 %v1038, %v1391
    %v1519 = vmul.f32 %v1039, %v1393
    %v1520 = vadd.f32 %v1512, %v1516
    %v1521 = vadd.f32 %v1513, %v1517
    %v1522 = vadd.f32 %v1514, %v1518
    %v1523 = vadd.f32 %v1515, %v1519
    %v1524 = vtanh.pop %v1520
    %v1525 = vtanh.pop %v1521
    %v1526 = vtanh.pop %v1522
    %v1527 = vtanh.pop %v1523
    %v1528 = vmul.f32 %v1524, %v1505
    %v1529 = vmul.f32 %v1525, %v1507
    %v1530 = vmul.f32 %v1526, %v1509
    %v1531 = vmul.f32 %v1527, %v1511
    %s1532 = scalar_lea.vmem [#allocation4], 384
    %v1533 = vld [vmem:[%s1532] sm:$0xff]
    %v1534 = vld [vmem:[%s1532 + $0x8] sm:$0xff]
    %v1535 = vld [vmem:[%s1532 + $0x10] sm:$0xff]
    %v1536 = vld [vmem:[%s1532 + $0x18] sm:$0xff]
    %v1538 = vsel %vm84, %v1528, 0
    %v1541 = vsel %vm84, %v1529, 0
    %v1544 = vsel %vm84, %v1530, 0
    %v1547 = vsel %vm84, %v1531, 0
    %1549 = vmatprep.subr.mxu0 0.0
    %1550 = vmatpush1.msra.mxu0 %v61
    %1551 = vmatprep.subr.mxu0 0.0
    %1552 = vmatpush1.msra.mxu0 %v62
    %1553 = vmatprep.subr.mxu0 0.0
    %1554 = vmatpush1.msra.mxu0 %v63
    %1555 = vmatprep.subr.mxu0 0.0
    %1556 = vmatpush1.msra.mxu0 %v64
    %1557 = vmatprep.subr.mxu0 0.0
    %1558 = vmatpush1.msra.mxu0 0.0
    %1559 = vmatprep.subr.mxu0 0.0
    %1560 = vmatpush1.msra.mxu0 0.0
    %1561 = vmatprep.subr.mxu0 0.0
    %1562 = vmatpush1.msra.mxu0 0.0
    %1563 = vmatprep.subr.mxu0 0.0
    %1564 = vmatpush1.msra.mxu0 0.0
    %1565 = vmatprep.subr.mxu0 0.0
    %1566 = vmatpush1.msra.mxu0 0.0
    %1567 = vmatprep.subr.mxu0 0.0
    %1568 = vmatpush1.msra.mxu0 0.0
    %1569 = vmatprep.subr.mxu0 0.0
    %1570 = vmatpush1.msra.mxu0 0.0
    %1571 = vmatprep.subr.mxu0 0.0
    %1572 = vmatpush1.msra.mxu0 0.0
    %1573 = vmatprep.subr.mxu0 0.0
    %1574 = vmatpush1.msra.mxu0 0.0
    %1575 = vmatprep.subr.mxu0 0.0
    %1576 = vmatpush1.msra.mxu0 0.0
    %1577 = vmatprep.subr.mxu0 0.0
    %1578 = vmatpush1.msra.mxu0 0.0
    %1579 = vmatprep.subr.mxu0 0.0
    %1580 = vmatpush1.msra.mxu0 0.0
    %1581 = vmatprep.subr.mxu0 0.0
    %1582 = vmatpush1.msra.mxu0 0.0
    %1583 = vmatprep.subr.mxu0 0.0
    %1584 = vmatpush1.msra.mxu0 0.0
    %1585 = vmatprep.subr.mxu0 0.0
    %1586 = vmatpush1.msra.mxu0 0.0
    %1587 = vmatprep.subr.mxu0 0.0
    %1588 = vmatpush1.msra.mxu0 0.0
    %1589 = vmatprep.subr.mxu0 0.0
    %1590 = vmatpush1.msra.mxu0 0.0
    %1591 = vmatprep.subr.mxu0 0.0
    %1592 = vmatpush1.msra.mxu0 0.0
    %1593 = vmatprep.subr.mxu0 0.0
    %1594 = vmatpush1.msra.mxu0 0.0
    %1595 = vmatprep.subr.mxu0 0.0
    %1596 = vmatpush1.msra.mxu0 0.0
    %1597 = vmatprep.subr.mxu0 0.0
    %1598 = vmatpush1.msra.mxu0 0.0
    %1599 = vmatprep.subr.mxu0 0.0
    %1600 = vmatpush1.msra.mxu0 0.0
    %1601 = vmatprep.subr.mxu0 0.0
    %1602 = vmatpush1.msra.mxu0 0.0
    %1603 = vmatprep.subr.mxu0 0.0
    %1604 = vmatpush1.msra.mxu0 0.0
    %1605 = vmatprep.subr.mxu0 0.0
    %1606 = vmatpush1.msra.mxu0 0.0
    %1607 = vmatprep.subr.mxu0 0.0
    %1608 = vmatpush1.msra.mxu0 0.0
    %1609 = vmatprep.subr.mxu0 0.0
    %1610 = vmatpush1.msra.mxu0 0.0
    %1611 = vmatprep.subr.mxu0 0.0
    %1612 = vmatpush1.msra.mxu0 0.0
    %1613 = vmatprep.mubr.f32.mxu0 0.0
    %1614 = vmatmul.mubr.f32.gmra.mrb[0].mxu0 %v1538
    %v1615 = vpop.f32.mrb[0].mxu0
    %v1616 = vadd.f32 0.0, %v1615
    %v1617 = vpop.f32.mrb[0].mxu0
    %1618 = vmatprep.mubr.f32.mxu0 0.0
    %1619 = vmatmul.mubr.f32.gmra.mrb[0].mxu0 %v1541
    %v1620 = vpop.f32.mrb[0].mxu0
    %v1621 = vadd.f32 0.0, %v1620
    %v1622 = vpop.f32.mrb[0].mxu0
    %1623 = vmatprep.mubr.f32.mxu0 0.0
    %1624 = vmatmul.mubr.f32.gmra.mrb[0].mxu0 %v1544
    %v1625 = vpop.f32.mrb[0].mxu0
    %v1626 = vadd.f32 0.0, %v1625
    %v1627 = vpop.f32.mrb[0].mxu0
    %1628 = vmatprep.mubr.f32.mxu0 0.0
    %1629 = vmatmul.mubr.f32.gmra.mrb[0].mxu0 %v1547
    %v1630 = vpop.f32.mrb[0].mxu0
    %v1631 = vadd.f32 0.0, %v1630
    %v1632 = vpop.f32.mrb[0].mxu0
    %1633 = vdwg.mxu0
    %v1634 = vadd.f32 %v1533, %v1616
    %v1635 = vadd.f32 %v1534, %v1621
    %v1636 = vadd.f32 %v1535, %v1626
    %v1637 = vadd.f32 %v1536, %v1631
    %v1638 = vtanh.pop %v1634
    %v1639 = vtanh.pop %v1635
    %v1640 = vtanh.pop %v1636
    %v1641 = vtanh.pop %v1637
    %s1642 = scalar_lea.vmem [#allocation4], 416
    %v1643 = vld [vmem:[%s1642] sm:$0xff]
    %v1644 = vld [vmem:[%s1642 + $0x8] sm:$0xff]
    %v1645 = vld [vmem:[%s1642 + $0x10] sm:$0xff]
    %v1646 = vld [vmem:[%s1642 + $0x18] sm:$0xff]
    %1647 = vmatprep.subr.mxu0 0.0
    %1648 = vmatpush1.msra.mxu0 %v66
    %1649 = vmatprep.subr.mxu0 0.0
    %1650 = vmatpush1.msra.mxu0 %v67
    %1651 = vmatprep.subr.mxu0 0.0
    %1652 = vmatpush1.msra.mxu0 %v68
    %1653 = vmatprep.subr.mxu0 0.0
    %1654 = vmatpush1.msra.mxu0 %v69
    %1655 = vmatprep.subr.mxu0 0.0
    %1656 = vmatpush1.msra.mxu0 0.0
    %1657 = vmatprep.subr.mxu0 0.0
    %1658 = vmatpush1.msra.mxu0 0.0
    %1659 = vmatprep.subr.mxu0 0.0
    %1660 = vmatpush1.msra.mxu0 0.0
    %1661 = vmatprep.subr.mxu0 0.0
    %1662 = vmatpush1.msra.mxu0 0.0
    %1663 = vmatprep.subr.mxu0 0.0
    %1664 = vmatpush1.msra.mxu0 0.0
    %1665 = vmatprep.subr.mxu0 0.0
    %1666 = vmatpush1.msra.mxu0 0.0
    %1667 = vmatprep.subr.mxu0 0.0
    %1668 = vmatpush1.msra.mxu0 0.0
    %1669 = vmatprep.subr.mxu0 0.0
    %1670 = vmatpush1.msra.mxu0 0.0
    %1671 = vmatprep.subr.mxu0 0.0
    %1672 = vmatpush1.msra.mxu0 0.0
    %1673 = vmatprep.subr.mxu0 0.0
    %1674 = vmatpush1.msra.mxu0 0.0
    %1675 = vmatprep.subr.mxu0 0.0
    %1676 = vmatpush1.msra.mxu0 0.0
    %1677 = vmatprep.subr.mxu0 0.0
    %1678 = vmatpush1.msra.mxu0 0.0
    %1679 = vmatprep.subr.mxu0 0.0
    %1680 = vmatpush1.msra.mxu0 0.0
    %1681 = vmatprep.subr.mxu0 0.0
    %1682 = vmatpush1.msra.mxu0 0.0
    %1683 = vmatprep.subr.mxu0 0.0
    %1684 = vmatpush1.msra.mxu0 0.0
    %1685 = vmatprep.subr.mxu0 0.0
    %1686 = vmatpush1.msra.mxu0 0.0
    %1687 = vmatprep.subr.mxu0 0.0
    %1688 = vmatpush1.msra.mxu0 0.0
    %1689 = vmatprep.subr.mxu0 0.0
    %1690 = vmatpush1.msra.mxu0 0.0
    %1691 = vmatprep.subr.mxu0 0.0
    %1692 = vmatpush1.msra.mxu0 0.0
    %1693 = vmatprep.subr.mxu0 0.0
    %1694 = vmatpush1.msra.mxu0 0.0
    %1695 = vmatprep.subr.mxu0 0.0
    %1696 = vmatpush1.msra.mxu0 0.0
    %1697 = vmatprep.subr.mxu0 0.0
    %1698 = vmatpush1.msra.mxu0 0.0
    %1699 = vmatprep.subr.mxu0 0.0
    %1700 = vmatpush1.msra.mxu0 0.0
    %1701 = vmatprep.subr.mxu0 0.0
    %1702 = vmatpush1.msra.mxu0 0.0
    %1703 = vmatprep.subr.mxu0 0.0
    %1704 = vmatpush1.msra.mxu0 0.0
    %1705 = vmatprep.subr.mxu0 0.0
    %1706 = vmatpush1.msra.mxu0 0.0
    %1707 = vmatprep.subr.mxu0 0.0
    %1708 = vmatpush1.msra.mxu0 0.0
    %1709 = vmatprep.subr.mxu0 0.0
    %1710 = vmatpush1.msra.mxu0 0.0
    %1711 = vmatprep.mubr.f32.mxu0 0.0
    %1712 = vmatmul.mubr.f32.gmra.mrb[0].mxu0 %v1538
    %v1713 = vpop.f32.mrb[0].mxu0
    %v1714 = vadd.f32 0.0, %v1713
    %v1715 = vpop.f32.mrb[0].mxu0
    %1716 = vmatprep.mubr.f32.mxu0 0.0
    %1717 = vmatmul.mubr.f32.gmra.mrb[0].mxu0 %v1541
    %v1718 = vpop.f32.mrb[0].mxu0
    %v1719 = vadd.f32 0.0, %v1718
    %v1720 = vpop.f32.mrb[0].mxu0
    %1721 = vmatprep.mubr.f32.mxu0 0.0
    %1722 = vmatmul.mubr.f32.gmra.mrb[0].mxu0 %v1544
    %v1723 = vpop.f32.mrb[0].mxu0
    %v1724 = vadd.f32 0.0, %v1723
    %v1725 = vpop.f32.mrb[0].mxu0
    %1726 = vmatprep.mubr.f32.mxu0 0.0
    %1727 = vmatmul.mubr.f32.gmra.mrb[0].mxu0 %v1547
    %v1728 = vpop.f32.mrb[0].mxu0
    %v1729 = vadd.f32 0.0, %v1728
    %v1730 = vpop.f32.mrb[0].mxu0
    %1731 = vdwg.mxu0
    %v1732 = vadd.f32 %v1643, %v1714
    %v1733 = vadd.f32 %v1644, %v1719
    %v1734 = vadd.f32 %v1645, %v1724
    %v1735 = vadd.f32 %v1646, %v1729
    %v1736 = vxor.u32 %v1732, 2147483648
    %v1737 = vxor.u32 %v1733, 2147483648
    %v1738 = vxor.u32 %v1734, 2147483648
    %v1739 = vxor.u32 %v1735, 2147483648
    %v1740 = vmul.f32 %v1736, 1.442695
    %v1741 = vpow.pop %v1740
    %v1742 = vmul.f32 %v1737, 1.442695
    %v1743 = vpow.pop %v1742
    %v1744 = vmul.f32 %v1738, 1.442695
    %v1745 = vpow.pop %v1744
    %v1746 = vmul.f32 %v1739, 1.442695
    %v1747 = vpow.pop %v1746
    %v1748 = vadd.f32 %v1741, 1.0
    %v1749 = vadd.f32 %v1743, 1.0
    %v1750 = vadd.f32 %v1745, 1.0
    %v1751 = vadd.f32 %v1747, 1.0
    %v1752 = vrcp.pop %v1748
    %v1753 = vmul.f32 1.0, %v1752
    %v1754 = vrcp.pop %v1749
    %v1755 = vmul.f32 1.0, %v1754
    %v1756 = vrcp.pop %v1750
    %v1757 = vmul.f32 1.0, %v1756
    %v1758 = vrcp.pop %v1751
    %v1759 = vmul.f32 1.0, %v1758
    %s1760 = scalar_lea.vmem [#allocation4], 448
    %v1761 = vld [vmem:[%s1760] sm:$0xff]
    %v1762 = vld [vmem:[%s1760 + $0x8] sm:$0xff]
    %v1763 = vld [vmem:[%s1760 + $0x10] sm:$0xff]
    %v1764 = vld [vmem:[%s1760 + $0x18] sm:$0xff]
    %1765 = vmatprep.subr.mxu0 0.0
    %1766 = vmatpush1.msra.mxu0 %v71
    %1767 = vmatprep.subr.mxu0 0.0
    %1768 = vmatpush1.msra.mxu0 %v72
    %1769 = vmatprep.subr.mxu0 0.0
    %1770 = vmatpush1.msra.mxu0 %v73
    %1771 = vmatprep.subr.mxu0 0.0
    %1772 = vmatpush1.msra.mxu0 %v74
    %1773 = vmatprep.subr.mxu0 0.0
    %1774 = vmatpush1.msra.mxu0 0.0
    %1775 = vmatprep.subr.mxu0 0.0
    %1776 = vmatpush1.msra.mxu0 0.0
    %1777 = vmatprep.subr.mxu0 0.0
    %1778 = vmatpush1.msra.mxu0 0.0
    %1779 = vmatprep.subr.mxu0 0.0
    %1780 = vmatpush1.msra.mxu0 0.0
    %1781 = vmatprep.subr.mxu0 0.0
    %1782 = vmatpush1.msra.mxu0 0.0
    %1783 = vmatprep.subr.mxu0 0.0
    %1784 = vmatpush1.msra.mxu0 0.0
    %1785 = vmatprep.subr.mxu0 0.0
    %1786 = vmatpush1.msra.mxu0 0.0
    %1787 = vmatprep.subr.mxu0 0.0
    %1788 = vmatpush1.msra.mxu0 0.0
    %1789 = vmatprep.subr.mxu0 0.0
    %1790 = vmatpush1.msra.mxu0 0.0
    %1791 = vmatprep.subr.mxu0 0.0
    %1792 = vmatpush1.msra.mxu0 0.0
    %1793 = vmatprep.subr.mxu0 0.0
    %1794 = vmatpush1.msra.mxu0 0.0
    %1795 = vmatprep.subr.mxu0 0.0
    %1796 = vmatpush1.msra.mxu0 0.0
    %1797 = vmatprep.subr.mxu0 0.0
    %1798 = vmatpush1.msra.mxu0 0.0
    %1799 = vmatprep.subr.mxu0 0.0
    %1800 = vmatpush1.msra.mxu0 0.0
    %1801 = vmatprep.subr.mxu0 0.0
    %1802 = vmatpush1.msra.mxu0 0.0
    %1803 = vmatprep.subr.mxu0 0.0
    %1804 = vmatpush1.msra.mxu0 0.0
    %1805 = vmatprep.subr.mxu0 0.0
    %1806 = vmatpush1.msra.mxu0 0.0
    %1807 = vmatprep.subr.mxu0 0.0
    %1808 = vmatpush1.msra.mxu0 0.0
    %1809 = vmatprep.subr.mxu0 0.0
    %1810 = vmatpush1.msra.mxu0 0.0
    %1811 = vmatprep.subr.mxu0 0.0
    %1812 = vmatpush1.msra.mxu0 0.0
    %1813 = vmatprep.subr.mxu0 0.0
    %1814 = vmatpush1.msra.mxu0 0.0
    %1815 = vmatprep.subr.mxu0 0.0
    %1816 = vmatpush1.msra.mxu0 0.0
    %1817 = vmatprep.subr.mxu0 0.0
    %1818 = vmatpush1.msra.mxu0 0.0
    %1819 = vmatprep.subr.mxu0 0.0
    %1820 = vmatpush1.msra.mxu0 0.0
    %1821 = vmatprep.subr.mxu0 0.0
    %1822 = vmatpush1.msra.mxu0 0.0
    %1823 = vmatprep.subr.mxu0 0.0
    %1824 = vmatpush1.msra.mxu0 0.0
    %1825 = vmatprep.subr.mxu0 0.0
    %1826 = vmatpush1.msra.mxu0 0.0
    %1827 = vmatprep.subr.mxu0 0.0
    %1828 = vmatpush1.msra.mxu0 0.0
    %1829 = vmatprep.mubr.f32.mxu0 0.0
    %1830 = vmatmul.mubr.f32.gmra.mrb[0].mxu0 %v1538
    %v1831 = vpop.f32.mrb[0].mxu0
    %v1832 = vadd.f32 0.0, %v1831
    %v1833 = vpop.f32.mrb[0].mxu0
    %1834 = vmatprep.mubr.f32.mxu0 0.0
    %1835 = vmatmul.mubr.f32.gmra.mrb[0].mxu0 %v1541
    %v1836 = vpop.f32.mrb[0].mxu0
    %v1837 = vadd.f32 0.0, %v1836
    %v1838 = vpop.f32.mrb[0].mxu0
    %1839 = vmatprep.mubr.f32.mxu0 0.0
    %1840 = vmatmul.mubr.f32.gmra.mrb[0].mxu0 %v1544
    %v1841 = vpop.f32.mrb[0].mxu0
    %v1842 = vadd.f32 0.0, %v1841
    %v1843 = vpop.f32.mrb[0].mxu0
    %1844 = vmatprep.mubr.f32.mxu0 0.0
    %1845 = vmatmul.mubr.f32.gmra.mrb[0].mxu0 %v1547
    %v1846 = vpop.f32.mrb[0].mxu0
    %v1847 = vadd.f32 0.0, %v1846
    %v1848 = vpop.f32.mrb[0].mxu0
    %1849 = vdwg.mxu0
    %v1850 = vadd.f32 %v1761, %v1832
    %v1851 = vadd.f32 %v1762, %v1837
    %v1852 = vadd.f32 %v1763, %v1842
    %v1853 = vadd.f32 %v1764, %v1847
    %v1854 = vxor.u32 %v1850, 2147483648
    %v1855 = vxor.u32 %v1851, 2147483648
    %v1856 = vxor.u32 %v1852, 2147483648
    %v1857 = vxor.u32 %v1853, 2147483648
    %v1858 = vmul.f32 %v1854, 1.442695
    %v1859 = vpow.pop %v1858
    %v1860 = vmul.f32 %v1855, 1.442695
    %v1861 = vpow.pop %v1860
    %v1862 = vmul.f32 %v1856, 1.442695
    %v1863 = vpow.pop %v1862
    %v1864 = vmul.f32 %v1857, 1.442695
    %v1865 = vpow.pop %v1864
    %v1866 = vadd.f32 %v1859, 1.0
    %v1867 = vadd.f32 %v1861, 1.0
    %v1868 = vadd.f32 %v1863, 1.0
    %v1869 = vadd.f32 %v1865, 1.0
    %v1870 = vrcp.pop %v1866
    %v1871 = vmul.f32 1.0, %v1870
    %v1872 = vrcp.pop %v1867
    %v1873 = vmul.f32 1.0, %v1872
    %v1874 = vrcp.pop %v1868
    %v1875 = vmul.f32 1.0, %v1874
    %v1876 = vrcp.pop %v1869
    %v1877 = vmul.f32 1.0, %v1876
    %s1878 = scalar_lea.vmem [#allocation4], 480
    %v1879 = vld [vmem:[%s1878] sm:$0xff]
    %v1880 = vld [vmem:[%s1878 + $0x8] sm:$0xff]
    %v1881 = vld [vmem:[%s1878 + $0x10] sm:$0xff]
    %v1882 = vld [vmem:[%s1878 + $0x18] sm:$0xff]
    %1883 = vmatprep.subr.mxu0 0.0
    %1884 = vmatpush1.msra.mxu0 %v76
    %1885 = vmatprep.subr.mxu0 0.0
    %1886 = vmatpush1.msra.mxu0 %v77
    %1887 = vmatprep.subr.mxu0 0.0
    %1888 = vmatpush1.msra.mxu0 %v78
    %1889 = vmatprep.subr.mxu0 0.0
    %1890 = vmatpush1.msra.mxu0 %v79
    %1891 = vmatprep.subr.mxu0 0.0
    %1892 = vmatpush1.msra.mxu0 0.0
    %1893 = vmatprep.subr.mxu0 0.0
    %1894 = vmatpush1.msra.mxu0 0.0
    %1895 = vmatprep.subr.mxu0 0.0
    %1896 = vmatpush1.msra.mxu0 0.0
    %1897 = vmatprep.subr.mxu0 0.0
    %1898 = vmatpush1.msra.mxu0 0.0
    %1899 = vmatprep.subr.mxu0 0.0
    %1900 = vmatpush1.msra.mxu0 0.0
    %1901 = vmatprep.subr.mxu0 0.0
    %1902 = vmatpush1.msra.mxu0 0.0
    %1903 = vmatprep.subr.mxu0 0.0
    %1904 = vmatpush1.msra.mxu0 0.0
    %1905 = vmatprep.subr.mxu0 0.0
    %1906 = vmatpush1.msra.mxu0 0.0
    %1907 = vmatprep.subr.mxu0 0.0
    %1908 = vmatpush1.msra.mxu0 0.0
    %1909 = vmatprep.subr.mxu0 0.0
    %1910 = vmatpush1.msra.mxu0 0.0
    %1911 = vmatprep.subr.mxu0 0.0
    %1912 = vmatpush1.msra.mxu0 0.0
    %1913 = vmatprep.subr.mxu0 0.0
    %1914 = vmatpush1.msra.mxu0 0.0
    %1915 = vmatprep.subr.mxu0 0.0
    %1916 = vmatpush1.msra.mxu0 0.0
    %1917 = vmatprep.subr.mxu0 0.0
    %1918 = vmatpush1.msra.mxu0 0.0
    %1919 = vmatprep.subr.mxu0 0.0
    %1920 = vmatpush1.msra.mxu0 0.0
    %1921 = vmatprep.subr.mxu0 0.0
    %1922 = vmatpush1.msra.mxu0 0.0
    %1923 = vmatprep.subr.mxu0 0.0
    %1924 = vmatpush1.msra.mxu0 0.0
    %1925 = vmatprep.subr.mxu0 0.0
    %1926 = vmatpush1.msra.mxu0 0.0
    %1927 = vmatprep.subr.mxu0 0.0
    %1928 = vmatpush1.msra.mxu0 0.0
    %1929 = vmatprep.subr.mxu0 0.0
    %1930 = vmatpush1.msra.mxu0 0.0
    %1931 = vmatprep.subr.mxu0 0.0
    %1932 = vmatpush1.msra.mxu0 0.0
    %1933 = vmatprep.subr.mxu0 0.0
    %1934 = vmatpush1.msra.mxu0 0.0
    %1935 = vmatprep.subr.mxu0 0.0
    %1936 = vmatpush1.msra.mxu0 0.0
    %1937 = vmatprep.subr.mxu0 0.0
    %1938 = vmatpush1.msra.mxu0 0.0
    %1939 = vmatprep.subr.mxu0 0.0
    %1940 = vmatpush1.msra.mxu0 0.0
    %1941 = vmatprep.subr.mxu0 0.0
    %1942 = vmatpush1.msra.mxu0 0.0
    %1943 = vmatprep.subr.mxu0 0.0
    %1944 = vmatpush1.msra.mxu0 0.0
    %1945 = vmatprep.subr.mxu0 0.0
    %1946 = vmatpush1.msra.mxu0 0.0
    %1947 = vmatprep.mubr.f32.mxu0 0.0
    %1948 = vmatmul.mubr.f32.gmra.mrb[0].mxu0 %v1538
    %v1949 = vpop.f32.mrb[0].mxu0
    %v1950 = vadd.f32 0.0, %v1949
    %v1951 = vpop.f32.mrb[0].mxu0
    %1952 = vmatprep.mubr.f32.mxu0 0.0
    %1953 = vmatmul.mubr.f32.gmra.mrb[0].mxu0 %v1541
    %v1954 = vpop.f32.mrb[0].mxu0
    %v1955 = vadd.f32 0.0, %v1954
    %v1956 = vpop.f32.mrb[0].mxu0
    %1957 = vmatprep.mubr.f32.mxu0 0.0
    %1958 = vmatmul.mubr.f32.gmra.mrb[0].mxu0 %v1544
    %v1959 = vpop.f32.mrb[0].mxu0
    %v1960 = vadd.f32 0.0, %v1959
    %v1961 = vpop.f32.mrb[0].mxu0
    %1962 = vmatprep.mubr.f32.mxu0 0.0
    %1963 = vmatmul.mubr.f32.gmra.mrb[0].mxu0 %v1547
    %v1964 = vpop.f32.mrb[0].mxu0
    %v1965 = vadd.f32 0.0, %v1964
    %v1966 = vpop.f32.mrb[0].mxu0
    %1967 = vdwg.mxu0
    %v1968 = vadd.f32 %v1879, %v1950
    %v1969 = vadd.f32 %v1880, %v1955
    %v1970 = vadd.f32 %v1881, %v1960
    %v1971 = vadd.f32 %v1882, %v1965
    %v1972 = vxor.u32 %v1968, 2147483648
    %v1973 = vxor.u32 %v1969, 2147483648
    %v1974 = vxor.u32 %v1970, 2147483648
    %v1975 = vxor.u32 %v1971, 2147483648
    %v1976 = vmul.f32 %v1972, 1.442695
    %v1977 = vpow.pop %v1976
    %v1978 = vmul.f32 %v1973, 1.442695
    %v1979 = vpow.pop %v1978
    %v1980 = vmul.f32 %v1974, 1.442695
    %v1981 = vpow.pop %v1980
    %v1982 = vmul.f32 %v1975, 1.442695
    %v1983 = vpow.pop %v1982
    %v1984 = vadd.f32 %v1977, 1.0
    %v1985 = vadd.f32 %v1979, 1.0
    %v1986 = vadd.f32 %v1981, 1.0
    %v1987 = vadd.f32 %v1983, 1.0
    %v1988 = vrcp.pop %v1984
    %v1989 = vmul.f32 1.0, %v1988
    %v1990 = vrcp.pop %v1985
    %v1991 = vmul.f32 1.0, %v1990
    %v1992 = vrcp.pop %v1986
    %v1993 = vmul.f32 1.0, %v1992
    %v1994 = vrcp.pop %v1987
    %v1995 = vmul.f32 1.0, %v1994
    %v1996 = vmul.f32 %v1638, %v1753
    %v1997 = vmul.f32 %v1639, %v1755
    %v1998 = vmul.f32 %v1640, %v1757
    %v1999 = vmul.f32 %v1641, %v1759
    %v2000 = vmul.f32 %v1520, %v1871
    %v2001 = vmul.f32 %v1521, %v1873
    %v2002 = vmul.f32 %v1522, %v1875
    %v2003 = vmul.f32 %v1523, %v1877
    %v2004 = vadd.f32 %v1996, %v2000
    %v2005 = vadd.f32 %v1997, %v2001
    %v2006 = vadd.f32 %v1998, %v2002
    %v2007 = vadd.f32 %v1999, %v2003
    %v2008 = vtanh.pop %v2004
    %v2009 = vtanh.pop %v2005
    %v2010 = vtanh.pop %v2006
    %v2011 = vtanh.pop %v2007
    %v2012 = vmul.f32 %v2008, %v1989
    %v2013 = vmul.f32 %v2009, %v1991
    %v2014 = vmul.f32 %v2010, %v1993
    %v2015 = vmul.f32 %v2011, %v1995
    %s2016 = scalar_lea.vmem [#allocation4], 512
    %v2017 = vld [vmem:[%s2016] sm:$0xff]
    %v2018 = vld [vmem:[%s2016 + $0x8] sm:$0xff]
    %v2019 = vld [vmem:[%s2016 + $0x10] sm:$0xff]
    %v2020 = vld [vmem:[%s2016 + $0x18] sm:$0xff]
    %v2022 = vsel %vm84, %v2012, 0
    %v2025 = vsel %vm84, %v2013, 0
    %v2028 = vsel %vm84, %v2014, 0
    %v2031 = vsel %vm84, %v2015, 0
    %2033 = vmatprep.subr.mxu0 0.0
    %2034 = vmatpush1.msra.mxu0 %v61
    %2035 = vmatprep.subr.mxu0 0.0
    %2036 = vmatpush1.msra.mxu0 %v62
    %2037 = vmatprep.subr.mxu0 0.0
    %2038 = vmatpush1.msra.mxu0 %v63
    %2039 = vmatprep.subr.mxu0 0.0
    %2040 = vmatpush1.msra.mxu0 %v64
    %2041 = vmatprep.subr.mxu0 0.0
    %2042 = vmatpush1.msra.mxu0 0.0
    %2043 = vmatprep.subr.mxu0 0.0
    %2044 = vmatpush1.msra.mxu0 0.0
    %2045 = vmatprep.subr.mxu0 0.0
    %2046 = vmatpush1.msra.mxu0 0.0
    %2047 = vmatprep.subr.mxu0 0.0
    %2048 = vmatpush1.msra.mxu0 0.0
    %2049 = vmatprep.subr.mxu0 0.0
    %2050 = vmatpush1.msra.mxu0 0.0
    %2051 = vmatprep.subr.mxu0 0.0
    %2052 = vmatpush1.msra.mxu0 0.0
    %2053 = vmatprep.subr.mxu0 0.0
    %2054 = vmatpush1.msra.mxu0 0.0
    %2055 = vmatprep.subr.mxu0 0.0
    %2056 = vmatpush1.msra.mxu0 0.0
    %2057 = vmatprep.subr.mxu0 0.0
    %2058 = vmatpush1.msra.mxu0 0.0
    %2059 = vmatprep.subr.mxu0 0.0
    %2060 = vmatpush1.msra.mxu0 0.0
    %2061 = vmatprep.subr.mxu0 0.0
    %2062 = vmatpush1.msra.mxu0 0.0
    %2063 = vmatprep.subr.mxu0 0.0
    %2064 = vmatpush1.msra.mxu0 0.0
    %2065 = vmatprep.subr.mxu0 0.0
    %2066 = vmatpush1.msra.mxu0 0.0
    %2067 = vmatprep.subr.mxu0 0.0
    %2068 = vmatpush1.msra.mxu0 0.0
    %2069 = vmatprep.subr.mxu0 0.0
    %2070 = vmatpush1.msra.mxu0 0.0
    %2071 = vmatprep.subr.mxu0 0.0
    %2072 = vmatpush1.msra.mxu0 0.0
    %2073 = vmatprep.subr.mxu0 0.0
    %2074 = vmatpush1.msra.mxu0 0.0
    %2075 = vmatprep.subr.mxu0 0.0
    %2076 = vmatpush1.msra.mxu0 0.0
    %2077 = vmatprep.subr.mxu0 0.0
    %2078 = vmatpush1.msra.mxu0 0.0
    %2079 = vmatprep.subr.mxu0 0.0
    %2080 = vmatpush1.msra.mxu0 0.0
    %2081 = vmatprep.subr.mxu0 0.0
    %2082 = vmatpush1.msra.mxu0 0.0
    %2083 = vmatprep.subr.mxu0 0.0
    %2084 = vmatpush1.msra.mxu0 0.0
    %2085 = vmatprep.subr.mxu0 0.0
    %2086 = vmatpush1.msra.mxu0 0.0
    %2087 = vmatprep.subr.mxu0 0.0
    %2088 = vmatpush1.msra.mxu0 0.0
    %2089 = vmatprep.subr.mxu0 0.0
    %2090 = vmatpush1.msra.mxu0 0.0
    %2091 = vmatprep.subr.mxu0 0.0
    %2092 = vmatpush1.msra.mxu0 0.0
    %2093 = vmatprep.subr.mxu0 0.0
    %2094 = vmatpush1.msra.mxu0 0.0
    %2095 = vmatprep.subr.mxu0 0.0
    %2096 = vmatpush1.msra.mxu0 0.0
    %2097 = vmatprep.mubr.f32.mxu0 0.0
    %2098 = vmatmul.mubr.f32.gmra.mrb[0].mxu0 %v2022
    %v2099 = vpop.f32.mrb[0].mxu0
    %v2100 = vadd.f32 0.0, %v2099
    %v2101 = vpop.f32.mrb[0].mxu0
    %2102 = vmatprep.mubr.f32.mxu0 0.0
    %2103 = vmatmul.mubr.f32.gmra.mrb[0].mxu0 %v2025
    %v2104 = vpop.f32.mrb[0].mxu0
    %v2105 = vadd.f32 0.0, %v2104
    %v2106 = vpop.f32.mrb[0].mxu0
    %2107 = vmatprep.mubr.f32.mxu0 0.0
    %2108 = vmatmul.mubr.f32.gmra.mrb[0].mxu0 %v2028
    %v2109 = vpop.f32.mrb[0].mxu0
    %v2110 = vadd.f32 0.0, %v2109
    %v2111 = vpop.f32.mrb[0].mxu0
    %2112 = vmatprep.mubr.f32.mxu0 0.0
    %2113 = vmatmul.mubr.f32.gmra.mrb[0].mxu0 %v2031
    %v2114 = vpop.f32.mrb[0].mxu0
    %v2115 = vadd.f32 0.0, %v2114
    %v2116 = vpop.f32.mrb[0].mxu0
    %2117 = vdwg.mxu0
    %v2118 = vadd.f32 %v2017, %v2100
    %v2119 = vadd.f32 %v2018, %v2105
    %v2120 = vadd.f32 %v2019, %v2110
    %v2121 = vadd.f32 %v2020, %v2115
    %v2122 = vtanh.pop %v2118
    %v2123 = vtanh.pop %v2119
    %v2124 = vtanh.pop %v2120
    %v2125 = vtanh.pop %v2121
    %s2126 = scalar_lea.vmem [#allocation4], 544
    %v2127 = vld [vmem:[%s2126] sm:$0xff]
    %v2128 = vld [vmem:[%s2126 + $0x8] sm:$0xff]
    %v2129 = vld [vmem:[%s2126 + $0x10] sm:$0xff]
    %v2130 = vld [vmem:[%s2126 + $0x18] sm:$0xff]
    %2131 = vmatprep.subr.mxu0 0.0
    %2132 = vmatpush1.msra.mxu0 %v66
    %2133 = vmatprep.subr.mxu0 0.0
    %2134 = vmatpush1.msra.mxu0 %v67
    %2135 = vmatprep.subr.mxu0 0.0
    %2136 = vmatpush1.msra.mxu0 %v68
    %2137 = vmatprep.subr.mxu0 0.0
    %2138 = vmatpush1.msra.mxu0 %v69
    %2139 = vmatprep.subr.mxu0 0.0
    %2140 = vmatpush1.msra.mxu0 0.0
    %2141 = vmatprep.subr.mxu0 0.0
    %2142 = vmatpush1.msra.mxu0 0.0
    %2143 = vmatprep.subr.mxu0 0.0
    %2144 = vmatpush1.msra.mxu0 0.0
    %2145 = vmatprep.subr.mxu0 0.0
    %2146 = vmatpush1.msra.mxu0 0.0
    %2147 = vmatprep.subr.mxu0 0.0
    %2148 = vmatpush1.msra.mxu0 0.0
    %2149 = vmatprep.subr.mxu0 0.0
    %2150 = vmatpush1.msra.mxu0 0.0
    %2151 = vmatprep.subr.mxu0 0.0
    %2152 = vmatpush1.msra.mxu0 0.0
    %2153 = vmatprep.subr.mxu0 0.0
    %2154 = vmatpush1.msra.mxu0 0.0
    %2155 = vmatprep.subr.mxu0 0.0
    %2156 = vmatpush1.msra.mxu0 0.0
    %2157 = vmatprep.subr.mxu0 0.0
    %2158 = vmatpush1.msra.mxu0 0.0
    %2159 = vmatprep.subr.mxu0 0.0
    %2160 = vmatpush1.msra.mxu0 0.0
    %2161 = vmatprep.subr.mxu0 0.0
    %2162 = vmatpush1.msra.mxu0 0.0
    %2163 = vmatprep.subr.mxu0 0.0
    %2164 = vmatpush1.msra.mxu0 0.0
    %2165 = vmatprep.subr.mxu0 0.0
    %2166 = vmatpush1.msra.mxu0 0.0
    %2167 = vmatprep.subr.mxu0 0.0
    %2168 = vmatpush1.msra.mxu0 0.0
    %2169 = vmatprep.subr.mxu0 0.0
    %2170 = vmatpush1.msra.mxu0 0.0
    %2171 = vmatprep.subr.mxu0 0.0
    %2172 = vmatpush1.msra.mxu0 0.0
    %2173 = vmatprep.subr.mxu0 0.0
    %2174 = vmatpush1.msra.mxu0 0.0
    %2175 = vmatprep.subr.mxu0 0.0
    %2176 = vmatpush1.msra.mxu0 0.0
    %2177 = vmatprep.subr.mxu0 0.0
    %2178 = vmatpush1.msra.mxu0 0.0
    %2179 = vmatprep.subr.mxu0 0.0
    %2180 = vmatpush1.msra.mxu0 0.0
    %2181 = vmatprep.subr.mxu0 0.0
    %2182 = vmatpush1.msra.mxu0 0.0
    %2183 = vmatprep.subr.mxu0 0.0
    %2184 = vmatpush1.msra.mxu0 0.0
    %2185 = vmatprep.subr.mxu0 0.0
    %2186 = vmatpush1.msra.mxu0 0.0
    %2187 = vmatprep.subr.mxu0 0.0
    %2188 = vmatpush1.msra.mxu0 0.0
    %2189 = vmatprep.subr.mxu0 0.0
    %2190 = vmatpush1.msra.mxu0 0.0
    %2191 = vmatprep.subr.mxu0 0.0
    %2192 = vmatpush1.msra.mxu0 0.0
    %2193 = vmatprep.subr.mxu0 0.0
    %2194 = vmatpush1.msra.mxu0 0.0
    %2195 = vmatprep.mubr.f32.mxu0 0.0
    %2196 = vmatmul.mubr.f32.gmra.mrb[0].mxu0 %v2022
    %v2197 = vpop.f32.mrb[0].mxu0
    %v2198 = vadd.f32 0.0, %v2197
    %v2199 = vpop.f32.mrb[0].mxu0
    %2200 = vmatprep.mubr.f32.mxu0 0.0
    %2201 = vmatmul.mubr.f32.gmra.mrb[0].mxu0 %v2025
    %v2202 = vpop.f32.mrb[0].mxu0
    %v2203 = vadd.f32 0.0, %v2202
    %v2204 = vpop.f32.mrb[0].mxu0
    %2205 = vmatprep.mubr.f32.mxu0 0.0
    %2206 = vmatmul.mubr.f32.gmra.mrb[0].mxu0 %v2028
    %v2207 = vpop.f32.mrb[0].mxu0
    %v2208 = vadd.f32 0.0, %v2207
    %v2209 = vpop.f32.mrb[0].mxu0
    %2210 = vmatprep.mubr.f32.mxu0 0.0
    %2211 = vmatmul.mubr.f32.gmra.mrb[0].mxu0 %v2031
    %v2212 = vpop.f32.mrb[0].mxu0
    %v2213 = vadd.f32 0.0, %v2212
    %v2214 = vpop.f32.mrb[0].mxu0
    %2215 = vdwg.mxu0
    %v2216 = vadd.f32 %v2127, %v2198
    %v2217 = vadd.f32 %v2128, %v2203
    %v2218 = vadd.f32 %v2129, %v2208
    %v2219 = vadd.f32 %v2130, %v2213
    %v2220 = vxor.u32 %v2216, 2147483648
    %v2221 = vxor.u32 %v2217, 2147483648
    %v2222 = vxor.u32 %v2218, 2147483648
    %v2223 = vxor.u32 %v2219, 2147483648
    %v2224 = vmul.f32 %v2220, 1.442695
    %v2225 = vpow.pop %v2224
    %v2226 = vmul.f32 %v2221, 1.442695
    %v2227 = vpow.pop %v2226
    %v2228 = vmul.f32 %v2222, 1.442695
    %v2229 = vpow.pop %v2228
    %v2230 = vmul.f32 %v2223, 1.442695
    %v2231 = vpow.pop %v2230
    %v2232 = vadd.f32 %v2225, 1.0
    %v2233 = vadd.f32 %v2227, 1.0
    %v2234 = vadd.f32 %v2229, 1.0
    %v2235 = vadd.f32 %v2231, 1.0
    %v2236 = vrcp.pop %v2232
    %v2237 = vmul.f32 1.0, %v2236
    %v2238 = vrcp.pop %v2233
    %v2239 = vmul.f32 1.0, %v2238
    %v2240 = vrcp.pop %v2234
    %v2241 = vmul.f32 1.0, %v2240
    %v2242 = vrcp.pop %v2235
    %v2243 = vmul.f32 1.0, %v2242
    %s2244 = scalar_lea.vmem [#allocation4], 576
    %v2245 = vld [vmem:[%s2244] sm:$0xff]
    %v2246 = vld [vmem:[%s2244 + $0x8] sm:$0xff]
    %v2247 = vld [vmem:[%s2244 + $0x10] sm:$0xff]
    %v2248 = vld [vmem:[%s2244 + $0x18] sm:$0xff]
    %2249 = vmatprep.subr.mxu0 0.0
    %2250 = vmatpush1.msra.mxu0 %v71
    %2251 = vmatprep.subr.mxu0 0.0
    %2252 = vmatpush1.msra.mxu0 %v72
    %2253 = vmatprep.subr.mxu0 0.0
    %2254 = vmatpush1.msra.mxu0 %v73
    %2255 = vmatprep.subr.mxu0 0.0
    %2256 = vmatpush1.msra.mxu0 %v74
    %2257 = vmatprep.subr.mxu0 0.0
    %2258 = vmatpush1.msra.mxu0 0.0
    %2259 = vmatprep.subr.mxu0 0.0
    %2260 = vmatpush1.msra.mxu0 0.0
    %2261 = vmatprep.subr.mxu0 0.0
    %2262 = vmatpush1.msra.mxu0 0.0
    %2263 = vmatprep.subr.mxu0 0.0
    %2264 = vmatpush1.msra.mxu0 0.0
    %2265 = vmatprep.subr.mxu0 0.0
    %2266 = vmatpush1.msra.mxu0 0.0
    %2267 = vmatprep.subr.mxu0 0.0
    %2268 = vmatpush1.msra.mxu0 0.0
    %2269 = vmatprep.subr.mxu0 0.0
    %2270 = vmatpush1.msra.mxu0 0.0
    %2271 = vmatprep.subr.mxu0 0.0
    %2272 = vmatpush1.msra.mxu0 0.0
    %2273 = vmatprep.subr.mxu0 0.0
    %2274 = vmatpush1.msra.mxu0 0.0
    %2275 = vmatprep.subr.mxu0 0.0
    %2276 = vmatpush1.msra.mxu0 0.0
    %2277 = vmatprep.subr.mxu0 0.0
    %2278 = vmatpush1.msra.mxu0 0.0
    %2279 = vmatprep.subr.mxu0 0.0
    %2280 = vmatpush1.msra.mxu0 0.0
    %2281 = vmatprep.subr.mxu0 0.0
    %2282 = vmatpush1.msra.mxu0 0.0
    %2283 = vmatprep.subr.mxu0 0.0
    %2284 = vmatpush1.msra.mxu0 0.0
    %2285 = vmatprep.subr.mxu0 0.0
    %2286 = vmatpush1.msra.mxu0 0.0
    %2287 = vmatprep.subr.mxu0 0.0
    %2288 = vmatpush1.msra.mxu0 0.0
    %2289 = vmatprep.subr.mxu0 0.0
    %2290 = vmatpush1.msra.mxu0 0.0
    %2291 = vmatprep.subr.mxu0 0.0
    %2292 = vmatpush1.msra.mxu0 0.0
    %2293 = vmatprep.subr.mxu0 0.0
    %2294 = vmatpush1.msra.mxu0 0.0
    %2295 = vmatprep.subr.mxu0 0.0
    %2296 = vmatpush1.msra.mxu0 0.0
    %2297 = vmatprep.subr.mxu0 0.0
    %2298 = vmatpush1.msra.mxu0 0.0
    %2299 = vmatprep.subr.mxu0 0.0
    %2300 = vmatpush1.msra.mxu0 0.0
    %2301 = vmatprep.subr.mxu0 0.0
    %2302 = vmatpush1.msra.mxu0 0.0
    %2303 = vmatprep.subr.mxu0 0.0
    %2304 = vmatpush1.msra.mxu0 0.0
    %2305 = vmatprep.subr.mxu0 0.0
    %2306 = vmatpush1.msra.mxu0 0.0
    %2307 = vmatprep.subr.mxu0 0.0
    %2308 = vmatpush1.msra.mxu0 0.0
    %2309 = vmatprep.subr.mxu0 0.0
    %2310 = vmatpush1.msra.mxu0 0.0
    %2311 = vmatprep.subr.mxu0 0.0
    %2312 = vmatpush1.msra.mxu0 0.0
    %2313 = vmatprep.mubr.f32.mxu0 0.0
    %2314 = vmatmul.mubr.f32.gmra.mrb[0].mxu0 %v2022
    %v2315 = vpop.f32.mrb[0].mxu0
    %v2316 = vadd.f32 0.0, %v2315
    %v2317 = vpop.f32.mrb[0].mxu0
    %2318 = vmatprep.mubr.f32.mxu0 0.0
    %2319 = vmatmul.mubr.f32.gmra.mrb[0].mxu0 %v2025
    %v2320 = vpop.f32.mrb[0].mxu0
    %v2321 = vadd.f32 0.0, %v2320
    %v2322 = vpop.f32.mrb[0].mxu0
    %2323 = vmatprep.mubr.f32.mxu0 0.0
    %2324 = vmatmul.mubr.f32.gmra.mrb[0].mxu0 %v2028
    %v2325 = vpop.f32.mrb[0].mxu0
    %v2326 = vadd.f32 0.0, %v2325
    %v2327 = vpop.f32.mrb[0].mxu0
    %2328 = vmatprep.mubr.f32.mxu0 0.0
    %2329 = vmatmul.mubr.f32.gmra.mrb[0].mxu0 %v2031
    %v2330 = vpop.f32.mrb[0].mxu0
    %v2331 = vadd.f32 0.0, %v2330
    %v2332 = vpop.f32.mrb[0].mxu0
    %2333 = vdwg.mxu0
    %v2334 = vadd.f32 %v2245, %v2316
    %v2335 = vadd.f32 %v2246, %v2321
    %v2336 = vadd.f32 %v2247, %v2326
    %v2337 = vadd.f32 %v2248, %v2331
    %v2338 = vxor.u32 %v2334, 2147483648
    %v2339 = vxor.u32 %v2335, 2147483648
    %v2340 = vxor.u32 %v2336, 2147483648
    %v2341 = vxor.u32 %v2337, 2147483648
    %v2342 = vmul.f32 %v2338, 1.442695
    %v2343 = vpow.pop %v2342
    %v2344 = vmul.f32 %v2339, 1.442695
    %v2345 = vpow.pop %v2344
    %v2346 = vmul.f32 %v2340, 1.442695
    %v2347 = vpow.pop %v2346
    %v2348 = vmul.f32 %v2341, 1.442695
    %v2349 = vpow.pop %v2348
    %v2350 = vadd.f32 %v2343, 1.0
    %v2351 = vadd.f32 %v2345, 1.0
    %v2352 = vadd.f32 %v2347, 1.0
    %v2353 = vadd.f32 %v2349, 1.0
    %v2354 = vrcp.pop %v2350
    %v2355 = vmul.f32 1.0, %v2354
    %v2356 = vrcp.pop %v2351
    %v2357 = vmul.f32 1.0, %v2356
    %v2358 = vrcp.pop %v2352
    %v2359 = vmul.f32 1.0, %v2358
    %v2360 = vrcp.pop %v2353
    %v2361 = vmul.f32 1.0, %v2360
    %s2362 = scalar_lea.vmem [#allocation4], 608
    %v2363 = vld [vmem:[%s2362] sm:$0xff]
    %v2364 = vld [vmem:[%s2362 + $0x8] sm:$0xff]
    %v2365 = vld [vmem:[%s2362 + $0x10] sm:$0xff]
    %v2366 = vld [vmem:[%s2362 + $0x18] sm:$0xff]
    %2367 = vmatprep.subr.mxu0 0.0
    %2368 = vmatpush1.msra.mxu0 %v76
    %2369 = vmatprep.subr.mxu0 0.0
    %2370 = vmatpush1.msra.mxu0 %v77
    %2371 = vmatprep.subr.mxu0 0.0
    %2372 = vmatpush1.msra.mxu0 %v78
    %2373 = vmatprep.subr.mxu0 0.0
    %2374 = vmatpush1.msra.mxu0 %v79
    %2375 = vmatprep.subr.mxu0 0.0
    %2376 = vmatpush1.msra.mxu0 0.0
    %2377 = vmatprep.subr.mxu0 0.0
    %2378 = vmatpush1.msra.mxu0 0.0
    %2379 = vmatprep.subr.mxu0 0.0
    %2380 = vmatpush1.msra.mxu0 0.0
    %2381 = vmatprep.subr.mxu0 0.0
    %2382 = vmatpush1.msra.mxu0 0.0
    %2383 = vmatprep.subr.mxu0 0.0
    %2384 = vmatpush1.msra.mxu0 0.0
    %2385 = vmatprep.subr.mxu0 0.0
    %2386 = vmatpush1.msra.mxu0 0.0
    %2387 = vmatprep.subr.mxu0 0.0
    %2388 = vmatpush1.msra.mxu0 0.0
    %2389 = vmatprep.subr.mxu0 0.0
    %2390 = vmatpush1.msra.mxu0 0.0
    %2391 = vmatprep.subr.mxu0 0.0
    %2392 = vmatpush1.msra.mxu0 0.0
    %2393 = vmatprep.subr.mxu0 0.0
    %2394 = vmatpush1.msra.mxu0 0.0
    %2395 = vmatprep.subr.mxu0 0.0
    %2396 = vmatpush1.msra.mxu0 0.0
    %2397 = vmatprep.subr.mxu0 0.0
    %2398 = vmatpush1.msra.mxu0 0.0
    %2399 = vmatprep.subr.mxu0 0.0
    %2400 = vmatpush1.msra.mxu0 0.0
    %2401 = vmatprep.subr.mxu0 0.0
    %2402 = vmatpush1.msra.mxu0 0.0
    %2403 = vmatprep.subr.mxu0 0.0
    %2404 = vmatpush1.msra.mxu0 0.0
    %2405 = vmatprep.subr.mxu0 0.0
    %2406 = vmatpush1.msra.mxu0 0.0
    %2407 = vmatprep.subr.mxu0 0.0
    %2408 = vmatpush1.msra.mxu0 0.0
    %2409 = vmatprep.subr.mxu0 0.0
    %2410 = vmatpush1.msra.mxu0 0.0
    %2411 = vmatprep.subr.mxu0 0.0
    %2412 = vmatpush1.msra.mxu0 0.0
    %2413 = vmatprep.subr.mxu0 0.0
    %2414 = vmatpush1.msra.mxu0 0.0
    %2415 = vmatprep.subr.mxu0 0.0
    %2416 = vmatpush1.msra.mxu0 0.0
    %2417 = vmatprep.subr.mxu0 0.0
    %2418 = vmatpush1.msra.mxu0 0.0
    %2419 = vmatprep.subr.mxu0 0.0
    %2420 = vmatpush1.msra.mxu0 0.0
    %2421 = vmatprep.subr.mxu0 0.0
    %2422 = vmatpush1.msra.mxu0 0.0
    %2423 = vmatprep.subr.mxu0 0.0
    %2424 = vmatpush1.msra.mxu0 0.0
    %2425 = vmatprep.subr.mxu0 0.0
    %2426 = vmatpush1.msra.mxu0 0.0
    %2427 = vmatprep.subr.mxu0 0.0
    %2428 = vmatpush1.msra.mxu0 0.0
    %2429 = vmatprep.subr.mxu0 0.0
    %2430 = vmatpush1.msra.mxu0 0.0
    %2431 = vmatprep.mubr.f32.mxu0 0.0
    %2432 = vmatmul.mubr.f32.gmra.mrb[0].mxu0 %v2022
    %v2433 = vpop.f32.mrb[0].mxu0
    %v2434 = vadd.f32 0.0, %v2433
    %v2435 = vpop.f32.mrb[0].mxu0
    %2436 = vmatprep.mubr.f32.mxu0 0.0
    %2437 = vmatmul.mubr.f32.gmra.mrb[0].mxu0 %v2025
    %v2438 = vpop.f32.mrb[0].mxu0
    %v2439 = vadd.f32 0.0, %v2438
    %v2440 = vpop.f32.mrb[0].mxu0
    %2441 = vmatprep.mubr.f32.mxu0 0.0
    %2442 = vmatmul.mubr.f32.gmra.mrb[0].mxu0 %v2028
    %v2443 = vpop.f32.mrb[0].mxu0
    %v2444 = vadd.f32 0.0, %v2443
    %v2445 = vpop.f32.mrb[0].mxu0
    %2446 = vmatprep.mubr.f32.mxu0 0.0
    %2447 = vmatmul.mubr.f32.gmra.mrb[0].mxu0 %v2031
    %v2448 = vpop.f32.mrb[0].mxu0
    %v2449 = vadd.f32 0.0, %v2448
    %v2450 = vpop.f32.mrb[0].mxu0
    %2451 = vdwg.mxu0
    %v2452 = vadd.f32 %v2363, %v2434
    %v2453 = vadd.f32 %v2364, %v2439
    %v2454 = vadd.f32 %v2365, %v2444
    %v2455 = vadd.f32 %v2366, %v2449
    %v2456 = vxor.u32 %v2452, 2147483648
    %v2457 = vxor.u32 %v2453, 2147483648
    %v2458 = vxor.u32 %v2454, 2147483648
    %v2459 = vxor.u32 %v2455, 2147483648
    %v2460 = vmul.f32 %v2456, 1.442695
    %v2461 = vpow.pop %v2460
    %v2462 = vmul.f32 %v2457, 1.442695
    %v2463 = vpow.pop %v2462
    %v2464 = vmul.f32 %v2458, 1.442695
    %v2465 = vpow.pop %v2464
    %v2466 = vmul.f32 %v2459, 1.442695
    %v2467 = vpow.pop %v2466
    %v2468 = vadd.f32 %v2461, 1.0
    %v2469 = vadd.f32 %v2463, 1.0
    %v2470 = vadd.f32 %v2465, 1.0
    %v2471 = vadd.f32 %v2467, 1.0
    %v2472 = vrcp.pop %v2468
    %v2473 = vmul.f32 1.0, %v2472
    %v2474 = vrcp.pop %v2469
    %v2475 = vmul.f32 1.0, %v2474
    %v2476 = vrcp.pop %v2470
    %v2477 = vmul.f32 1.0, %v2476
    %v2478 = vrcp.pop %v2471
    %v2479 = vmul.f32 1.0, %v2478
    %v2480 = vmul.f32 %v2122, %v2237
    %v2481 = vmul.f32 %v2123, %v2239
    %v2482 = vmul.f32 %v2124, %v2241
    %v2483 = vmul.f32 %v2125, %v2243
    %v2484 = vmul.f32 %v2004, %v2355
    %v2485 = vmul.f32 %v2005, %v2357
    %v2486 = vmul.f32 %v2006, %v2359
    %v2487 = vmul.f32 %v2007, %v2361
    %v2488 = vadd.f32 %v2480, %v2484
    %v2489 = vadd.f32 %v2481, %v2485
    %v2490 = vadd.f32 %v2482, %v2486
    %v2491 = vadd.f32 %v2483, %v2487
    %v2492 = vtanh.pop %v2488
    %v2493 = vtanh.pop %v2489
    %v2494 = vtanh.pop %v2490
    %v2495 = vtanh.pop %v2491
    %v2496 = vmul.f32 %v2492, %v2473
    %v2497 = vmul.f32 %v2493, %v2475
    %v2498 = vmul.f32 %v2494, %v2477
    %v2499 = vmul.f32 %v2495, %v2479
    %s2500 = scalar_lea.vmem [#allocation4], 640
    %v2501 = vld [vmem:[%s2500] sm:$0xff]
    %v2502 = vld [vmem:[%s2500 + $0x8] sm:$0xff]
    %v2503 = vld [vmem:[%s2500 + $0x10] sm:$0xff]
    %v2504 = vld [vmem:[%s2500 + $0x18] sm:$0xff]
    %v2506 = vsel %vm84, %v2496, 0
    %v2509 = vsel %vm84, %v2497, 0
    %v2512 = vsel %vm84, %v2498, 0
    %v2515 = vsel %vm84, %v2499, 0
    %2517 = vmatprep.subr.mxu0 0.0
    %2518 = vmatpush1.msra.mxu0 %v61
    %2519 = vmatprep.subr.mxu0 0.0
    %2520 = vmatpush1.msra.mxu0 %v62
    %2521 = vmatprep.subr.mxu0 0.0
    %2522 = vmatpush1.msra.mxu0 %v63
    %2523 = vmatprep.subr.mxu0 0.0
    %2524 = vmatpush1.msra.mxu0 %v64
    %2525 = vmatprep.subr.mxu0 0.0
    %2526 = vmatpush1.msra.mxu0 0.0
    %2527 = vmatprep.subr.mxu0 0.0
    %2528 = vmatpush1.msra.mxu0 0.0
    %2529 = vmatprep.subr.mxu0 0.0
    %2530 = vmatpush1.msra.mxu0 0.0
    %2531 = vmatprep.subr.mxu0 0.0
    %2532 = vmatpush1.msra.mxu0 0.0
    %2533 = vmatprep.subr.mxu0 0.0
    %2534 = vmatpush1.msra.mxu0 0.0
    %2535 = vmatprep.subr.mxu0 0.0
    %2536 = vmatpush1.msra.mxu0 0.0
    %2537 = vmatprep.subr.mxu0 0.0
    %2538 = vmatpush1.msra.mxu0 0.0
    %2539 = vmatprep.subr.mxu0 0.0
    %2540 = vmatpush1.msra.mxu0 0.0
    %2541 = vmatprep.subr.mxu0 0.0
    %2542 = vmatpush1.msra.mxu0 0.0
    %2543 = vmatprep.subr.mxu0 0.0
    %2544 = vmatpush1.msra.mxu0 0.0
    %2545 = vmatprep.subr.mxu0 0.0
    %2546 = vmatpush1.msra.mxu0 0.0
    %2547 = vmatprep.subr.mxu0 0.0
    %2548 = vmatpush1.msra.mxu0 0.0
    %2549 = vmatprep.subr.mxu0 0.0
    %2550 = vmatpush1.msra.mxu0 0.0
    %2551 = vmatprep.subr.mxu0 0.0
    %2552 = vmatpush1.msra.mxu0 0.0
    %2553 = vmatprep.subr.mxu0 0.0
    %2554 = vmatpush1.msra.mxu0 0.0
    %2555 = vmatprep.subr.mxu0 0.0
    %2556 = vmatpush1.msra.mxu0 0.0
    %2557 = vmatprep.subr.mxu0 0.0
    %2558 = vmatpush1.msra.mxu0 0.0
    %2559 = vmatprep.subr.mxu0 0.0
    %2560 = vmatpush1.msra.mxu0 0.0
    %2561 = vmatprep.subr.mxu0 0.0
    %2562 = vmatpush1.msra.mxu0 0.0
    %2563 = vmatprep.subr.mxu0 0.0
    %2564 = vmatpush1.msra.mxu0 0.0
    %2565 = vmatprep.subr.mxu0 0.0
    %2566 = vmatpush1.msra.mxu0 0.0
    %2567 = vmatprep.subr.mxu0 0.0
    %2568 = vmatpush1.msra.mxu0 0.0
    %2569 = vmatprep.subr.mxu0 0.0
    %2570 = vmatpush1.msra.mxu0 0.0
    %2571 = vmatprep.subr.mxu0 0.0
    %2572 = vmatpush1.msra.mxu0 0.0
    %2573 = vmatprep.subr.mxu0 0.0
    %2574 = vmatpush1.msra.mxu0 0.0
    %2575 = vmatprep.subr.mxu0 0.0
    %2576 = vmatpush1.msra.mxu0 0.0
    %2577 = vmatprep.subr.mxu0 0.0
    %2578 = vmatpush1.msra.mxu0 0.0
    %2579 = vmatprep.subr.mxu0 0.0
    %2580 = vmatpush1.msra.mxu0 0.0
    %2581 = vmatprep.mubr.f32.mxu0 0.0
    %2582 = vmatmul.mubr.f32.gmra.mrb[0].mxu0 %v2506
    %v2583 = vpop.f32.mrb[0].mxu0
    %v2584 = vadd.f32 0.0, %v2583
    %v2585 = vpop.f32.mrb[0].mxu0
    %2586 = vmatprep.mubr.f32.mxu0 0.0
    %2587 = vmatmul.mubr.f32.gmra.mrb[0].mxu0 %v2509
    %v2588 = vpop.f32.mrb[0].mxu0
    %v2589 = vadd.f32 0.0, %v2588
    %v2590 = vpop.f32.mrb[0].mxu0
    %2591 = vmatprep.mubr.f32.mxu0 0.0
    %2592 = vmatmul.mubr.f32.gmra.mrb[0].mxu0 %v2512
    %v2593 = vpop.f32.mrb[0].mxu0
    %v2594 = vadd.f32 0.0, %v2593
    %v2595 = vpop.f32.mrb[0].mxu0
    %2596 = vmatprep.mubr.f32.mxu0 0.0
    %2597 = vmatmul.mubr.f32.gmra.mrb[0].mxu0 %v2515
    %v2598 = vpop.f32.mrb[0].mxu0
    %v2599 = vadd.f32 0.0, %v2598
    %v2600 = vpop.f32.mrb[0].mxu0
    %2601 = vdwg.mxu0
    %v2602 = vadd.f32 %v2501, %v2584
    %v2603 = vadd.f32 %v2502, %v2589
    %v2604 = vadd.f32 %v2503, %v2594
    %v2605 = vadd.f32 %v2504, %v2599
    %v2606 = vtanh.pop %v2602
    %v2607 = vtanh.pop %v2603
    %v2608 = vtanh.pop %v2604
    %v2609 = vtanh.pop %v2605
    %s2610 = scalar_lea.vmem [#allocation4], 672
    %v2611 = vld [vmem:[%s2610] sm:$0xff]
    %v2612 = vld [vmem:[%s2610 + $0x8] sm:$0xff]
    %v2613 = vld [vmem:[%s2610 + $0x10] sm:$0xff]
    %v2614 = vld [vmem:[%s2610 + $0x18] sm:$0xff]
    %2615 = vmatprep.subr.mxu0 0.0
    %2616 = vmatpush1.msra.mxu0 %v66
    %2617 = vmatprep.subr.mxu0 0.0
    %2618 = vmatpush1.msra.mxu0 %v67
    %2619 = vmatprep.subr.mxu0 0.0
    %2620 = vmatpush1.msra.mxu0 %v68
    %2621 = vmatprep.subr.mxu0 0.0
    %2622 = vmatpush1.msra.mxu0 %v69
    %2623 = vmatprep.subr.mxu0 0.0
    %2624 = vmatpush1.msra.mxu0 0.0
    %2625 = vmatprep.subr.mxu0 0.0
    %2626 = vmatpush1.msra.mxu0 0.0
    %2627 = vmatprep.subr.mxu0 0.0
    %2628 = vmatpush1.msra.mxu0 0.0
    %2629 = vmatprep.subr.mxu0 0.0
    %2630 = vmatpush1.msra.mxu0 0.0
    %2631 = vmatprep.subr.mxu0 0.0
    %2632 = vmatpush1.msra.mxu0 0.0
    %2633 = vmatprep.subr.mxu0 0.0
    %2634 = vmatpush1.msra.mxu0 0.0
    %2635 = vmatprep.subr.mxu0 0.0
    %2636 = vmatpush1.msra.mxu0 0.0
    %2637 = vmatprep.subr.mxu0 0.0
    %2638 = vmatpush1.msra.mxu0 0.0
    %2639 = vmatprep.subr.mxu0 0.0
    %2640 = vmatpush1.msra.mxu0 0.0
    %2641 = vmatprep.subr.mxu0 0.0
    %2642 = vmatpush1.msra.mxu0 0.0
    %2643 = vmatprep.subr.mxu0 0.0
    %2644 = vmatpush1.msra.mxu0 0.0
    %2645 = vmatprep.subr.mxu0 0.0
    %2646 = vmatpush1.msra.mxu0 0.0
    %2647 = vmatprep.subr.mxu0 0.0
    %2648 = vmatpush1.msra.mxu0 0.0
    %2649 = vmatprep.subr.mxu0 0.0
    %2650 = vmatpush1.msra.mxu0 0.0
    %2651 = vmatprep.subr.mxu0 0.0
    %2652 = vmatpush1.msra.mxu0 0.0
    %2653 = vmatprep.subr.mxu0 0.0
    %2654 = vmatpush1.msra.mxu0 0.0
    %2655 = vmatprep.subr.mxu0 0.0
    %2656 = vmatpush1.msra.mxu0 0.0
    %2657 = vmatprep.subr.mxu0 0.0
    %2658 = vmatpush1.msra.mxu0 0.0
    %2659 = vmatprep.subr.mxu0 0.0
    %2660 = vmatpush1.msra.mxu0 0.0
    %2661 = vmatprep.subr.mxu0 0.0
    %2662 = vmatpush1.msra.mxu0 0.0
    %2663 = vmatprep.subr.mxu0 0.0
    %2664 = vmatpush1.msra.mxu0 0.0
    %2665 = vmatprep.subr.mxu0 0.0
    %2666 = vmatpush1.msra.mxu0 0.0
    %2667 = vmatprep.subr.mxu0 0.0
    %2668 = vmatpush1.msra.mxu0 0.0
    %2669 = vmatprep.subr.mxu0 0.0
    %2670 = vmatpush1.msra.mxu0 0.0
    %2671 = vmatprep.subr.mxu0 0.0
    %2672 = vmatpush1.msra.mxu0 0.0
    %2673 = vmatprep.subr.mxu0 0.0
    %2674 = vmatpush1.msra.mxu0 0.0
    %2675 = vmatprep.subr.mxu0 0.0
    %2676 = vmatpush1.msra.mxu0 0.0
    %2677 = vmatprep.subr.mxu0 0.0
    %2678 = vmatpush1.msra.mxu0 0.0
    %2679 = vmatprep.mubr.f32.mxu0 0.0
    %2680 = vmatmul.mubr.f32.gmra.mrb[0].mxu0 %v2506
    %v2681 = vpop.f32.mrb[0].mxu0
    %v2682 = vadd.f32 0.0, %v2681
    %v2683 = vpop.f32.mrb[0].mxu0
    %2684 = vmatprep.mubr.f32.mxu0 0.0
    %2685 = vmatmul.mubr.f32.gmra.mrb[0].mxu0 %v2509
    %v2686 = vpop.f32.mrb[0].mxu0
    %v2687 = vadd.f32 0.0, %v2686
    %v2688 = vpop.f32.mrb[0].mxu0
    %2689 = vmatprep.mubr.f32.mxu0 0.0
    %2690 = vmatmul.mubr.f32.gmra.mrb[0].mxu0 %v2512
    %v2691 = vpop.f32.mrb[0].mxu0
    %v2692 = vadd.f32 0.0, %v2691
    %v2693 = vpop.f32.mrb[0].mxu0
    %2694 = vmatprep.mubr.f32.mxu0 0.0
    %2695 = vmatmul.mubr.f32.gmra.mrb[0].mxu0 %v2515
    %v2696 = vpop.f32.mrb[0].mxu0
    %v2697 = vadd.f32 0.0, %v2696
    %v2698 = vpop.f32.mrb[0].mxu0
    %2699 = vdwg.mxu0
    %v2700 = vadd.f32 %v2611, %v2682
    %v2701 = vadd.f32 %v2612, %v2687
    %v2702 = vadd.f32 %v2613, %v2692
    %v2703 = vadd.f32 %v2614, %v2697
    %v2704 = vxor.u32 %v2700, 2147483648
    %v2705 = vxor.u32 %v2701, 2147483648
    %v2706 = vxor.u32 %v2702, 2147483648
    %v2707 = vxor.u32 %v2703, 2147483648
    %v2708 = vmul.f32 %v2704, 1.442695
    %v2709 = vpow.pop %v2708
    %v2710 = vmul.f32 %v2705, 1.442695
    %v2711 = vpow.pop %v2710
    %v2712 = vmul.f32 %v2706, 1.442695
    %v2713 = vpow.pop %v2712
    %v2714 = vmul.f32 %v2707, 1.442695
    %v2715 = vpow.pop %v2714
    %v2716 = vadd.f32 %v2709, 1.0
    %v2717 = vadd.f32 %v2711, 1.0
    %v2718 = vadd.f32 %v2713, 1.0
    %v2719 = vadd.f32 %v2715, 1.0
    %v2720 = vrcp.pop %v2716
    %v2721 = vmul.f32 1.0, %v2720
    %v2722 = vrcp.pop %v2717
    %v2723 = vmul.f32 1.0, %v2722
    %v2724 = vrcp.pop %v2718
    %v2725 = vmul.f32 1.0, %v2724
    %v2726 = vrcp.pop %v2719
    %v2727 = vmul.f32 1.0, %v2726
    %s2728 = scalar_lea.vmem [#allocation4], 704
    %v2729 = vld [vmem:[%s2728] sm:$0xff]
    %v2730 = vld [vmem:[%s2728 + $0x8] sm:$0xff]
    %v2731 = vld [vmem:[%s2728 + $0x10] sm:$0xff]
    %v2732 = vld [vmem:[%s2728 + $0x18] sm:$0xff]
    %2733 = vmatprep.subr.mxu0 0.0
    %2734 = vmatpush1.msra.mxu0 %v71
    %2735 = vmatprep.subr.mxu0 0.0
    %2736 = vmatpush1.msra.mxu0 %v72
    %2737 = vmatprep.subr.mxu0 0.0
    %2738 = vmatpush1.msra.mxu0 %v73
    %2739 = vmatprep.subr.mxu0 0.0
    %2740 = vmatpush1.msra.mxu0 %v74
    %2741 = vmatprep.subr.mxu0 0.0
    %2742 = vmatpush1.msra.mxu0 0.0
    %2743 = vmatprep.subr.mxu0 0.0
    %2744 = vmatpush1.msra.mxu0 0.0
    %2745 = vmatprep.subr.mxu0 0.0
    %2746 = vmatpush1.msra.mxu0 0.0
    %2747 = vmatprep.subr.mxu0 0.0
    %2748 = vmatpush1.msra.mxu0 0.0
    %2749 = vmatprep.subr.mxu0 0.0
    %2750 = vmatpush1.msra.mxu0 0.0
    %2751 = vmatprep.subr.mxu0 0.0
    %2752 = vmatpush1.msra.mxu0 0.0
    %2753 = vmatprep.subr.mxu0 0.0
    %2754 = vmatpush1.msra.mxu0 0.0
    %2755 = vmatprep.subr.mxu0 0.0
    %2756 = vmatpush1.msra.mxu0 0.0
    %2757 = vmatprep.subr.mxu0 0.0
    %2758 = vmatpush1.msra.mxu0 0.0
    %2759 = vmatprep.subr.mxu0 0.0
    %2760 = vmatpush1.msra.mxu0 0.0
    %2761 = vmatprep.subr.mxu0 0.0
    %2762 = vmatpush1.msra.mxu0 0.0
    %2763 = vmatprep.subr.mxu0 0.0
    %2764 = vmatpush1.msra.mxu0 0.0
    %2765 = vmatprep.subr.mxu0 0.0
    %2766 = vmatpush1.msra.mxu0 0.0
    %2767 = vmatprep.subr.mxu0 0.0
    %2768 = vmatpush1.msra.mxu0 0.0
    %2769 = vmatprep.subr.mxu0 0.0
    %2770 = vmatpush1.msra.mxu0 0.0
    %2771 = vmatprep.subr.mxu0 0.0
    %2772 = vmatpush1.msra.mxu0 0.0
    %2773 = vmatprep.subr.mxu0 0.0
    %2774 = vmatpush1.msra.mxu0 0.0
    %2775 = vmatprep.subr.mxu0 0.0
    %2776 = vmatpush1.msra.mxu0 0.0
    %2777 = vmatprep.subr.mxu0 0.0
    %2778 = vmatpush1.msra.mxu0 0.0
    %2779 = vmatprep.subr.mxu0 0.0
    %2780 = vmatpush1.msra.mxu0 0.0
    %2781 = vmatprep.subr.mxu0 0.0
    %2782 = vmatpush1.msra.mxu0 0.0
    %2783 = vmatprep.subr.mxu0 0.0
    %2784 = vmatpush1.msra.mxu0 0.0
    %2785 = vmatprep.subr.mxu0 0.0
    %2786 = vmatpush1.msra.mxu0 0.0
    %2787 = vmatprep.subr.mxu0 0.0
    %2788 = vmatpush1.msra.mxu0 0.0
    %2789 = vmatprep.subr.mxu0 0.0
    %2790 = vmatpush1.msra.mxu0 0.0
    %2791 = vmatprep.subr.mxu0 0.0
    %2792 = vmatpush1.msra.mxu0 0.0
    %2793 = vmatprep.subr.mxu0 0.0
    %2794 = vmatpush1.msra.mxu0 0.0
    %2795 = vmatprep.subr.mxu0 0.0
    %2796 = vmatpush1.msra.mxu0 0.0
    %2797 = vmatprep.mubr.f32.mxu0 0.0
    %2798 = vmatmul.mubr.f32.gmra.mrb[0].mxu0 %v2506
    %v2799 = vpop.f32.mrb[0].mxu0
    %v2800 = vadd.f32 0.0, %v2799
    %v2801 = vpop.f32.mrb[0].mxu0
    %2802 = vmatprep.mubr.f32.mxu0 0.0
    %2803 = vmatmul.mubr.f32.gmra.mrb[0].mxu0 %v2509
    %v2804 = vpop.f32.mrb[0].mxu0
    %v2805 = vadd.f32 0.0, %v2804
    %v2806 = vpop.f32.mrb[0].mxu0
    %2807 = vmatprep.mubr.f32.mxu0 0.0
    %2808 = vmatmul.mubr.f32.gmra.mrb[0].mxu0 %v2512
    %v2809 = vpop.f32.mrb[0].mxu0
    %v2810 = vadd.f32 0.0, %v2809
    %v2811 = vpop.f32.mrb[0].mxu0
    %2812 = vmatprep.mubr.f32.mxu0 0.0
    %2813 = vmatmul.mubr.f32.gmra.mrb[0].mxu0 %v2515
    %v2814 = vpop.f32.mrb[0].mxu0
    %v2815 = vadd.f32 0.0, %v2814
    %v2816 = vpop.f32.mrb[0].mxu0
    %2817 = vdwg.mxu0
    %v2818 = vadd.f32 %v2729, %v2800
    %v2819 = vadd.f32 %v2730, %v2805
    %v2820 = vadd.f32 %v2731, %v2810
    %v2821 = vadd.f32 %v2732, %v2815
    %v2822 = vxor.u32 %v2818, 2147483648
    %v2823 = vxor.u32 %v2819, 2147483648
    %v2824 = vxor.u32 %v2820, 2147483648
    %v2825 = vxor.u32 %v2821, 2147483648
    %v2826 = vmul.f32 %v2822, 1.442695
    %v2827 = vpow.pop %v2826
    %v2828 = vmul.f32 %v2823, 1.442695
    %v2829 = vpow.pop %v2828
    %v2830 = vmul.f32 %v2824, 1.442695
    %v2831 = vpow.pop %v2830
    %v2832 = vmul.f32 %v2825, 1.442695
    %v2833 = vpow.pop %v2832
    %v2834 = vadd.f32 %v2827, 1.0
    %v2835 = vadd.f32 %v2829, 1.0
    %v2836 = vadd.f32 %v2831, 1.0
    %v2837 = vadd.f32 %v2833, 1.0
    %v2838 = vrcp.pop %v2834
    %v2839 = vmul.f32 1.0, %v2838
    %v2840 = vrcp.pop %v2835
    %v2841 = vmul.f32 1.0, %v2840
    %v2842 = vrcp.pop %v2836
    %v2843 = vmul.f32 1.0, %v2842
    %v2844 = vrcp.pop %v2837
    %v2845 = vmul.f32 1.0, %v2844
    %s2846 = scalar_lea.vmem [#allocation4], 736
    %v2847 = vld [vmem:[%s2846] sm:$0xff]
    %v2848 = vld [vmem:[%s2846 + $0x8] sm:$0xff]
    %v2849 = vld [vmem:[%s2846 + $0x10] sm:$0xff]
    %v2850 = vld [vmem:[%s2846 + $0x18] sm:$0xff]
    %2851 = vmatprep.subr.mxu0 0.0
    %2852 = vmatpush1.msra.mxu0 %v76
    %2853 = vmatprep.subr.mxu0 0.0
    %2854 = vmatpush1.msra.mxu0 %v77
    %2855 = vmatprep.subr.mxu0 0.0
    %2856 = vmatpush1.msra.mxu0 %v78
    %2857 = vmatprep.subr.mxu0 0.0
    %2858 = vmatpush1.msra.mxu0 %v79
    %2859 = vmatprep.subr.mxu0 0.0
    %2860 = vmatpush1.msra.mxu0 0.0
    %2861 = vmatprep.subr.mxu0 0.0
    %2862 = vmatpush1.msra.mxu0 0.0
    %2863 = vmatprep.subr.mxu0 0.0
    %2864 = vmatpush1.msra.mxu0 0.0
    %2865 = vmatprep.subr.mxu0 0.0
    %2866 = vmatpush1.msra.mxu0 0.0
    %2867 = vmatprep.subr.mxu0 0.0
    %2868 = vmatpush1.msra.mxu0 0.0
    %2869 = vmatprep.subr.mxu0 0.0
    %2870 = vmatpush1.msra.mxu0 0.0
    %2871 = vmatprep.subr.mxu0 0.0
    %2872 = vmatpush1.msra.mxu0 0.0
    %2873 = vmatprep.subr.mxu0 0.0
    %2874 = vmatpush1.msra.mxu0 0.0
    %2875 = vmatprep.subr.mxu0 0.0
    %2876 = vmatpush1.msra.mxu0 0.0
    %2877 = vmatprep.subr.mxu0 0.0
    %2878 = vmatpush1.msra.mxu0 0.0
    %2879 = vmatprep.subr.mxu0 0.0
    %2880 = vmatpush1.msra.mxu0 0.0
    %2881 = vmatprep.subr.mxu0 0.0
    %2882 = vmatpush1.msra.mxu0 0.0
    %2883 = vmatprep.subr.mxu0 0.0
    %2884 = vmatpush1.msra.mxu0 0.0
    %2885 = vmatprep.subr.mxu0 0.0
    %2886 = vmatpush1.msra.mxu0 0.0
    %2887 = vmatprep.subr.mxu0 0.0
    %2888 = vmatpush1.msra.mxu0 0.0
    %2889 = vmatprep.subr.mxu0 0.0
    %2890 = vmatpush1.msra.mxu0 0.0
    %2891 = vmatprep.subr.mxu0 0.0
    %2892 = vmatpush1.msra.mxu0 0.0
    %2893 = vmatprep.subr.mxu0 0.0
    %2894 = vmatpush1.msra.mxu0 0.0
    %2895 = vmatprep.subr.mxu0 0.0
    %2896 = vmatpush1.msra.mxu0 0.0
    %2897 = vmatprep.subr.mxu0 0.0
    %2898 = vmatpush1.msra.mxu0 0.0
    %2899 = vmatprep.subr.mxu0 0.0
    %2900 = vmatpush1.msra.mxu0 0.0
    %2901 = vmatprep.subr.mxu0 0.0
    %2902 = vmatpush1.msra.mxu0 0.0
    %2903 = vmatprep.subr.mxu0 0.0
    %2904 = vmatpush1.msra.mxu0 0.0
    %2905 = vmatprep.subr.mxu0 0.0
    %2906 = vmatpush1.msra.mxu0 0.0
    %2907 = vmatprep.subr.mxu0 0.0
    %2908 = vmatpush1.msra.mxu0 0.0
    %2909 = vmatprep.subr.mxu0 0.0
    %2910 = vmatpush1.msra.mxu0 0.0
    %2911 = vmatprep.subr.mxu0 0.0
    %2912 = vmatpush1.msra.mxu0 0.0
    %2913 = vmatprep.subr.mxu0 0.0
    %2914 = vmatpush1.msra.mxu0 0.0
    %2915 = vmatprep.mubr.f32.mxu0 0.0
    %2916 = vmatmul.mubr.f32.gmra.mrb[0].mxu0 %v2506
    %v2917 = vpop.f32.mrb[0].mxu0
    %v2918 = vadd.f32 0.0, %v2917
    %v2919 = vpop.f32.mrb[0].mxu0
    %2920 = vmatprep.mubr.f32.mxu0 0.0
    %2921 = vmatmul.mubr.f32.gmra.mrb[0].mxu0 %v2509
    %v2922 = vpop.f32.mrb[0].mxu0
    %v2923 = vadd.f32 0.0, %v2922
    %v2924 = vpop.f32.mrb[0].mxu0
    %2925 = vmatprep.mubr.f32.mxu0 0.0
    %2926 = vmatmul.mubr.f32.gmra.mrb[0].mxu0 %v2512
    %v2927 = vpop.f32.mrb[0].mxu0
    %v2928 = vadd.f32 0.0, %v2927
    %v2929 = vpop.f32.mrb[0].mxu0
    %2930 = vmatprep.mubr.f32.mxu0 0.0
    %2931 = vmatmul.mubr.f32.gmra.mrb[0].mxu0 %v2515
    %v2932 = vpop.f32.mrb[0].mxu0
    %v2933 = vadd.f32 0.0, %v2932
    %v2934 = vpop.f32.mrb[0].mxu0
    %2935 = vdwg.mxu0
    %v2936 = vadd.f32 %v2847, %v2918
    %v2937 = vadd.f32 %v2848, %v2923
    %v2938 = vadd.f32 %v2849, %v2928
    %v2939 = vadd.f32 %v2850, %v2933
    %v2940 = vxor.u32 %v2936, 2147483648
    %v2941 = vxor.u32 %v2937, 2147483648
    %v2942 = vxor.u32 %v2938, 2147483648
    %v2943 = vxor.u32 %v2939, 2147483648
    %v2944 = vmul.f32 %v2940, 1.442695
    %v2945 = vpow.pop %v2944
    %v2946 = vmul.f32 %v2941, 1.442695
    %v2947 = vpow.pop %v2946
    %v2948 = vmul.f32 %v2942, 1.442695
    %v2949 = vpow.pop %v2948
    %v2950 = vmul.f32 %v2943, 1.442695
    %v2951 = vpow.pop %v2950
    %v2952 = vadd.f32 %v2945, 1.0
    %v2953 = vadd.f32 %v2947, 1.0
    %v2954 = vadd.f32 %v2949, 1.0
    %v2955 = vadd.f32 %v2951, 1.0
    %v2956 = vrcp.pop %v2952
    %v2957 = vmul.f32 1.0, %v2956
    %v2958 = vrcp.pop %v2953
    %v2959 = vmul.f32 1.0, %v2958
    %v2960 = vrcp.pop %v2954
    %v2961 = vmul.f32 1.0, %v2960
    %v2962 = vrcp.pop %v2955
    %v2963 = vmul.f32 1.0, %v2962
    %v2964 = vmul.f32 %v2606, %v2721
    %v2965 = vmul.f32 %v2607, %v2723
    %v2966 = vmul.f32 %v2608, %v2725
    %v2967 = vmul.f32 %v2609, %v2727
    %v2968 = vmul.f32 %v2488, %v2839
    %v2969 = vmul.f32 %v2489, %v2841
    %v2970 = vmul.f32 %v2490, %v2843
    %v2971 = vmul.f32 %v2491, %v2845
    %v2972 = vadd.f32 %v2964, %v2968
    %v2973 = vadd.f32 %v2965, %v2969
    %v2974 = vadd.f32 %v2966, %v2970
    %v2975 = vadd.f32 %v2967, %v2971
    %v2976 = vtanh.pop %v2972
    %v2977 = vtanh.pop %v2973
    %v2978 = vtanh.pop %v2974
    %v2979 = vtanh.pop %v2975
    %v2980 = vmul.f32 %v2976, %v2957
    %v2981 = vmul.f32 %v2977, %v2959
    %v2982 = vmul.f32 %v2978, %v2961
    %v2983 = vmul.f32 %v2979, %v2963
    %s2984 = scalar_lea.vmem [#allocation4], 768
    %v2985 = vld [vmem:[%s2984] sm:$0xff]
    %v2986 = vld [vmem:[%s2984 + $0x8] sm:$0xff]
    %v2987 = vld [vmem:[%s2984 + $0x10] sm:$0xff]
    %v2988 = vld [vmem:[%s2984 + $0x18] sm:$0xff]
    %v2990 = vsel %vm84, %v2980, 0
    %v2993 = vsel %vm84, %v2981, 0
    %v2996 = vsel %vm84, %v2982, 0
    %v2999 = vsel %vm84, %v2983, 0
    %3001 = vmatprep.subr.mxu0 0.0
    %3002 = vmatpush1.msra.mxu0 %v61
    %3003 = vmatprep.subr.mxu0 0.0
    %3004 = vmatpush1.msra.mxu0 %v62
    %3005 = vmatprep.subr.mxu0 0.0
    %3006 = vmatpush1.msra.mxu0 %v63
    %3007 = vmatprep.subr.mxu0 0.0
    %3008 = vmatpush1.msra.mxu0 %v64
    %3009 = vmatprep.subr.mxu0 0.0
    %3010 = vmatpush1.msra.mxu0 0.0
    %3011 = vmatprep.subr.mxu0 0.0
    %3012 = vmatpush1.msra.mxu0 0.0
    %3013 = vmatprep.subr.mxu0 0.0
    %3014 = vmatpush1.msra.mxu0 0.0
    %3015 = vmatprep.subr.mxu0 0.0
    %3016 = vmatpush1.msra.mxu0 0.0
    %3017 = vmatprep.subr.mxu0 0.0
    %3018 = vmatpush1.msra.mxu0 0.0
    %3019 = vmatprep.subr.mxu0 0.0
    %3020 = vmatpush1.msra.mxu0 0.0
    %3021 = vmatprep.subr.mxu0 0.0
    %3022 = vmatpush1.msra.mxu0 0.0
    %3023 = vmatprep.subr.mxu0 0.0
    %3024 = vmatpush1.msra.mxu0 0.0
    %3025 = vmatprep.subr.mxu0 0.0
    %3026 = vmatpush1.msra.mxu0 0.0
    %3027 = vmatprep.subr.mxu0 0.0
    %3028 = vmatpush1.msra.mxu0 0.0
    %3029 = vmatprep.subr.mxu0 0.0
    %3030 = vmatpush1.msra.mxu0 0.0
    %3031 = vmatprep.subr.mxu0 0.0
    %3032 = vmatpush1.msra.mxu0 0.0
    %3033 = vmatprep.subr.mxu0 0.0
    %3034 = vmatpush1.msra.mxu0 0.0
    %3035 = vmatprep.subr.mxu0 0.0
    %3036 = vmatpush1.msra.mxu0 0.0
    %3037 = vmatprep.subr.mxu0 0.0
    %3038 = vmatpush1.msra.mxu0 0.0
    %3039 = vmatprep.subr.mxu0 0.0
    %3040 = vmatpush1.msra.mxu0 0.0
    %3041 = vmatprep.subr.mxu0 0.0
    %3042 = vmatpush1.msra.mxu0 0.0
    %3043 = vmatprep.subr.mxu0 0.0
    %3044 = vmatpush1.msra.mxu0 0.0
    %3045 = vmatprep.subr.mxu0 0.0
    %3046 = vmatpush1.msra.mxu0 0.0
    %3047 = vmatprep.subr.mxu0 0.0
    %3048 = vmatpush1.msra.mxu0 0.0
    %3049 = vmatprep.subr.mxu0 0.0
    %3050 = vmatpush1.msra.mxu0 0.0
    %3051 = vmatprep.subr.mxu0 0.0
    %3052 = vmatpush1.msra.mxu0 0.0
    %3053 = vmatprep.subr.mxu0 0.0
    %3054 = vmatpush1.msra.mxu0 0.0
    %3055 = vmatprep.subr.mxu0 0.0
    %3056 = vmatpush1.msra.mxu0 0.0
    %3057 = vmatprep.subr.mxu0 0.0
    %3058 = vmatpush1.msra.mxu0 0.0
    %3059 = vmatprep.subr.mxu0 0.0
    %3060 = vmatpush1.msra.mxu0 0.0
    %3061 = vmatprep.subr.mxu0 0.0
    %3062 = vmatpush1.msra.mxu0 0.0
    %3063 = vmatprep.subr.mxu0 0.0
    %3064 = vmatpush1.msra.mxu0 0.0
    %3065 = vmatprep.mubr.f32.mxu0 0.0
    %3066 = vmatmul.mubr.f32.gmra.mrb[0].mxu0 %v2990
    %v3067 = vpop.f32.mrb[0].mxu0
    %v3068 = vadd.f32 0.0, %v3067
    %v3069 = vpop.f32.mrb[0].mxu0
    %3070 = vmatprep.mubr.f32.mxu0 0.0
    %3071 = vmatmul.mubr.f32.gmra.mrb[0].mxu0 %v2993
    %v3072 = vpop.f32.mrb[0].mxu0
    %v3073 = vadd.f32 0.0, %v3072
    %v3074 = vpop.f32.mrb[0].mxu0
    %3075 = vmatprep.mubr.f32.mxu0 0.0
    %3076 = vmatmul.mubr.f32.gmra.mrb[0].mxu0 %v2996
    %v3077 = vpop.f32.mrb[0].mxu0
    %v3078 = vadd.f32 0.0, %v3077
    %v3079 = vpop.f32.mrb[0].mxu0
    %3080 = vmatprep.mubr.f32.mxu0 0.0
    %3081 = vmatmul.mubr.f32.gmra.mrb[0].mxu0 %v2999
    %v3082 = vpop.f32.mrb[0].mxu0
    %v3083 = vadd.f32 0.0, %v3082
    %v3084 = vpop.f32.mrb[0].mxu0
    %3085 = vdwg.mxu0
    %v3086 = vadd.f32 %v2985, %v3068
    %v3087 = vadd.f32 %v2986, %v3073
    %v3088 = vadd.f32 %v2987, %v3078
    %v3089 = vadd.f32 %v2988, %v3083
    %v3090 = vtanh.pop %v3086
    %v3091 = vtanh.pop %v3087
    %v3092 = vtanh.pop %v3088
    %v3093 = vtanh.pop %v3089
    %s3094 = scalar_lea.vmem [#allocation4], 800
    %v3095 = vld [vmem:[%s3094] sm:$0xff]
    %v3096 = vld [vmem:[%s3094 + $0x8] sm:$0xff]
    %v3097 = vld [vmem:[%s3094 + $0x10] sm:$0xff]
    %v3098 = vld [vmem:[%s3094 + $0x18] sm:$0xff]
    %3099 = vmatprep.subr.mxu0 0.0
    %3100 = vmatpush1.msra.mxu0 %v66
    %3101 = vmatprep.subr.mxu0 0.0
    %3102 = vmatpush1.msra.mxu0 %v67
    %3103 = vmatprep.subr.mxu0 0.0
    %3104 = vmatpush1.msra.mxu0 %v68
    %3105 = vmatprep.subr.mxu0 0.0
    %3106 = vmatpush1.msra.mxu0 %v69
    %3107 = vmatprep.subr.mxu0 0.0
    %3108 = vmatpush1.msra.mxu0 0.0
    %3109 = vmatprep.subr.mxu0 0.0
    %3110 = vmatpush1.msra.mxu0 0.0
    %3111 = vmatprep.subr.mxu0 0.0
    %3112 = vmatpush1.msra.mxu0 0.0
    %3113 = vmatprep.subr.mxu0 0.0
    %3114 = vmatpush1.msra.mxu0 0.0
    %3115 = vmatprep.subr.mxu0 0.0
    %3116 = vmatpush1.msra.mxu0 0.0
    %3117 = vmatprep.subr.mxu0 0.0
    %3118 = vmatpush1.msra.mxu0 0.0
    %3119 = vmatprep.subr.mxu0 0.0
    %3120 = vmatpush1.msra.mxu0 0.0
    %3121 = vmatprep.subr.mxu0 0.0
    %3122 = vmatpush1.msra.mxu0 0.0
    %3123 = vmatprep.subr.mxu0 0.0
    %3124 = vmatpush1.msra.mxu0 0.0
    %3125 = vmatprep.subr.mxu0 0.0
    %3126 = vmatpush1.msra.mxu0 0.0
    %3127 = vmatprep.subr.mxu0 0.0
    %3128 = vmatpush1.msra.mxu0 0.0
    %3129 = vmatprep.subr.mxu0 0.0
    %3130 = vmatpush1.msra.mxu0 0.0
    %3131 = vmatprep.subr.mxu0 0.0
    %3132 = vmatpush1.msra.mxu0 0.0
    %3133 = vmatprep.subr.mxu0 0.0
    %3134 = vmatpush1.msra.mxu0 0.0
    %3135 = vmatprep.subr.mxu0 0.0
    %3136 = vmatpush1.msra.mxu0 0.0
    %3137 = vmatprep.subr.mxu0 0.0
    %3138 = vmatpush1.msra.mxu0 0.0
    %3139 = vmatprep.subr.mxu0 0.0
    %3140 = vmatpush1.msra.mxu0 0.0
    %3141 = vmatprep.subr.mxu0 0.0
    %3142 = vmatpush1.msra.mxu0 0.0
    %3143 = vmatprep.subr.mxu0 0.0
    %3144 = vmatpush1.msra.mxu0 0.0
    %3145 = vmatprep.subr.mxu0 0.0
    %3146 = vmatpush1.msra.mxu0 0.0
    %3147 = vmatprep.subr.mxu0 0.0
    %3148 = vmatpush1.msra.mxu0 0.0
    %3149 = vmatprep.subr.mxu0 0.0
    %3150 = vmatpush1.msra.mxu0 0.0
    %3151 = vmatprep.subr.mxu0 0.0
    %3152 = vmatpush1.msra.mxu0 0.0
    %3153 = vmatprep.subr.mxu0 0.0
    %3154 = vmatpush1.msra.mxu0 0.0
    %3155 = vmatprep.subr.mxu0 0.0
    %3156 = vmatpush1.msra.mxu0 0.0
    %3157 = vmatprep.subr.mxu0 0.0
    %3158 = vmatpush1.msra.mxu0 0.0
    %3159 = vmatprep.subr.mxu0 0.0
    %3160 = vmatpush1.msra.mxu0 0.0
    %3161 = vmatprep.subr.mxu0 0.0
    %3162 = vmatpush1.msra.mxu0 0.0
    %3163 = vmatprep.mubr.f32.mxu0 0.0
    %3164 = vmatmul.mubr.f32.gmra.mrb[0].mxu0 %v2990
    %v3165 = vpop.f32.mrb[0].mxu0
    %v3166 = vadd.f32 0.0, %v3165
    %v3167 = vpop.f32.mrb[0].mxu0
    %3168 = vmatprep.mubr.f32.mxu0 0.0
    %3169 = vmatmul.mubr.f32.gmra.mrb[0].mxu0 %v2993
    %v3170 = vpop.f32.mrb[0].mxu0
    %v3171 = vadd.f32 0.0, %v3170
    %v3172 = vpop.f32.mrb[0].mxu0
    %3173 = vmatprep.mubr.f32.mxu0 0.0
    %3174 = vmatmul.mubr.f32.gmra.mrb[0].mxu0 %v2996
    %v3175 = vpop.f32.mrb[0].mxu0
    %v3176 = vadd.f32 0.0, %v3175
    %v3177 = vpop.f32.mrb[0].mxu0
    %3178 = vmatprep.mubr.f32.mxu0 0.0
    %3179 = vmatmul.mubr.f32.gmra.mrb[0].mxu0 %v2999
    %v3180 = vpop.f32.mrb[0].mxu0
    %v3181 = vadd.f32 0.0, %v3180
    %v3182 = vpop.f32.mrb[0].mxu0
    %3183 = vdwg.mxu0
    %v3184 = vadd.f32 %v3095, %v3166
    %v3185 = vadd.f32 %v3096, %v3171
    %v3186 = vadd.f32 %v3097, %v3176
    %v3187 = vadd.f32 %v3098, %v3181
    %v3188 = vxor.u32 %v3184, 2147483648
    %v3189 = vxor.u32 %v3185, 2147483648
    %v3190 = vxor.u32 %v3186, 2147483648
    %v3191 = vxor.u32 %v3187, 2147483648
    %v3192 = vmul.f32 %v3188, 1.442695
    %v3193 = vpow.pop %v3192
    %v3194 = vmul.f32 %v3189, 1.442695
    %v3195 = vpow.pop %v3194
    %v3196 = vmul.f32 %v3190, 1.442695
    %v3197 = vpow.pop %v3196
    %v3198 = vmul.f32 %v3191, 1.442695
    %v3199 = vpow.pop %v3198
    %v3200 = vadd.f32 %v3193, 1.0
    %v3201 = vadd.f32 %v3195, 1.0
    %v3202 = vadd.f32 %v3197, 1.0
    %v3203 = vadd.f32 %v3199, 1.0
    %v3204 = vrcp.pop %v3200
    %v3205 = vmul.f32 1.0, %v3204
    %v3206 = vrcp.pop %v3201
    %v3207 = vmul.f32 1.0, %v3206
    %v3208 = vrcp.pop %v3202
    %v3209 = vmul.f32 1.0, %v3208
    %v3210 = vrcp.pop %v3203
    %v3211 = vmul.f32 1.0, %v3210
    %s3212 = scalar_lea.vmem [#allocation4], 832
    %v3213 = vld [vmem:[%s3212] sm:$0xff]
    %v3214 = vld [vmem:[%s3212 + $0x8] sm:$0xff]
    %v3215 = vld [vmem:[%s3212 + $0x10] sm:$0xff]
    %v3216 = vld [vmem:[%s3212 + $0x18] sm:$0xff]
    %3217 = vmatprep.subr.mxu0 0.0
    %3218 = vmatpush1.msra.mxu0 %v71
    %3219 = vmatprep.subr.mxu0 0.0
    %3220 = vmatpush1.msra.mxu0 %v72
    %3221 = vmatprep.subr.mxu0 0.0
    %3222 = vmatpush1.msra.mxu0 %v73
    %3223 = vmatprep.subr.mxu0 0.0
    %3224 = vmatpush1.msra.mxu0 %v74
    %3225 = vmatprep.subr.mxu0 0.0
    %3226 = vmatpush1.msra.mxu0 0.0
    %3227 = vmatprep.subr.mxu0 0.0
    %3228 = vmatpush1.msra.mxu0 0.0
    %3229 = vmatprep.subr.mxu0 0.0
    %3230 = vmatpush1.msra.mxu0 0.0
    %3231 = vmatprep.subr.mxu0 0.0
    %3232 = vmatpush1.msra.mxu0 0.0
    %3233 = vmatprep.subr.mxu0 0.0
    %3234 = vmatpush1.msra.mxu0 0.0
    %3235 = vmatprep.subr.mxu0 0.0
    %3236 = vmatpush1.msra.mxu0 0.0
    %3237 = vmatprep.subr.mxu0 0.0
    %3238 = vmatpush1.msra.mxu0 0.0
    %3239 = vmatprep.subr.mxu0 0.0
    %3240 = vmatpush1.msra.mxu0 0.0
    %3241 = vmatprep.subr.mxu0 0.0
    %3242 = vmatpush1.msra.mxu0 0.0
    %3243 = vmatprep.subr.mxu0 0.0
    %3244 = vmatpush1.msra.mxu0 0.0
    %3245 = vmatprep.subr.mxu0 0.0
    %3246 = vmatpush1.msra.mxu0 0.0
    %3247 = vmatprep.subr.mxu0 0.0
    %3248 = vmatpush1.msra.mxu0 0.0
    %3249 = vmatprep.subr.mxu0 0.0
    %3250 = vmatpush1.msra.mxu0 0.0
    %3251 = vmatprep.subr.mxu0 0.0
    %3252 = vmatpush1.msra.mxu0 0.0
    %3253 = vmatprep.subr.mxu0 0.0
    %3254 = vmatpush1.msra.mxu0 0.0
    %3255 = vmatprep.subr.mxu0 0.0
    %3256 = vmatpush1.msra.mxu0 0.0
    %3257 = vmatprep.subr.mxu0 0.0
    %3258 = vmatpush1.msra.mxu0 0.0
    %3259 = vmatprep.subr.mxu0 0.0
    %3260 = vmatpush1.msra.mxu0 0.0
    %3261 = vmatprep.subr.mxu0 0.0
    %3262 = vmatpush1.msra.mxu0 0.0
    %3263 = vmatprep.subr.mxu0 0.0
    %3264 = vmatpush1.msra.mxu0 0.0
    %3265 = vmatprep.subr.mxu0 0.0
    %3266 = vmatpush1.msra.mxu0 0.0
    %3267 = vmatprep.subr.mxu0 0.0
    %3268 = vmatpush1.msra.mxu0 0.0
    %3269 = vmatprep.subr.mxu0 0.0
    %3270 = vmatpush1.msra.mxu0 0.0
    %3271 = vmatprep.subr.mxu0 0.0
    %3272 = vmatpush1.msra.mxu0 0.0
    %3273 = vmatprep.subr.mxu0 0.0
    %3274 = vmatpush1.msra.mxu0 0.0
    %3275 = vmatprep.subr.mxu0 0.0
    %3276 = vmatpush1.msra.mxu0 0.0
    %3277 = vmatprep.subr.mxu0 0.0
    %3278 = vmatpush1.msra.mxu0 0.0
    %3279 = vmatprep.subr.mxu0 0.0
    %3280 = vmatpush1.msra.mxu0 0.0
    %3281 = vmatprep.mubr.f32.mxu0 0.0
    %3282 = vmatmul.mubr.f32.gmra.mrb[0].mxu0 %v2990
    %v3283 = vpop.f32.mrb[0].mxu0
    %v3284 = vadd.f32 0.0, %v3283
    %v3285 = vpop.f32.mrb[0].mxu0
    %3286 = vmatprep.mubr.f32.mxu0 0.0
    %3287 = vmatmul.mubr.f32.gmra.mrb[0].mxu0 %v2993
    %v3288 = vpop.f32.mrb[0].mxu0
    %v3289 = vadd.f32 0.0, %v3288
    %v3290 = vpop.f32.mrb[0].mxu0
    %3291 = vmatprep.mubr.f32.mxu0 0.0
    %3292 = vmatmul.mubr.f32.gmra.mrb[0].mxu0 %v2996
    %v3293 = vpop.f32.mrb[0].mxu0
    %v3294 = vadd.f32 0.0, %v3293
    %v3295 = vpop.f32.mrb[0].mxu0
    %3296 = vmatprep.mubr.f32.mxu0 0.0
    %3297 = vmatmul.mubr.f32.gmra.mrb[0].mxu0 %v2999
    %v3298 = vpop.f32.mrb[0].mxu0
    %v3299 = vadd.f32 0.0, %v3298
    %v3300 = vpop.f32.mrb[0].mxu0
    %3301 = vdwg.mxu0
    %v3302 = vadd.f32 %v3213, %v3284
    %v3303 = vadd.f32 %v3214, %v3289
    %v3304 = vadd.f32 %v3215, %v3294
    %v3305 = vadd.f32 %v3216, %v3299
    %v3306 = vxor.u32 %v3302, 2147483648
    %v3307 = vxor.u32 %v3303, 2147483648
    %v3308 = vxor.u32 %v3304, 2147483648
    %v3309 = vxor.u32 %v3305, 2147483648
    %v3310 = vmul.f32 %v3306, 1.442695
    %v3311 = vpow.pop %v3310
    %v3312 = vmul.f32 %v3307, 1.442695
    %v3313 = vpow.pop %v3312
    %v3314 = vmul.f32 %v3308, 1.442695
    %v3315 = vpow.pop %v3314
    %v3316 = vmul.f32 %v3309, 1.442695
    %v3317 = vpow.pop %v3316
    %v3318 = vadd.f32 %v3311, 1.0
    %v3319 = vadd.f32 %v3313, 1.0
    %v3320 = vadd.f32 %v3315, 1.0
    %v3321 = vadd.f32 %v3317, 1.0
    %v3322 = vrcp.pop %v3318
    %v3323 = vmul.f32 1.0, %v3322
    %v3324 = vrcp.pop %v3319
    %v3325 = vmul.f32 1.0, %v3324
    %v3326 = vrcp.pop %v3320
    %v3327 = vmul.f32 1.0, %v3326
    %v3328 = vrcp.pop %v3321
    %v3329 = vmul.f32 1.0, %v3328
    %s3330 = scalar_lea.vmem [#allocation4], 864
    %v3331 = vld [vmem:[%s3330] sm:$0xff]
    %v3332 = vld [vmem:[%s3330 + $0x8] sm:$0xff]
    %v3333 = vld [vmem:[%s3330 + $0x10] sm:$0xff]
    %v3334 = vld [vmem:[%s3330 + $0x18] sm:$0xff]
    %3335 = vmatprep.subr.mxu0 0.0
    %3336 = vmatpush1.msra.mxu0 %v76
    %3337 = vmatprep.subr.mxu0 0.0
    %3338 = vmatpush1.msra.mxu0 %v77
    %3339 = vmatprep.subr.mxu0 0.0
    %3340 = vmatpush1.msra.mxu0 %v78
    %3341 = vmatprep.subr.mxu0 0.0
    %3342 = vmatpush1.msra.mxu0 %v79
    %3343 = vmatprep.subr.mxu0 0.0
    %3344 = vmatpush1.msra.mxu0 0.0
    %3345 = vmatprep.subr.mxu0 0.0
    %3346 = vmatpush1.msra.mxu0 0.0
    %3347 = vmatprep.subr.mxu0 0.0
    %3348 = vmatpush1.msra.mxu0 0.0
    %3349 = vmatprep.subr.mxu0 0.0
    %3350 = vmatpush1.msra.mxu0 0.0
    %3351 = vmatprep.subr.mxu0 0.0
    %3352 = vmatpush1.msra.mxu0 0.0
    %3353 = vmatprep.subr.mxu0 0.0
    %3354 = vmatpush1.msra.mxu0 0.0
    %3355 = vmatprep.subr.mxu0 0.0
    %3356 = vmatpush1.msra.mxu0 0.0
    %3357 = vmatprep.subr.mxu0 0.0
    %3358 = vmatpush1.msra.mxu0 0.0
    %3359 = vmatprep.subr.mxu0 0.0
    %3360 = vmatpush1.msra.mxu0 0.0
    %3361 = vmatprep.subr.mxu0 0.0
    %3362 = vmatpush1.msra.mxu0 0.0
    %3363 = vmatprep.subr.mxu0 0.0
    %3364 = vmatpush1.msra.mxu0 0.0
    %3365 = vmatprep.subr.mxu0 0.0
    %3366 = vmatpush1.msra.mxu0 0.0
    %3367 = vmatprep.subr.mxu0 0.0
    %3368 = vmatpush1.msra.mxu0 0.0
    %3369 = vmatprep.subr.mxu0 0.0
    %3370 = vmatpush1.msra.mxu0 0.0
    %3371 = vmatprep.subr.mxu0 0.0
    %3372 = vmatpush1.msra.mxu0 0.0
    %3373 = vmatprep.subr.mxu0 0.0
    %3374 = vmatpush1.msra.mxu0 0.0
    %3375 = vmatprep.subr.mxu0 0.0
    %3376 = vmatpush1.msra.mxu0 0.0
    %3377 = vmatprep.subr.mxu0 0.0
    %3378 = vmatpush1.msra.mxu0 0.0
    %3379 = vmatprep.subr.mxu0 0.0
    %3380 = vmatpush1.msra.mxu0 0.0
    %3381 = vmatprep.subr.mxu0 0.0
    %3382 = vmatpush1.msra.mxu0 0.0
    %3383 = vmatprep.subr.mxu0 0.0
    %3384 = vmatpush1.msra.mxu0 0.0
    %3385 = vmatprep.subr.mxu0 0.0
    %3386 = vmatpush1.msra.mxu0 0.0
    %3387 = vmatprep.subr.mxu0 0.0
    %3388 = vmatpush1.msra.mxu0 0.0
    %3389 = vmatprep.subr.mxu0 0.0
    %3390 = vmatpush1.msra.mxu0 0.0
    %3391 = vmatprep.subr.mxu0 0.0
    %3392 = vmatpush1.msra.mxu0 0.0
    %3393 = vmatprep.subr.mxu0 0.0
    %3394 = vmatpush1.msra.mxu0 0.0
    %3395 = vmatprep.subr.mxu0 0.0
    %3396 = vmatpush1.msra.mxu0 0.0
    %3397 = vmatprep.subr.mxu0 0.0
    %3398 = vmatpush1.msra.mxu0 0.0
    %3399 = vmatprep.mubr.f32.mxu0 0.0
    %3400 = vmatmul.mubr.f32.gmra.mrb[0].mxu0 %v2990
    %v3401 = vpop.f32.mrb[0].mxu0
    %v3402 = vadd.f32 0.0, %v3401
    %v3403 = vpop.f32.mrb[0].mxu0
    %3404 = vmatprep.mubr.f32.mxu0 0.0
    %3405 = vmatmul.mubr.f32.gmra.mrb[0].mxu0 %v2993
    %v3406 = vpop.f32.mrb[0].mxu0
    %v3407 = vadd.f32 0.0, %v3406
    %v3408 = vpop.f32.mrb[0].mxu0
    %3409 = vmatprep.mubr.f32.mxu0 0.0
    %3410 = vmatmul.mubr.f32.gmra.mrb[0].mxu0 %v2996
    %v3411 = vpop.f32.mrb[0].mxu0
    %v3412 = vadd.f32 0.0, %v3411
    %v3413 = vpop.f32.mrb[0].mxu0
    %3414 = vmatprep.mubr.f32.mxu0 0.0
    %3415 = vmatmul.mubr.f32.gmra.mrb[0].mxu0 %v2999
    %v3416 = vpop.f32.mrb[0].mxu0
    %v3417 = vadd.f32 0.0, %v3416
    %v3418 = vpop.f32.mrb[0].mxu0
    %3419 = vdwg.mxu0
    %v3420 = vadd.f32 %v3331, %v3402
    %v3421 = vadd.f32 %v3332, %v3407
    %v3422 = vadd.f32 %v3333, %v3412
    %v3423 = vadd.f32 %v3334, %v3417
    %v3424 = vxor.u32 %v3420, 2147483648
    %v3425 = vxor.u32 %v3421, 2147483648
    %v3426 = vxor.u32 %v3422, 2147483648
    %v3427 = vxor.u32 %v3423, 2147483648
    %v3428 = vmul.f32 %v3424, 1.442695
    %v3429 = vpow.pop %v3428
    %v3430 = vmul.f32 %v3425, 1.442695
    %v3431 = vpow.pop %v3430
    %v3432 = vmul.f32 %v3426, 1.442695
    %v3433 = vpow.pop %v3432
    %v3434 = vmul.f32 %v3427, 1.442695
    %v3435 = vpow.pop %v3434
    %v3436 = vadd.f32 %v3429, 1.0
    %v3437 = vadd.f32 %v3431, 1.0
    %v3438 = vadd.f32 %v3433, 1.0
    %v3439 = vadd.f32 %v3435, 1.0
    %v3440 = vrcp.pop %v3436
    %v3441 = vmul.f32 1.0, %v3440
    %v3442 = vrcp.pop %v3437
    %v3443 = vmul.f32 1.0, %v3442
    %v3444 = vrcp.pop %v3438
    %v3445 = vmul.f32 1.0, %v3444
    %v3446 = vrcp.pop %v3439
    %v3447 = vmul.f32 1.0, %v3446
    %v3448 = vmul.f32 %v3090, %v3205
    %v3449 = vmul.f32 %v3091, %v3207
    %v3450 = vmul.f32 %v3092, %v3209
    %v3451 = vmul.f32 %v3093, %v3211
    %v3452 = vmul.f32 %v2972, %v3323
    %v3453 = vmul.f32 %v2973, %v3325
    %v3454 = vmul.f32 %v2974, %v3327
    %v3455 = vmul.f32 %v2975, %v3329
    %v3456 = vadd.f32 %v3448, %v3452
    %v3457 = vadd.f32 %v3449, %v3453
    %v3458 = vadd.f32 %v3450, %v3454
    %v3459 = vadd.f32 %v3451, %v3455
    %v3460 = vtanh.pop %v3456
    %v3461 = vtanh.pop %v3457
    %v3462 = vtanh.pop %v3458
    %v3463 = vtanh.pop %v3459
    %v3464 = vmul.f32 %v3460, %v3441
    %v3465 = vmul.f32 %v3461, %v3443
    %v3466 = vmul.f32 %v3462, %v3445
    %v3467 = vmul.f32 %v3463, %v3447
    %s3468 = scalar_lea.vmem [#allocation4], 896
    %v3469 = vld [vmem:[%s3468] sm:$0xff]
    %v3470 = vld [vmem:[%s3468 + $0x8] sm:$0xff]
    %v3471 = vld [vmem:[%s3468 + $0x10] sm:$0xff]
    %v3472 = vld [vmem:[%s3468 + $0x18] sm:$0xff]
    %v3474 = vsel %vm84, %v3464, 0
    %v3477 = vsel %vm84, %v3465, 0
    %v3480 = vsel %vm84, %v3466, 0
    %v3483 = vsel %vm84, %v3467, 0
    %3485 = vmatprep.subr.mxu0 0.0
    %3486 = vmatpush1.msra.mxu0 %v61
    %3487 = vmatprep.subr.mxu0 0.0
    %3488 = vmatpush1.msra.mxu0 %v62
    %3489 = vmatprep.subr.mxu0 0.0
    %3490 = vmatpush1.msra.mxu0 %v63
    %3491 = vmatprep.subr.mxu0 0.0
    %3492 = vmatpush1.msra.mxu0 %v64
    %3493 = vmatprep.subr.mxu0 0.0
    %3494 = vmatpush1.msra.mxu0 0.0
    %3495 = vmatprep.subr.mxu0 0.0
    %3496 = vmatpush1.msra.mxu0 0.0
    %3497 = vmatprep.subr.mxu0 0.0
    %3498 = vmatpush1.msra.mxu0 0.0
    %3499 = vmatprep.subr.mxu0 0.0
    %3500 = vmatpush1.msra.mxu0 0.0
    %3501 = vmatprep.subr.mxu0 0.0
    %3502 = vmatpush1.msra.mxu0 0.0
    %3503 = vmatprep.subr.mxu0 0.0
    %3504 = vmatpush1.msra.mxu0 0.0
    %3505 = vmatprep.subr.mxu0 0.0
    %3506 = vmatpush1.msra.mxu0 0.0
    %3507 = vmatprep.subr.mxu0 0.0
    %3508 = vmatpush1.msra.mxu0 0.0
    %3509 = vmatprep.subr.mxu0 0.0
    %3510 = vmatpush1.msra.mxu0 0.0
    %3511 = vmatprep.subr.mxu0 0.0
    %3512 = vmatpush1.msra.mxu0 0.0
    %3513 = vmatprep.subr.mxu0 0.0
    %3514 = vmatpush1.msra.mxu0 0.0
    %3515 = vmatprep.subr.mxu0 0.0
    %3516 = vmatpush1.msra.mxu0 0.0
    %3517 = vmatprep.subr.mxu0 0.0
    %3518 = vmatpush1.msra.mxu0 0.0
    %3519 = vmatprep.subr.mxu0 0.0
    %3520 = vmatpush1.msra.mxu0 0.0
    %3521 = vmatprep.subr.mxu0 0.0
    %3522 = vmatpush1.msra.mxu0 0.0
    %3523 = vmatprep.subr.mxu0 0.0
    %3524 = vmatpush1.msra.mxu0 0.0
    %3525 = vmatprep.subr.mxu0 0.0
    %3526 = vmatpush1.msra.mxu0 0.0
    %3527 = vmatprep.subr.mxu0 0.0
    %3528 = vmatpush1.msra.mxu0 0.0
    %3529 = vmatprep.subr.mxu0 0.0
    %3530 = vmatpush1.msra.mxu0 0.0
    %3531 = vmatprep.subr.mxu0 0.0
    %3532 = vmatpush1.msra.mxu0 0.0
    %3533 = vmatprep.subr.mxu0 0.0
    %3534 = vmatpush1.msra.mxu0 0.0
    %3535 = vmatprep.subr.mxu0 0.0
    %3536 = vmatpush1.msra.mxu0 0.0
    %3537 = vmatprep.subr.mxu0 0.0
    %3538 = vmatpush1.msra.mxu0 0.0
    %3539 = vmatprep.subr.mxu0 0.0
    %3540 = vmatpush1.msra.mxu0 0.0
    %3541 = vmatprep.subr.mxu0 0.0
    %3542 = vmatpush1.msra.mxu0 0.0
    %3543 = vmatprep.subr.mxu0 0.0
    %3544 = vmatpush1.msra.mxu0 0.0
    %3545 = vmatprep.subr.mxu0 0.0
    %3546 = vmatpush1.msra.mxu0 0.0
    %3547 = vmatprep.subr.mxu0 0.0
    %3548 = vmatpush1.msra.mxu0 0.0
    %3549 = vmatprep.mubr.f32.mxu0 0.0
    %3550 = vmatmul.mubr.f32.gmra.mrb[0].mxu0 %v3474
    %v3551 = vpop.f32.mrb[0].mxu0
    %v3552 = vadd.f32 0.0, %v3551
    %v3553 = vpop.f32.mrb[0].mxu0
    %3554 = vmatprep.mubr.f32.mxu0 0.0
    %3555 = vmatmul.mubr.f32.gmra.mrb[0].mxu0 %v3477
    %v3556 = vpop.f32.mrb[0].mxu0
    %v3557 = vadd.f32 0.0, %v3556
    %v3558 = vpop.f32.mrb[0].mxu0
    %3559 = vmatprep.mubr.f32.mxu0 0.0
    %3560 = vmatmul.mubr.f32.gmra.mrb[0].mxu0 %v3480
    %v3561 = vpop.f32.mrb[0].mxu0
    %v3562 = vadd.f32 0.0, %v3561
    %v3563 = vpop.f32.mrb[0].mxu0
    %3564 = vmatprep.mubr.f32.mxu0 0.0
    %3565 = vmatmul.mubr.f32.gmra.mrb[0].mxu0 %v3483
    %v3566 = vpop.f32.mrb[0].mxu0
    %v3567 = vadd.f32 0.0, %v3566
    %v3568 = vpop.f32.mrb[0].mxu0
    %3569 = vdwg.mxu0
    %v3570 = vadd.f32 %v3469, %v3552
    %v3571 = vadd.f32 %v3470, %v3557
    %v3572 = vadd.f32 %v3471, %v3562
    %v3573 = vadd.f32 %v3472, %v3567
    %v3574 = vtanh.pop %v3570
    %v3575 = vtanh.pop %v3571
    %v3576 = vtanh.pop %v3572
    %v3577 = vtanh.pop %v3573
    %s3578 = scalar_lea.vmem [#allocation4], 928
    %v3579 = vld [vmem:[%s3578] sm:$0xff]
    %v3580 = vld [vmem:[%s3578 + $0x8] sm:$0xff]
    %v3581 = vld [vmem:[%s3578 + $0x10] sm:$0xff]
    %v3582 = vld [vmem:[%s3578 + $0x18] sm:$0xff]
    %3583 = vmatprep.subr.mxu0 0.0
    %3584 = vmatpush1.msra.mxu0 %v66
    %3585 = vmatprep.subr.mxu0 0.0
    %3586 = vmatpush1.msra.mxu0 %v67
    %3587 = vmatprep.subr.mxu0 0.0
    %3588 = vmatpush1.msra.mxu0 %v68
    %3589 = vmatprep.subr.mxu0 0.0
    %3590 = vmatpush1.msra.mxu0 %v69
    %3591 = vmatprep.subr.mxu0 0.0
    %3592 = vmatpush1.msra.mxu0 0.0
    %3593 = vmatprep.subr.mxu0 0.0
    %3594 = vmatpush1.msra.mxu0 0.0
    %3595 = vmatprep.subr.mxu0 0.0
    %3596 = vmatpush1.msra.mxu0 0.0
    %3597 = vmatprep.subr.mxu0 0.0
    %3598 = vmatpush1.msra.mxu0 0.0
    %3599 = vmatprep.subr.mxu0 0.0
    %3600 = vmatpush1.msra.mxu0 0.0
    %3601 = vmatprep.subr.mxu0 0.0
    %3602 = vmatpush1.msra.mxu0 0.0
    %3603 = vmatprep.subr.mxu0 0.0
    %3604 = vmatpush1.msra.mxu0 0.0
    %3605 = vmatprep.subr.mxu0 0.0
    %3606 = vmatpush1.msra.mxu0 0.0
    %3607 = vmatprep.subr.mxu0 0.0
    %3608 = vmatpush1.msra.mxu0 0.0
    %3609 = vmatprep.subr.mxu0 0.0
    %3610 = vmatpush1.msra.mxu0 0.0
    %3611 = vmatprep.subr.mxu0 0.0
    %3612 = vmatpush1.msra.mxu0 0.0
    %3613 = vmatprep.subr.mxu0 0.0
    %3614 = vmatpush1.msra.mxu0 0.0
    %3615 = vmatprep.subr.mxu0 0.0
    %3616 = vmatpush1.msra.mxu0 0.0
    %3617 = vmatprep.subr.mxu0 0.0
    %3618 = vmatpush1.msra.mxu0 0.0
    %3619 = vmatprep.subr.mxu0 0.0
    %3620 = vmatpush1.msra.mxu0 0.0
    %3621 = vmatprep.subr.mxu0 0.0
    %3622 = vmatpush1.msra.mxu0 0.0
    %3623 = vmatprep.subr.mxu0 0.0
    %3624 = vmatpush1.msra.mxu0 0.0
    %3625 = vmatprep.subr.mxu0 0.0
    %3626 = vmatpush1.msra.mxu0 0.0
    %3627 = vmatprep.subr.mxu0 0.0
    %3628 = vmatpush1.msra.mxu0 0.0
    %3629 = vmatprep.subr.mxu0 0.0
    %3630 = vmatpush1.msra.mxu0 0.0
    %3631 = vmatprep.subr.mxu0 0.0
    %3632 = vmatpush1.msra.mxu0 0.0
    %3633 = vmatprep.subr.mxu0 0.0
    %3634 = vmatpush1.msra.mxu0 0.0
    %3635 = vmatprep.subr.mxu0 0.0
    %3636 = vmatpush1.msra.mxu0 0.0
    %3637 = vmatprep.subr.mxu0 0.0
    %3638 = vmatpush1.msra.mxu0 0.0
    %3639 = vmatprep.subr.mxu0 0.0
    %3640 = vmatpush1.msra.mxu0 0.0
    %3641 = vmatprep.subr.mxu0 0.0
    %3642 = vmatpush1.msra.mxu0 0.0
    %3643 = vmatprep.subr.mxu0 0.0
    %3644 = vmatpush1.msra.mxu0 0.0
    %3645 = vmatprep.subr.mxu0 0.0
    %3646 = vmatpush1.msra.mxu0 0.0
    %3647 = vmatprep.mubr.f32.mxu0 0.0
    %3648 = vmatmul.mubr.f32.gmra.mrb[0].mxu0 %v3474
    %v3649 = vpop.f32.mrb[0].mxu0
    %v3650 = vadd.f32 0.0, %v3649
    %v3651 = vpop.f32.mrb[0].mxu0
    %3652 = vmatprep.mubr.f32.mxu0 0.0
    %3653 = vmatmul.mubr.f32.gmra.mrb[0].mxu0 %v3477
    %v3654 = vpop.f32.mrb[0].mxu0
    %v3655 = vadd.f32 0.0, %v3654
    %v3656 = vpop.f32.mrb[0].mxu0
    %3657 = vmatprep.mubr.f32.mxu0 0.0
    %3658 = vmatmul.mubr.f32.gmra.mrb[0].mxu0 %v3480
    %v3659 = vpop.f32.mrb[0].mxu0
    %v3660 = vadd.f32 0.0, %v3659
    %v3661 = vpop.f32.mrb[0].mxu0
    %3662 = vmatprep.mubr.f32.mxu0 0.0
    %3663 = vmatmul.mubr.f32.gmra.mrb[0].mxu0 %v3483
    %v3664 = vpop.f32.mrb[0].mxu0
    %v3665 = vadd.f32 0.0, %v3664
    %v3666 = vpop.f32.mrb[0].mxu0
    %3667 = vdwg.mxu0
    %v3668 = vadd.f32 %v3579, %v3650
    %v3669 = vadd.f32 %v3580, %v3655
    %v3670 = vadd.f32 %v3581, %v3660
    %v3671 = vadd.f32 %v3582, %v3665
    %v3672 = vxor.u32 %v3668, 2147483648
    %v3673 = vxor.u32 %v3669, 2147483648
    %v3674 = vxor.u32 %v3670, 2147483648
    %v3675 = vxor.u32 %v3671, 2147483648
    %v3676 = vmul.f32 %v3672, 1.442695
    %v3677 = vpow.pop %v3676
    %v3678 = vmul.f32 %v3673, 1.442695
    %v3679 = vpow.pop %v3678
    %v3680 = vmul.f32 %v3674, 1.442695
    %v3681 = vpow.pop %v3680
    %v3682 = vmul.f32 %v3675, 1.442695
    %v3683 = vpow.pop %v3682
    %v3684 = vadd.f32 %v3677, 1.0
    %v3685 = vadd.f32 %v3679, 1.0
    %v3686 = vadd.f32 %v3681, 1.0
    %v3687 = vadd.f32 %v3683, 1.0
    %v3688 = vrcp.pop %v3684
    %v3689 = vmul.f32 1.0, %v3688
    %v3690 = vrcp.pop %v3685
    %v3691 = vmul.f32 1.0, %v3690
    %v3692 = vrcp.pop %v3686
    %v3693 = vmul.f32 1.0, %v3692
    %v3694 = vrcp.pop %v3687
    %v3695 = vmul.f32 1.0, %v3694
    %s3696 = scalar_lea.vmem [#allocation4], 960
    %v3697 = vld [vmem:[%s3696] sm:$0xff]
    %v3698 = vld [vmem:[%s3696 + $0x8] sm:$0xff]
    %v3699 = vld [vmem:[%s3696 + $0x10] sm:$0xff]
    %v3700 = vld [vmem:[%s3696 + $0x18] sm:$0xff]
    %3701 = vmatprep.subr.mxu0 0.0
    %3702 = vmatpush1.msra.mxu0 %v71
    %3703 = vmatprep.subr.mxu0 0.0
    %3704 = vmatpush1.msra.mxu0 %v72
    %3705 = vmatprep.subr.mxu0 0.0
    %3706 = vmatpush1.msra.mxu0 %v73
    %3707 = vmatprep.subr.mxu0 0.0
    %3708 = vmatpush1.msra.mxu0 %v74
    %3709 = vmatprep.subr.mxu0 0.0
    %3710 = vmatpush1.msra.mxu0 0.0
    %3711 = vmatprep.subr.mxu0 0.0
    %3712 = vmatpush1.msra.mxu0 0.0
    %3713 = vmatprep.subr.mxu0 0.0
    %3714 = vmatpush1.msra.mxu0 0.0
    %3715 = vmatprep.subr.mxu0 0.0
    %3716 = vmatpush1.msra.mxu0 0.0
    %3717 = vmatprep.subr.mxu0 0.0
    %3718 = vmatpush1.msra.mxu0 0.0
    %3719 = vmatprep.subr.mxu0 0.0
    %3720 = vmatpush1.msra.mxu0 0.0
    %3721 = vmatprep.subr.mxu0 0.0
    %3722 = vmatpush1.msra.mxu0 0.0
    %3723 = vmatprep.subr.mxu0 0.0
    %3724 = vmatpush1.msra.mxu0 0.0
    %3725 = vmatprep.subr.mxu0 0.0
    %3726 = vmatpush1.msra.mxu0 0.0
    %3727 = vmatprep.subr.mxu0 0.0
    %3728 = vmatpush1.msra.mxu0 0.0
    %3729 = vmatprep.subr.mxu0 0.0
    %3730 = vmatpush1.msra.mxu0 0.0
    %3731 = vmatprep.subr.mxu0 0.0
    %3732 = vmatpush1.msra.mxu0 0.0
    %3733 = vmatprep.subr.mxu0 0.0
    %3734 = vmatpush1.msra.mxu0 0.0
    %3735 = vmatprep.subr.mxu0 0.0
    %3736 = vmatpush1.msra.mxu0 0.0
    %3737 = vmatprep.subr.mxu0 0.0
    %3738 = vmatpush1.msra.mxu0 0.0
    %3739 = vmatprep.subr.mxu0 0.0
    %3740 = vmatpush1.msra.mxu0 0.0
    %3741 = vmatprep.subr.mxu0 0.0
    %3742 = vmatpush1.msra.mxu0 0.0
    %3743 = vmatprep.subr.mxu0 0.0
    %3744 = vmatpush1.msra.mxu0 0.0
    %3745 = vmatprep.subr.mxu0 0.0
    %3746 = vmatpush1.msra.mxu0 0.0
    %3747 = vmatprep.subr.mxu0 0.0
    %3748 = vmatpush1.msra.mxu0 0.0
    %3749 = vmatprep.subr.mxu0 0.0
    %3750 = vmatpush1.msra.mxu0 0.0
    %3751 = vmatprep.subr.mxu0 0.0
    %3752 = vmatpush1.msra.mxu0 0.0
    %3753 = vmatprep.subr.mxu0 0.0
    %3754 = vmatpush1.msra.mxu0 0.0
    %3755 = vmatprep.subr.mxu0 0.0
    %3756 = vmatpush1.msra.mxu0 0.0
    %3757 = vmatprep.subr.mxu0 0.0
    %3758 = vmatpush1.msra.mxu0 0.0
    %3759 = vmatprep.subr.mxu0 0.0
    %3760 = vmatpush1.msra.mxu0 0.0
    %3761 = vmatprep.subr.mxu0 0.0
    %3762 = vmatpush1.msra.mxu0 0.0
    %3763 = vmatprep.subr.mxu0 0.0
    %3764 = vmatpush1.msra.mxu0 0.0
    %3765 = vmatprep.mubr.f32.mxu0 0.0
    %3766 = vmatmul.mubr.f32.gmra.mrb[0].mxu0 %v3474
    %v3767 = vpop.f32.mrb[0].mxu0
    %v3768 = vadd.f32 0.0, %v3767
    %v3769 = vpop.f32.mrb[0].mxu0
    %3770 = vmatprep.mubr.f32.mxu0 0.0
    %3771 = vmatmul.mubr.f32.gmra.mrb[0].mxu0 %v3477
    %v3772 = vpop.f32.mrb[0].mxu0
    %v3773 = vadd.f32 0.0, %v3772
    %v3774 = vpop.f32.mrb[0].mxu0
    %3775 = vmatprep.mubr.f32.mxu0 0.0
    %3776 = vmatmul.mubr.f32.gmra.mrb[0].mxu0 %v3480
    %v3777 = vpop.f32.mrb[0].mxu0
    %v3778 = vadd.f32 0.0, %v3777
    %v3779 = vpop.f32.mrb[0].mxu0
    %3780 = vmatprep.mubr.f32.mxu0 0.0
    %3781 = vmatmul.mubr.f32.gmra.mrb[0].mxu0 %v3483
    %v3782 = vpop.f32.mrb[0].mxu0
    %v3783 = vadd.f32 0.0, %v3782
    %v3784 = vpop.f32.mrb[0].mxu0
    %3785 = vdwg.mxu0
    %v3786 = vadd.f32 %v3697, %v3768
    %v3787 = vadd.f32 %v3698, %v3773
    %v3788 = vadd.f32 %v3699, %v3778
    %v3789 = vadd.f32 %v3700, %v3783
    %v3790 = vxor.u32 %v3786, 2147483648
    %v3791 = vxor.u32 %v3787, 2147483648
    %v3792 = vxor.u32 %v3788, 2147483648
    %v3793 = vxor.u32 %v3789, 2147483648
    %v3794 = vmul.f32 %v3790, 1.442695
    %v3795 = vpow.pop %v3794
    %v3796 = vmul.f32 %v3791, 1.442695
    %v3797 = vpow.pop %v3796
    %v3798 = vmul.f32 %v3792, 1.442695
    %v3799 = vpow.pop %v3798
    %v3800 = vmul.f32 %v3793, 1.442695
    %v3801 = vpow.pop %v3800
    %v3802 = vadd.f32 %v3795, 1.0
    %v3803 = vadd.f32 %v3797, 1.0
    %v3804 = vadd.f32 %v3799, 1.0
    %v3805 = vadd.f32 %v3801, 1.0
    %v3806 = vrcp.pop %v3802
    %v3807 = vmul.f32 1.0, %v3806
    %v3808 = vrcp.pop %v3803
    %v3809 = vmul.f32 1.0, %v3808
    %v3810 = vrcp.pop %v3804
    %v3811 = vmul.f32 1.0, %v3810
    %v3812 = vrcp.pop %v3805
    %v3813 = vmul.f32 1.0, %v3812
    %s3814 = scalar_lea.vmem [#allocation4], 992
    %v3815 = vld [vmem:[%s3814] sm:$0xff]
    %v3816 = vld [vmem:[%s3814 + $0x8] sm:$0xff]
    %v3817 = vld [vmem:[%s3814 + $0x10] sm:$0xff]
    %v3818 = vld [vmem:[%s3814 + $0x18] sm:$0xff]
    %3819 = vmatprep.subr.mxu0 0.0
    %3820 = vmatpush1.msra.mxu0 %v76
    %3821 = vmatprep.subr.mxu0 0.0
    %3822 = vmatpush1.msra.mxu0 %v77
    %3823 = vmatprep.subr.mxu0 0.0
    %3824 = vmatpush1.msra.mxu0 %v78
    %3825 = vmatprep.subr.mxu0 0.0
    %3826 = vmatpush1.msra.mxu0 %v79
    %3827 = vmatprep.subr.mxu0 0.0
    %3828 = vmatpush1.msra.mxu0 0.0
    %3829 = vmatprep.subr.mxu0 0.0
    %3830 = vmatpush1.msra.mxu0 0.0
    %3831 = vmatprep.subr.mxu0 0.0
    %3832 = vmatpush1.msra.mxu0 0.0
    %3833 = vmatprep.subr.mxu0 0.0
    %3834 = vmatpush1.msra.mxu0 0.0
    %3835 = vmatprep.subr.mxu0 0.0
    %3836 = vmatpush1.msra.mxu0 0.0
    %3837 = vmatprep.subr.mxu0 0.0
    %3838 = vmatpush1.msra.mxu0 0.0
    %3839 = vmatprep.subr.mxu0 0.0
    %3840 = vmatpush1.msra.mxu0 0.0
    %3841 = vmatprep.subr.mxu0 0.0
    %3842 = vmatpush1.msra.mxu0 0.0
    %3843 = vmatprep.subr.mxu0 0.0
    %3844 = vmatpush1.msra.mxu0 0.0
    %3845 = vmatprep.subr.mxu0 0.0
    %3846 = vmatpush1.msra.mxu0 0.0
    %3847 = vmatprep.subr.mxu0 0.0
    %3848 = vmatpush1.msra.mxu0 0.0
    %3849 = vmatprep.subr.mxu0 0.0
    %3850 = vmatpush1.msra.mxu0 0.0
    %3851 = vmatprep.subr.mxu0 0.0
    %3852 = vmatpush1.msra.mxu0 0.0
    %3853 = vmatprep.subr.mxu0 0.0
    %3854 = vmatpush1.msra.mxu0 0.0
    %3855 = vmatprep.subr.mxu0 0.0
    %3856 = vmatpush1.msra.mxu0 0.0
    %3857 = vmatprep.subr.mxu0 0.0
    %3858 = vmatpush1.msra.mxu0 0.0
    %3859 = vmatprep.subr.mxu0 0.0
    %3860 = vmatpush1.msra.mxu0 0.0
    %3861 = vmatprep.subr.mxu0 0.0
    %3862 = vmatpush1.msra.mxu0 0.0
    %3863 = vmatprep.subr.mxu0 0.0
    %3864 = vmatpush1.msra.mxu0 0.0
    %3865 = vmatprep.subr.mxu0 0.0
    %3866 = vmatpush1.msra.mxu0 0.0
    %3867 = vmatprep.subr.mxu0 0.0
    %3868 = vmatpush1.msra.mxu0 0.0
    %3869 = vmatprep.subr.mxu0 0.0
    %3870 = vmatpush1.msra.mxu0 0.0
    %3871 = vmatprep.subr.mxu0 0.0
    %3872 = vmatpush1.msra.mxu0 0.0
    %3873 = vmatprep.subr.mxu0 0.0
    %3874 = vmatpush1.msra.mxu0 0.0
    %3875 = vmatprep.subr.mxu0 0.0
    %3876 = vmatpush1.msra.mxu0 0.0
    %3877 = vmatprep.subr.mxu0 0.0
    %3878 = vmatpush1.msra.mxu0 0.0
    %3879 = vmatprep.subr.mxu0 0.0
    %3880 = vmatpush1.msra.mxu0 0.0
    %3881 = vmatprep.subr.mxu0 0.0
    %3882 = vmatpush1.msra.mxu0 0.0
    %3883 = vmatprep.mubr.f32.mxu0 0.0
    %3884 = vmatmul.mubr.f32.gmra.mrb[0].mxu0 %v3474
    %v3885 = vpop.f32.mrb[0].mxu0
    %v3886 = vadd.f32 0.0, %v3885
    %v3887 = vpop.f32.mrb[0].mxu0
    %3888 = vmatprep.mubr.f32.mxu0 0.0
    %3889 = vmatmul.mubr.f32.gmra.mrb[0].mxu0 %v3477
    %v3890 = vpop.f32.mrb[0].mxu0
    %v3891 = vadd.f32 0.0, %v3890
    %v3892 = vpop.f32.mrb[0].mxu0
    %3893 = vmatprep.mubr.f32.mxu0 0.0
    %3894 = vmatmul.mubr.f32.gmra.mrb[0].mxu0 %v3480
    %v3895 = vpop.f32.mrb[0].mxu0
    %v3896 = vadd.f32 0.0, %v3895
    %v3897 = vpop.f32.mrb[0].mxu0
    %3898 = vmatprep.mubr.f32.mxu0 0.0
    %3899 = vmatmul.mubr.f32.gmra.mrb[0].mxu0 %v3483
    %v3900 = vpop.f32.mrb[0].mxu0
    %v3901 = vadd.f32 0.0, %v3900
    %v3902 = vpop.f32.mrb[0].mxu0
    %3903 = vdwg.mxu0
    %v3904 = vadd.f32 %v3815, %v3886
    %v3905 = vadd.f32 %v3816, %v3891
    %v3906 = vadd.f32 %v3817, %v3896
    %v3907 = vadd.f32 %v3818, %v3901
    %v3908 = vxor.u32 %v3904, 2147483648
    %v3909 = vxor.u32 %v3905, 2147483648
    %v3910 = vxor.u32 %v3906, 2147483648
    %v3911 = vxor.u32 %v3907, 2147483648
    %v3912 = vmul.f32 %v3908, 1.442695
    %v3913 = vpow.pop %v3912
    %v3914 = vmul.f32 %v3909, 1.442695
    %v3915 = vpow.pop %v3914
    %v3916 = vmul.f32 %v3910, 1.442695
    %v3917 = vpow.pop %v3916
    %v3918 = vmul.f32 %v3911, 1.442695
    %v3919 = vpow.pop %v3918
    %v3920 = vadd.f32 %v3913, 1.0
    %v3921 = vadd.f32 %v3915, 1.0
    %v3922 = vadd.f32 %v3917, 1.0
    %v3923 = vadd.f32 %v3919, 1.0
    %v3924 = vrcp.pop %v3920
    %v3925 = vmul.f32 1.0, %v3924
    %v3926 = vrcp.pop %v3921
    %v3927 = vmul.f32 1.0, %v3926
    %v3928 = vrcp.pop %v3922
    %v3929 = vmul.f32 1.0, %v3928
    %v3930 = vrcp.pop %v3923
    %v3931 = vmul.f32 1.0, %v3930
    %v3932 = vmul.f32 %v3574, %v3689
    %v3933 = vmul.f32 %v3575, %v3691
    %v3934 = vmul.f32 %v3576, %v3693
    %v3935 = vmul.f32 %v3577, %v3695
    %v3936 = vmul.f32 %v3456, %v3807
    %v3937 = vmul.f32 %v3457, %v3809
    %v3938 = vmul.f32 %v3458, %v3811
    %v3939 = vmul.f32 %v3459, %v3813
    %v3940 = vadd.f32 %v3932, %v3936
    %v3941 = vadd.f32 %v3933, %v3937
    %v3942 = vadd.f32 %v3934, %v3938
    %v3943 = vadd.f32 %v3935, %v3939
    %v3944 = vtanh.pop %v3940
    %v3945 = vtanh.pop %v3941
    %v3946 = vtanh.pop %v3942
    %v3947 = vtanh.pop %v3943
    %v3948 = vmul.f32 %v3944, %v3925
    %v3949 = vmul.f32 %v3945, %v3927
    %v3950 = vmul.f32 %v3946, %v3929
    %v3951 = vmul.f32 %v3947, %v3931
    %3952 = vst.msk [vmem:[#allocation2] sm:$0xff] %vm84, %v3948
    %3953 = vst.msk [vmem:[#allocation2 + $0x8] sm:$0xff] %vm84, %v3949
    %3954 = vst.msk [vmem:[#allocation2 + $0x10] sm:$0xff] %vm84, %v3950
    %3955 = vst.msk [vmem:[#allocation2 + $0x18] sm:$0xff] %vm84, %v3951
    %3956 = vst.msk [vmem:[#allocation3] sm:$0xff] %vm84, %v3940
    %3957 = vst.msk [vmem:[#allocation3 + $0x8] sm:$0xff] %vm84, %v3941
    %3958 = vst.msk [vmem:[#allocation3 + $0x10] sm:$0xff] %vm84, %v3942
    %3959 = vst.msk [vmem:[#allocation3 + $0x18] sm:$0xff] %vm84, %v3943
    %3960 = vst.msk [vmem:[#allocation9] sm:$0xff] %vm84, %v3948
    %3961 = vst.msk [vmem:[#allocation9 + $0x8] sm:$0xff] %vm84, %v3949
    %3962 = vst.msk [vmem:[#allocation9 + $0x10] sm:$0xff] %vm84, %v3950
    %3963 = vst.msk [vmem:[#allocation9 + $0x18] sm:$0xff] %vm84, %v3951
    // Predicated region
    $region22: #{tpu_custom_call.1} parent=1 // pred_check
      _
    $region23: #{tpu_custom_call.1} parent=1 // pred_check_branch
      %3965 = sbr.rel (0) target = $region25
    $region24: #{tpu_custom_call.1} parent=1 // pred_region
      %s3967 = ssub.s32 512, 512
      %3968 = vsyncadd [#allocation6], %s3967
      %s3969 = sshll.u32 [#allocation9], 4
      %s3970 = int_to_ptr.vmem [resolvable:$true] %s3969
      %3975 = dma.vmem_to_hbm [thread:$0]  %s3970, 512, %s2, [#allocation6], 128, 128, 8
    $region25: #{tpu_custom_call.1} parent=1 // pred_fallthru
      _
    // Predicated region
    $region26: #{tpu_custom_call.1} parent=1 // pred_check
      _
    $region27: #{tpu_custom_call.1} parent=1 // pred_check_branch
      %3977 = sbr.rel (0) target = $region29
    $region28: #{tpu_custom_call.1} parent=1 // pred_region
      %3978 = dma.done [#allocation6], 512
    $region29: #{tpu_custom_call.1} parent=1 // pred_fallthru
      _
    %3979 = vsyncpa [#allocation5], 1
    %3980 = vsyncpa [#allocation8], 1
    %3981 = vsyncpa [#allocation6], 1

</llo_original>
